<compile_context>
chip_gen: v7x
topology: tpu7x:2x2x1
jax: 0.10.0
libtpu: 0.0.40
codegen_flags: <defaults>
</compile_context>

<pallas_src>
import functools

import jax
import jax.numpy as jnp
from jax import lax
from jax.experimental import pallas as pl
from jax.experimental.pallas import tpu as pltpu

EPS = 1e-5


def _band_weights(w, W, P):
    """HWIO weight (K, K, cin, cout) -> fused banded matrix (K*(W+2P)*cin, W*cout) bf16.

    BW[kh*(Wp*cin) + wp*cin + ci, w*cout + co] = w[kh, wp - w, ci, co] if
    0 <= wp - w < K else 0.  A kh-im2col'd padded row (K vertically shifted row
    views stacked along lanes) matmul'd with this matrix yields the full conv
    output row — all taps, all input channels, all (w, cout) — in one MXU call.
    """
    K, _, cin, cout = w.shape
    Wp = W + 2 * P
    big = jnp.zeros((K, Wp, cin, W, cout), jnp.float32)
    for kw in range(K):
        band = jnp.eye(Wp, W, k=-kw, dtype=jnp.float32)         # ones at (w + kw, w)
        big = big + jnp.einsum('pw,hio->hpiwo', band, w[:, kw].astype(jnp.float32))
    return big.reshape(K * Wp * cin, W * cout).astype(jnp.bfloat16)


def _write_padded(pad_ref, interior, N, H, W, P, C, zero_halo):
    """Write (N, H, W*C) interior into the (N, H+2P, (W+2P)*C) padded scratch.

    Only the halo (P rows top/bottom, P*C lanes left/right) is zero-filled, and
    only the first time a scratch buffer is used (interior is overwritten every
    stage, the halo stays zero).
    """
    Hp, WpC = H + 2 * P, (W + 2 * P) * C
    if zero_halo and P > 0:
        pad_ref[:, 0:P, :] = jnp.zeros((N, P, WpC), jnp.float32)
        pad_ref[:, P + H:Hp, :] = jnp.zeros((N, P, WpC), jnp.float32)
        pad_ref[:, P:P + H, 0:P * C] = jnp.zeros((N, H, P * C), jnp.float32)
        pad_ref[:, P:P + H, (P + W) * C:WpC] = jnp.zeros((N, H, P * C), jnp.float32)
    pad_ref[:, P:P + H, P * C:(P + W) * C] = interior


def _conv_bn_relu(pad_ref, bw_ref, g_ref, be_ref, sel_ref, N, H, W, K, cout, eps):
    """One Conv2d + BatchNorm2d (batch stats) + ReLU stage; returns (N*H, W*cout) f32."""
    WpC = pad_ref.shape[-1]

    # kh-im2col: stack the K vertically-shifted padded-row views along lanes so
    # the whole stage (all taps, all input channels, whole batch) is a single
    # bf16 MXU matmul with reduction dim K*WpC instead of K small ones.
    lhs = jnp.concatenate([pad_ref[:, kh:kh + H, :] for kh in range(K)], axis=-1)
    lhs = lhs.reshape(N * H, K * WpC).astype(jnp.bfloat16)
    acc = jnp.dot(lhs, bw_ref[...], preferred_element_type=jnp.float32)   # (N*H, W*cout)

    # Conv bias intentionally omitted: with training-mode BN it is cancelled
    # exactly by the mean subtraction below (dead compute otherwise).

    # BatchNorm, single-pass batch stats: per-channel mean and E[x^2] over
    # (N, H, W) via a sublane reduce + tiny selector matmul; var clamped at 0.
    count = float(N * H * W)
    colsum = jnp.sum(acc, axis=0, keepdims=True)                          # (1, W*cout)
    colsq = jnp.sum(acc * acc, axis=0, keepdims=True)
    mean = jnp.dot(colsum, sel_ref[...], preferred_element_type=jnp.float32) / count
    ex2 = jnp.dot(colsq, sel_ref[...], preferred_element_type=jnp.float32) / count
    var = jnp.maximum(ex2 - mean * mean, 0.0)                             # (1, cout)
    scale = jnp.tile(lax.rsqrt(var + eps), (1, W)) * g_ref[...]           # (1, W*cout)
    z = (acc - jnp.tile(mean, (1, W))) * scale + be_ref[...]
    return jnp.maximum(z, 0.0)


def basic_block_kernel(sel_ref, x_ref, *args, convs, N, H, W, K, P, cin, cout, eps):
    params = args[:3 * convs]                 # per stage: (bw_bf16, gamma_tiled, beta_tiled)
    o_ref = args[3 * convs]
    pad_in_ref = args[3 * convs + 1]
    pad_mid_ref = args[3 * convs + 2]

    # Stage 0: pad the input in-kernel (halo-only zeroing), then conv+BN+ReLU.
    _write_padded(pad_in_ref, x_ref[...], N, H, W, P, cin, zero_halo=True)
    z = _conv_bn_relu(pad_in_ref, *params[0:3], sel_ref, N, H, W, K, cout, eps)

    # Stages 1..convs-1 share one cout-wide padded scratch (halo zeroed once).
    for s in range(1, convs):
        _write_padded(pad_mid_ref, z.reshape(N, H, W * cout), N, H, W, P, cout,
                      zero_halo=(s == 1))
        z = _conv_bn_relu(pad_mid_ref, *params[3 * s:3 * s + 3], sel_ref,
                          N, H, W, K, cout, eps)

    # Lane-dense output store (W*cout lanes; multiple of 128 for the demo shapes).
    o_ref[...] = z.reshape(N, H, W * cout)


def basic_block(x_nhwc, stage_params, *, kernel_size, padding):
    """stage_params: list of (w HWIO, bias, gamma, beta) tuples, one per conv stage."""
    N, H, W, cin = x_nhwc.shape
    K, P = kernel_size, padding
    convs = len(stage_params)
    cout = stage_params[0][0].shape[-1]
    Hp, Wp = H + 2 * P, W + 2 * P

    # Per-channel selector sel[w*cout + c, c'] = (c == c'): lets BN channel sums
    # be a tiny MXU matmul instead of a lane->sublane relayout.  Built once here.
    lane = jnp.arange(W * cout) % cout
    sel = (lane[:, None] == jnp.arange(cout)[None, :]).astype(jnp.float32)

    tile_row = lambda v: jnp.tile(v.reshape(1, -1).astype(jnp.float32), (1, W))
    flat_args = [sel, x_nhwc.astype(jnp.float32).reshape(N, H, W * cin)]
    for (w, b, g, be) in stage_params:
        # Conv bias b is dropped (cancelled by training-mode BN mean subtraction).
        flat_args += [_band_weights(w, W, P), tile_row(g), tile_row(be)]

    kern = functools.partial(basic_block_kernel, convs=convs, N=N, H=H, W=W,
                             K=K, P=P, cin=cin, cout=cout, eps=EPS)

    # Real FLOPs of the fused banded matmuls: 2 * M * (K*WpC) * (W*cout) per stage.
    flops = 0
    ci = cin
    for _ in range(convs):
        flops += 2 * (N * H) * (K * (W + 2 * P) * ci) * (W * cout)
        ci = cout
    bytes_accessed = sum(int(a.size) * a.dtype.itemsize for a in flat_args) \
        + N * H * W * cout * 4

    out = pl.pallas_call(
        kern,
        out_shape=jax.ShapeDtypeStruct((N, H, W * cout), jnp.float32),
        in_specs=[pl.BlockSpec(memory_space=pltpu.MemorySpace.VMEM)] * len(flat_args),
        out_specs=pl.BlockSpec(memory_space=pltpu.MemorySpace.VMEM),
        scratch_shapes=[pltpu.VMEM((N, Hp, Wp * cin), jnp.float32),
                        pltpu.VMEM((N, Hp, Wp * cout), jnp.float32)],
        compiler_params=pltpu.CompilerParams(vmem_limit_bytes=32 * 1024 * 1024),
        cost_estimate=pl.CostEstimate(flops=flops, transcendentals=convs * cout,
                                      bytes_accessed=bytes_accessed),
    )(*flat_args)
    return out.reshape(N, H, W, cout)


def ref_basic_block(x_nhwc, stage_params, *, padding):
    """Pure-JAX f32 reference with identical semantics (NHWC / HWIO, batch-stat BN)."""
    P = padding
    y = x_nhwc.astype(jnp.float32)
    for (w, b, g, be) in stage_params:
        y = lax.conv_general_dilated(
            y, w.astype(jnp.float32), window_strides=(1, 1),
            padding=((P, P), (P, P)),
            dimension_numbers=('NHWC', 'HWIO', 'NHWC'))
        y = y + b[None, None, None, :]
        mean = y.mean(axis=(0, 1, 2), keepdims=True)
        var = y.var(axis=(0, 1, 2), keepdims=True)     # biased, as in BN training
        y = (y - mean) * lax.rsqrt(var + EPS) * g[None, None, None, :] \
            + be[None, None, None, :]
        y = jnp.maximum(y, 0.0)
    return y


def _make_block_params(key, cin, cout, K, convs):
    params = []
    ci = cin
    keys = jax.random.split(key, 2 * convs)
    for s in range(convs):
        w = 0.1 * jax.random.normal(keys[2 * s], (K, K, ci, cout), jnp.float32)   # HWIO
        b = 0.1 * jax.random.normal(keys[2 * s + 1], (cout,), jnp.float32)
        params.append((w, b, jnp.ones((cout,), jnp.float32),
                       jnp.zeros((cout,), jnp.float32)))
        ci = cout
    return params


if __name__ == "__main__":
    key = jax.random.PRNGKey(0)
    kx1, kx2, kp1, kp2 = jax.random.split(key, 4)

    # bf16 MXU operands (vs. the pure-f32 reference) set the tolerance: ~0.5%
    # relative per stage, compounding over 2-3 conv stages after BN rescaling.
    ATOL = RTOL = 5e-2

    # --- RobNetMid.block1 = BasicBlock(2, 16, kernel_size=7, padding=3, convs=2) ---
    N, Cin, Cout, H, W, K, P = 2, 2, 16, 16, 16, 7, 3
    x_nchw = jax.random.normal(kx1, (N, Cin, H, W), jnp.float32)   # PyTorch NCHW input
    x_nhwc = jnp.transpose(x_nchw, (0, 2, 3, 1))
    params1 = _make_block_params(kp1, Cin, Cout, K, convs=2)

    out1 = jax.block_until_ready(basic_block(x_nhwc, params1, kernel_size=K, padding=P))
    ref1 = ref_basic_block(x_nhwc, params1, padding=P)
    assert out1.shape == (N, H, W, Cout)
    err1 = float(jnp.max(jnp.abs(out1 - ref1)))
    assert jnp.allclose(out1, ref1, atol=ATOL, rtol=RTOL), \
        f"block1 mismatch vs. reference (max abs err {err1})"

    # --- convs=3 block (RobNetMid block4-style, reduced size): BasicBlock(16, 32, 5, 2, 3) ---
    N2, C2i, C2o, H2, W2, K2, P2 = 2, 16, 32, 8, 8, 5, 2
    x2 = jnp.transpose(jax.random.normal(kx2, (N2, C2i, H2, W2), jnp.float32), (0, 2, 3, 1))
    params2 = _make_block_params(kp2, C2i, C2o, K2, convs=3)

    out2 = jax.block_until_ready(basic_block(x2, params2, kernel_size=K2, padding=P2))
    ref2 = ref_basic_block(x2, params2, padding=P2)
    assert out2.shape == (N2, H2, W2, C2o)
    err2 = float(jnp.max(jnp.abs(out2 - ref2)))
    assert jnp.allclose(out2, ref2, atol=ATOL, rtol=RTOL), \
        f"block4-style mismatch vs. reference (max abs err {err2})"

    print("KERNEL_OK")
</pallas_src>

<mosaic_0001>
module attributes {stable_mosaic.version = 11 : i64} {
  func.func @basic_block_kernel(%arg0: memref<256x16xf32, #tpu.memory_space<vmem>>, %arg1: memref<2x16x32xf32, #tpu.memory_space<vmem>>, %arg2: memref<308x256xbf16, #tpu.memory_space<vmem>>, %arg3: memref<1x256xf32, #tpu.memory_space<vmem>>, %arg4: memref<1x256xf32, #tpu.memory_space<vmem>>, %arg5: memref<2464x256xbf16, #tpu.memory_space<vmem>>, %arg6: memref<1x256xf32, #tpu.memory_space<vmem>>, %arg7: memref<1x256xf32, #tpu.memory_space<vmem>>, %arg8: memref<2x16x256xf32, #tpu.memory_space<vmem>>, %arg9: memref<2x22x44xf32, #tpu.memory_space<vmem>>, %arg10: memref<2x22x352xf32, #tpu.memory_space<vmem>>) attributes {dimension_semantics = [], scalar_prefetch = 0 : i64, scratch_operands = 2 : i64, tpu.core_type = #tpu.core_type<tc>} {
    %c0 = arith.constant 0 : index
    %c0_0 = arith.constant 0 : index
    %c0_1 = arith.constant 0 : index
    %0 = vector.load %arg1[%c0, %c0_0, %c0_1] : memref<2x16x32xf32, #tpu.memory_space<vmem>>, vector<2x16x32xf32>
    %cst = arith.constant 0.000000e+00 : f32
    %1 = vector.broadcast %cst : f32 to vector<2x3x44xf32>
    %c0_2 = arith.constant 0 : index
    %c0_3 = arith.constant 0 : index
    %c0_4 = arith.constant 0 : index
    %2 = vector.load %arg9[%c0_2, %c0_3, %c0_4] : memref<2x22x44xf32, #tpu.memory_space<vmem>>, vector<2x3x44xf32>
    tpu.vector_store %arg9[%c0_2, %c0_3, %c0_4], %1 {strides = array<i32>} : memref<2x22x44xf32, #tpu.memory_space<vmem>>, vector<2x3x44xf32>,
    %cst_5 = arith.constant 0.000000e+00 : f32
    %3 = vector.broadcast %cst_5 : f32 to vector<2x3x44xf32>
    %c0_6 = arith.constant 0 : index
    %c19 = arith.constant 19 : index
    %c0_7 = arith.constant 0 : index
    %4 = vector.load %arg9[%c0_6, %c19, %c0_7] : memref<2x22x44xf32, #tpu.memory_space<vmem>>, vector<2x3x44xf32>
    tpu.vector_store %arg9[%c0_6, %c19, %c0_7], %3 {strides = array<i32>} : memref<2x22x44xf32, #tpu.memory_space<vmem>>, vector<2x3x44xf32>,
    %cst_8 = arith.constant 0.000000e+00 : f32
    %5 = vector.broadcast %cst_8 : f32 to vector<2x16x6xf32>
    %c0_9 = arith.constant 0 : index
    %c3 = arith.constant 3 : index
    %c0_10 = arith.constant 0 : index
    %6 = vector.load %arg9[%c0_9, %c3, %c0_10] : memref<2x22x44xf32, #tpu.memory_space<vmem>>, vector<2x16x6xf32>
    tpu.vector_store %arg9[%c0_9, %c3, %c0_10], %5 {strides = array<i32>} : memref<2x22x44xf32, #tpu.memory_space<vmem>>, vector<2x16x6xf32>,
    %cst_11 = arith.constant 0.000000e+00 : f32
    %7 = vector.broadcast %cst_11 : f32 to vector<2x16x6xf32>
    %c0_12 = arith.constant 0 : index
    %c3_13 = arith.constant 3 : index
    %c38 = arith.constant 38 : index
    %8 = vector.load %arg9[%c0_12, %c3_13, %c38] : memref<2x22x44xf32, #tpu.memory_space<vmem>>, vector<2x16x6xf32>
    tpu.vector_store %arg9[%c0_12, %c3_13, %c38], %7 {strides = array<i32>} : memref<2x22x44xf32, #tpu.memory_space<vmem>>, vector<2x16x6xf32>,
    %c0_14 = arith.constant 0 : index
    %c3_15 = arith.constant 3 : index
    %c6 = arith.constant 6 : index
    %9 = vector.load %arg9[%c0_14, %c3_15, %c6] : memref<2x22x44xf32, #tpu.memory_space<vmem>>, vector<2x16x32xf32>
    tpu.vector_store %arg9[%c0_14, %c3_15, %c6], %0 {strides = array<i32>} : memref<2x22x44xf32, #tpu.memory_space<vmem>>, vector<2x16x32xf32>,
    %c0_16 = arith.constant 0 : index
    %c0_17 = arith.constant 0 : index
    %c0_18 = arith.constant 0 : index
    %10 = vector.load %arg9[%c0_16, %c0_17, %c0_18] : memref<2x22x44xf32, #tpu.memory_space<vmem>>, vector<2x16x44xf32>
    %c0_19 = arith.constant 0 : index
    %c1 = arith.constant 1 : index
    %c0_20 = arith.constant 0 : index
    %11 = vector.load %arg9[%c0_19, %c1, %c0_20] : memref<2x22x44xf32, #tpu.memory_space<vmem>>, vector<2x16x44xf32>
    %c0_21 = arith.constant 0 : index
    %c2 = arith.constant 2 : index
    %c0_22 = arith.constant 0 : index
    %12 = vector.load %arg9[%c0_21, %c2, %c0_22] : memref<2x22x44xf32, #tpu.memory_space<vmem>>, vector<2x16x44xf32>
    %c0_23 = arith.constant 0 : index
    %c3_24 = arith.constant 3 : index
    %c0_25 = arith.constant 0 : index
    %13 = vector.load %arg9[%c0_23, %c3_24, %c0_25] : memref<2x22x44xf32, #tpu.memory_space<vmem>>, vector<2x16x44xf32>
    %c0_26 = arith.constant 0 : index
    %c4 = arith.constant 4 : index
    %c0_27 = arith.constant 0 : index
    %14 = vector.load %arg9[%c0_26, %c4, %c0_27] : memref<2x22x44xf32, #tpu.memory_space<vmem>>, vector<2x16x44xf32>
    %c0_28 = arith.constant 0 : index
    %c5 = arith.constant 5 : index
    %c0_29 = arith.constant 0 : index
    %15 = vector.load %arg9[%c0_28, %c5, %c0_29] : memref<2x22x44xf32, #tpu.memory_space<vmem>>, vector<2x16x44xf32>
    %c0_30 = arith.constant 0 : index
    %c6_31 = arith.constant 6 : index
    %c0_32 = arith.constant 0 : index
    %16 = vector.load %arg9[%c0_30, %c6_31, %c0_32] : memref<2x22x44xf32, #tpu.memory_space<vmem>>, vector<2x16x44xf32>
    %17 = tpu.concatenate %10, %11, %12, %13, %14, %15, %16 in 2 : vector<2x16x44xf32>, vector<2x16x44xf32>, vector<2x16x44xf32>, vector<2x16x44xf32>, vector<2x16x44xf32>, vector<2x16x44xf32>, vector<2x16x44xf32> -> vector<2x16x308xf32>
    %18 = vector.shape_cast %17 : vector<2x16x308xf32> to vector<32x308xf32>
    %19 = arith.truncf %18 : vector<32x308xf32> to vector<32x308xbf16>
    %c0_33 = arith.constant 0 : index
    %c0_34 = arith.constant 0 : index
    %20 = vector.load %arg2[%c0_33, %c0_34] : memref<308x256xbf16, #tpu.memory_space<vmem>>, vector<308x256xbf16>
    %cst_35 = arith.constant dense<0.000000e+00> : vector<32x256xf32>
    %21 = tpu.matmul %19, %20, %cst_35 {dimension_numbers = #tpu.dot_dimension_numbers<[1], [0], [0], [1], [0, 0, 1, 1], [], []>} : vector<32x308xbf16>, vector<308x256xbf16>, vector<32x256xf32> -> vector<32x256xf32>
    %cst_36 = arith.constant dense<0.000000e+00> : vector<256xf32>
    %22 = vector.multi_reduction <add>, %21, %cst_36 [0] : vector<32x256xf32> to vector<256xf32>
    %23 = vector.shape_cast %22 : vector<256xf32> to vector<1x256xf32>
    %24 = arith.mulf %21, %21 : vector<32x256xf32>
    %cst_37 = arith.constant dense<0.000000e+00> : vector<256xf32>
    %25 = vector.multi_reduction <add>, %24, %cst_37 [0] : vector<32x256xf32> to vector<256xf32>
    %26 = vector.shape_cast %25 : vector<256xf32> to vector<1x256xf32>
    %c0_38 = arith.constant 0 : index
    %c0_39 = arith.constant 0 : index
    %27 = vector.load %arg0[%c0_38, %c0_39] : memref<256x16xf32, #tpu.memory_space<vmem>>, vector<256x16xf32>
    %cst_40 = arith.constant dense<0.000000e+00> : vector<1x16xf32>
    %28 = tpu.matmul %23, %27, %cst_40 {dimension_numbers = #tpu.dot_dimension_numbers<[1], [0], [0], [1], [0, 0, 1, 1], [], []>} : vector<1x256xf32>, vector<256x16xf32>, vector<1x16xf32> -> vector<1x16xf32>
    %cst_41 = arith.constant 5.120000e+02 : f32
    %29 = vector.broadcast %cst_41 : f32 to vector<1x16xf32>
    %30 = arith.divf %28, %29 : vector<1x16xf32>
    %c0_42 = arith.constant 0 : index
    %c0_43 = arith.constant 0 : index
    %31 = vector.load %arg0[%c0_42, %c0_43] : memref<256x16xf32, #tpu.memory_space<vmem>>, vector<256x16xf32>
    %cst_44 = arith.constant dense<0.000000e+00> : vector<1x16xf32>
    %32 = tpu.matmul %26, %31, %cst_44 {dimension_numbers = #tpu.dot_dimension_numbers<[1], [0], [0], [1], [0, 0, 1, 1], [], []>} : vector<1x256xf32>, vector<256x16xf32>, vector<1x16xf32> -> vector<1x16xf32>
    %cst_45 = arith.constant 5.120000e+02 : f32
    %33 = vector.broadcast %cst_45 : f32 to vector<1x16xf32>
    %34 = arith.divf %32, %33 : vector<1x16xf32>
    %35 = arith.mulf %30, %30 : vector<1x16xf32>
    %36 = arith.subf %34, %35 : vector<1x16xf32>
    %cst_46 = arith.constant 0.000000e+00 : f32
    %37 = vector.broadcast %cst_46 : f32 to vector<1x16xf32>
    %38 = arith.maximumf %36, %37 : vector<1x16xf32>
    %cst_47 = arith.constant 9.99999974E-6 : f32
    %39 = vector.broadcast %cst_47 : f32 to vector<1x16xf32>
    %40 = arith.addf %38, %39 : vector<1x16xf32>
    %41 = math.rsqrt %40 : vector<1x16xf32>
    %42 = tpu.concatenate %41, %41, %41, %41, %41, %41, %41, %41, %41, %41, %41, %41, %41, %41, %41, %41 in 1 : vector<1x16xf32>, vector<1x16xf32>, vector<1x16xf32>, vector<1x16xf32>, vector<1x16xf32>, vector<1x16xf32>, vector<1x16xf32>, vector<1x16xf32>, vector<1x16xf32>, vector<1x16xf32>, vector<1x16xf32>, vector<1x16xf32>, vector<1x16xf32>, vector<1x16xf32>, vector<1x16xf32>, vector<1x16xf32> -> vector<1x256xf32>
    %c0_48 = arith.constant 0 : index
    %c0_49 = arith.constant 0 : index
    %43 = vector.load %arg3[%c0_48, %c0_49] : memref<1x256xf32, #tpu.memory_space<vmem>>, vector<1x256xf32>
    %44 = arith.mulf %42, %43 : vector<1x256xf32>
    %45 = tpu.concatenate %30, %30, %30, %30, %30, %30, %30, %30, %30, %30, %30, %30, %30, %30, %30, %30 in 1 : vector<1x16xf32>, vector<1x16xf32>, vector<1x16xf32>, vector<1x16xf32>, vector<1x16xf32>, vector<1x16xf32>, vector<1x16xf32>, vector<1x16xf32>, vector<1x16xf32>, vector<1x16xf32>, vector<1x16xf32>, vector<1x16xf32>, vector<1x16xf32>, vector<1x16xf32>, vector<1x16xf32>, vector<1x16xf32> -> vector<1x256xf32>
    %46 = vector.broadcast %45 : vector<1x256xf32> to vector<32x256xf32>
    %47 = arith.subf %21, %46 : vector<32x256xf32>
    %48 = vector.broadcast %44 : vector<1x256xf32> to vector<32x256xf32>
    %49 = arith.mulf %47, %48 : vector<32x256xf32>
    %c0_50 = arith.constant 0 : index
    %c0_51 = arith.constant 0 : index
    %50 = vector.load %arg4[%c0_50, %c0_51] : memref<1x256xf32, #tpu.memory_space<vmem>>, vector<1x256xf32>
    %51 = vector.broadcast %50 : vector<1x256xf32> to vector<32x256xf32>
    %52 = arith.addf %49, %51 : vector<32x256xf32>
    %cst_52 = arith.constant 0.000000e+00 : f32
    %53 = vector.broadcast %cst_52 : f32 to vector<32x256xf32>
    %54 = arith.maximumf %52, %53 : vector<32x256xf32>
    %55 = vector.shape_cast %54 : vector<32x256xf32> to vector<2x16x256xf32>
    %cst_53 = arith.constant 0.000000e+00 : f32
    %56 = vector.broadcast %cst_53 : f32 to vector<2x3x352xf32>
    %c0_54 = arith.constant 0 : index
    %c0_55 = arith.constant 0 : index
    %c0_56 = arith.constant 0 : index
    %57 = vector.load %arg10[%c0_54, %c0_55, %c0_56] : memref<2x22x352xf32, #tpu.memory_space<vmem>>, vector<2x3x352xf32>
    tpu.vector_store %arg10[%c0_54, %c0_55, %c0_56], %56 {strides = array<i32>} : memref<2x22x352xf32, #tpu.memory_space<vmem>>, vector<2x3x352xf32>,
    %cst_57 = arith.constant 0.000000e+00 : f32
    %58 = vector.broadcast %cst_57 : f32 to vector<2x3x352xf32>
    %c0_58 = arith.constant 0 : index
    %c19_59 = arith.constant 19 : index
    %c0_60 = arith.constant 0 : index
    %59 = vector.load %arg10[%c0_58, %c19_59, %c0_60] : memref<2x22x352xf32, #tpu.memory_space<vmem>>, vector<2x3x352xf32>
    tpu.vector_store %arg10[%c0_58, %c19_59, %c0_60], %58 {strides = array<i32>} : memref<2x22x352xf32, #tpu.memory_space<vmem>>, vector<2x3x352xf32>,
    %cst_61 = arith.constant 0.000000e+00 : f32
    %60 = vector.broadcast %cst_61 : f32 to vector<2x16x48xf32>
    %c0_62 = arith.constant 0 : index
    %c3_63 = arith.constant 3 : index
    %c0_64 = arith.constant 0 : index
    %61 = vector.load %arg10[%c0_62, %c3_63, %c0_64] : memref<2x22x352xf32, #tpu.memory_space<vmem>>, vector<2x16x48xf32>
    tpu.vector_store %arg10[%c0_62, %c3_63, %c0_64], %60 {strides = array<i32>} : memref<2x22x352xf32, #tpu.memory_space<vmem>>, vector<2x16x48xf32>,
    %cst_65 = arith.constant 0.000000e+00 : f32
    %62 = vector.broadcast %cst_65 : f32 to vector<2x16x48xf32>
    %c0_66 = arith.constant 0 : index
    %c3_67 = arith.constant 3 : index
    %c304 = arith.constant 304 : index
    %63 = vector.load %arg10[%c0_66, %c3_67, %c304] : memref<2x22x352xf32, #tpu.memory_space<vmem>>, vector<2x16x48xf32>
    tpu.vector_store %arg10[%c0_66, %c3_67, %c304], %62 {strides = array<i32>} : memref<2x22x352xf32, #tpu.memory_space<vmem>>, vector<2x16x48xf32>,
    %c0_68 = arith.constant 0 : index
    %c3_69 = arith.constant 3 : index
    %c48 = arith.constant 48 : index
    %64 = vector.load %arg10[%c0_68, %c3_69, %c48] : memref<2x22x352xf32, #tpu.memory_space<vmem>>, vector<2x16x256xf32>
    tpu.vector_store %arg10[%c0_68, %c3_69, %c48], %55 {strides = array<i32>} : memref<2x22x352xf32, #tpu.memory_space<vmem>>, vector<2x16x256xf32>,
    %c0_70 = arith.constant 0 : index
    %c0_71 = arith.constant 0 : index
    %c0_72 = arith.constant 0 : index
    %65 = vector.load %arg10[%c0_70, %c0_71, %c0_72] : memref<2x22x352xf32, #tpu.memory_space<vmem>>, vector<2x16x352xf32>
    %c0_73 = arith.constant 0 : index
    %c1_74 = arith.constant 1 : index
    %c0_75 = arith.constant 0 : index
    %66 = vector.load %arg10[%c0_73, %c1_74, %c0_75] : memref<2x22x352xf32, #tpu.memory_space<vmem>>, vector<2x16x352xf32>
    %c0_76 = arith.constant 0 : index
    %c2_77 = arith.constant 2 : index
    %c0_78 = arith.constant 0 : index
    %67 = vector.load %arg10[%c0_76, %c2_77, %c0_78] : memref<2x22x352xf32, #tpu.memory_space<vmem>>, vector<2x16x352xf32>
    %c0_79 = arith.constant 0 : index
    %c3_80 = arith.constant 3 : index
    %c0_81 = arith.constant 0 : index
    %68 = vector.load %arg10[%c0_79, %c3_80, %c0_81] : memref<2x22x352xf32, #tpu.memory_space<vmem>>, vector<2x16x352xf32>
    %c0_82 = arith.constant 0 : index
    %c4_83 = arith.constant 4 : index
    %c0_84 = arith.constant 0 : index
    %69 = vector.load %arg10[%c0_82, %c4_83, %c0_84] : memref<2x22x352xf32, #tpu.memory_space<vmem>>, vector<2x16x352xf32>
    %c0_85 = arith.constant 0 : index
    %c5_86 = arith.constant 5 : index
    %c0_87 = arith.constant 0 : index
    %70 = vector.load %arg10[%c0_85, %c5_86, %c0_87] : memref<2x22x352xf32, #tpu.memory_space<vmem>>, vector<2x16x352xf32>
    %c0_88 = arith.constant 0 : index
    %c6_89 = arith.constant 6 : index
    %c0_90 = arith.constant 0 : index
    %71 = vector.load %arg10[%c0_88, %c6_89, %c0_90] : memref<2x22x352xf32, #tpu.memory_space<vmem>>, vector<2x16x352xf32>
    %72 = tpu.concatenate %65, %66, %67, %68, %69, %70, %71 in 2 : vector<2x16x352xf32>, vector<2x16x352xf32>, vector<2x16x352xf32>, vector<2x16x352xf32>, vector<2x16x352xf32>, vector<2x16x352xf32>, vector<2x16x352xf32> -> vector<2x16x2464xf32>
    %73 = vector.shape_cast %72 : vector<2x16x2464xf32> to vector<32x2464xf32>
    %74 = arith.truncf %73 : vector<32x2464xf32> to vector<32x2464xbf16>
    %c0_91 = arith.constant 0 : index
    %c0_92 = arith.constant 0 : index
    %75 = vector.load %arg5[%c0_91, %c0_92] : memref<2464x256xbf16, #tpu.memory_space<vmem>>, vector<2464x256xbf16>
    %cst_93 = arith.constant dense<0.000000e+00> : vector<32x256xf32>
    %76 = tpu.matmul %74, %75, %cst_93 {dimension_numbers = #tpu.dot_dimension_numbers<[1], [0], [0], [1], [0, 0, 1, 1], [], []>} : vector<32x2464xbf16>, vector<2464x256xbf16>, vector<32x256xf32> -> vector<32x256xf32>
    %cst_94 = arith.constant dense<0.000000e+00> : vector<256xf32>
    %77 = vector.multi_reduction <add>, %76, %cst_94 [0] : vector<32x256xf32> to vector<256xf32>
    %78 = vector.shape_cast %77 : vector<256xf32> to vector<1x256xf32>
    %79 = arith.mulf %76, %76 : vector<32x256xf32>
    %cst_95 = arith.constant dense<0.000000e+00> : vector<256xf32>
    %80 = vector.multi_reduction <add>, %79, %cst_95 [0] : vector<32x256xf32> to vector<256xf32>
    %81 = vector.shape_cast %80 : vector<256xf32> to vector<1x256xf32>
    %c0_96 = arith.constant 0 : index
    %c0_97 = arith.constant 0 : index
    %82 = vector.load %arg0[%c0_96, %c0_97] : memref<256x16xf32, #tpu.memory_space<vmem>>, vector<256x16xf32>
    %cst_98 = arith.constant dense<0.000000e+00> : vector<1x16xf32>
    %83 = tpu.matmul %78, %82, %cst_98 {dimension_numbers = #tpu.dot_dimension_numbers<[1], [0], [0], [1], [0, 0, 1, 1], [], []>} : vector<1x256xf32>, vector<256x16xf32>, vector<1x16xf32> -> vector<1x16xf32>
    %cst_99 = arith.constant 5.120000e+02 : f32
    %84 = vector.broadcast %cst_99 : f32 to vector<1x16xf32>
    %85 = arith.divf %83, %84 : vector<1x16xf32>
    %c0_100 = arith.constant 0 : index
    %c0_101 = arith.constant 0 : index
    %86 = vector.load %arg0[%c0_100, %c0_101] : memref<256x16xf32, #tpu.memory_space<vmem>>, vector<256x16xf32>
    %cst_102 = arith.constant dense<0.000000e+00> : vector<1x16xf32>
    %87 = tpu.matmul %81, %86, %cst_102 {dimension_numbers = #tpu.dot_dimension_numbers<[1], [0], [0], [1], [0, 0, 1, 1], [], []>} : vector<1x256xf32>, vector<256x16xf32>, vector<1x16xf32> -> vector<1x16xf32>
    %cst_103 = arith.constant 5.120000e+02 : f32
    %88 = vector.broadcast %cst_103 : f32 to vector<1x16xf32>
    %89 = arith.divf %87, %88 : vector<1x16xf32>
    %90 = arith.mulf %85, %85 : vector<1x16xf32>
    %91 = arith.subf %89, %90 : vector<1x16xf32>
    %cst_104 = arith.constant 0.000000e+00 : f32
    %92 = vector.broadcast %cst_104 : f32 to vector<1x16xf32>
    %93 = arith.maximumf %91, %92 : vector<1x16xf32>
    %cst_105 = arith.constant 9.99999974E-6 : f32
    %94 = vector.broadcast %cst_105 : f32 to vector<1x16xf32>
    %95 = arith.addf %93, %94 : vector<1x16xf32>
    %96 = math.rsqrt %95 : vector<1x16xf32>
    %97 = tpu.concatenate %96, %96, %96, %96, %96, %96, %96, %96, %96, %96, %96, %96, %96, %96, %96, %96 in 1 : vector<1x16xf32>, vector<1x16xf32>, vector<1x16xf32>, vector<1x16xf32>, vector<1x16xf32>, vector<1x16xf32>, vector<1x16xf32>, vector<1x16xf32>, vector<1x16xf32>, vector<1x16xf32>, vector<1x16xf32>, vector<1x16xf32>, vector<1x16xf32>, vector<1x16xf32>, vector<1x16xf32>, vector<1x16xf32> -> vector<1x256xf32>
    %c0_106 = arith.constant 0 : index
    %c0_107 = arith.constant 0 : index
    %98 = vector.load %arg6[%c0_106, %c0_107] : memref<1x256xf32, #tpu.memory_space<vmem>>, vector<1x256xf32>
    %99 = arith.mulf %97, %98 : vector<1x256xf32>
    %100 = tpu.concatenate %85, %85, %85, %85, %85, %85, %85, %85, %85, %85, %85, %85, %85, %85, %85, %85 in 1 : vector<1x16xf32>, vector<1x16xf32>, vector<1x16xf32>, vector<1x16xf32>, vector<1x16xf32>, vector<1x16xf32>, vector<1x16xf32>, vector<1x16xf32>, vector<1x16xf32>, vector<1x16xf32>, vector<1x16xf32>, vector<1x16xf32>, vector<1x16xf32>, vector<1x16xf32>, vector<1x16xf32>, vector<1x16xf32> -> vector<1x256xf32>
    %101 = vector.broadcast %100 : vector<1x256xf32> to vector<32x256xf32>
    %102 = arith.subf %76, %101 : vector<32x256xf32>
    %103 = vector.broadcast %99 : vector<1x256xf32> to vector<32x256xf32>
    %104 = arith.mulf %102, %103 : vector<32x256xf32>
    %c0_108 = arith.constant 0 : index
    %c0_109 = arith.constant 0 : index
    %105 = vector.load %arg7[%c0_108, %c0_109] : memref<1x256xf32, #tpu.memory_space<vmem>>, vector<1x256xf32>
    %106 = vector.broadcast %105 : vector<1x256xf32> to vector<32x256xf32>
    %107 = arith.addf %104, %106 : vector<32x256xf32>
    %cst_110 = arith.constant 0.000000e+00 : f32
    %108 = vector.broadcast %cst_110 : f32 to vector<32x256xf32>
    %109 = arith.maximumf %107, %108 : vector<32x256xf32>
    %110 = vector.shape_cast %109 : vector<32x256xf32> to vector<2x16x256xf32>
    %c0_111 = arith.constant 0 : index
    %c0_112 = arith.constant 0 : index
    %c0_113 = arith.constant 0 : index
    %111 = vector.load %arg8[%c0_111, %c0_112, %c0_113] : memref<2x16x256xf32, #tpu.memory_space<vmem>>, vector<2x16x256xf32>
    tpu.vector_store %arg8[%c0_111, %c0_112, %c0_113], %110 {strides = array<i32>} : memref<2x16x256xf32, #tpu.memory_space<vmem>>, vector<2x16x256xf32>,
    return
  }
}

</mosaic_0001>

<llo_original>
// kernel: tpu_custom_call.1
$region0: #{tpu_custom_call.1}
  #allocation0 [shape = 'u32[]', space=smem, size = 0x4, offset = 0x4, fixed_abs, tag = 'smem constant byte address 0x4 - core index']
  #allocation1 [shape = 'u32[144,128]{1,0:T(1,128)}', space=vmem, size = 0x12000, scoped, tag = 'internal scratch']
  #allocation2 [shape = 'f32[2,22,44]{2,1,0:T(8,128)}', space=vmem, size = 0x6000, scoped, tag = 'scratch operand']
  #allocation3 [shape = 'f32[2,22,352]{2,1,0:T(8,128)}', space=vmem, size = 0x12000, scoped, tag = 'scratch operand']
  %s0 = inlined_call_operand.vmem [shape: f32[256,16], index: 0, kind: input, shape index: {}]
  %s1 = inlined_call_operand.hbm [shape: f32[2,16,32], index: 1, kind: input, shape index: {}]
  %s2 = inlined_call_operand.hbm [shape: bf16[308,256], index: 2, kind: input, shape index: {}]
  %s3 = inlined_call_operand.hbm [shape: f32[1,256], index: 3, kind: input, shape index: {}]
  %s4 = inlined_call_operand.hbm [shape: f32[1,256], index: 4, kind: input, shape index: {}]
  %s5 = inlined_call_operand.hbm [shape: bf16[2464,256], index: 5, kind: input, shape index: {}]
  %s6 = inlined_call_operand.hbm [shape: f32[1,256], index: 6, kind: input, shape index: {}]
  %s7 = inlined_call_operand.hbm [shape: f32[1,256], index: 7, kind: input, shape index: {}]
  %s8 = inlined_call_operand.hbm [shape: f32[2,16,256], index: 8, kind: output, shape index: {}]
  %s9 = sld [smem:[#allocation0]]
  $region70: #{tpu_custom_call.1} parent=0
    _
  %s11 = ssub.s32 1, %s9
  %s12 = scalar_select 0, %s11, %s9
  $region1: #{tpu_custom_call.1} parent=0
    #allocation4 [shape = 'u8[16384]{0}', space=vmem, size = 0x4000, scoped, tag = 'input window, operand 1, single buffered']
    #allocation5 [shape = 's32[1]{0}', space=sflag, size = 0x4, scoped, tag = 'scoped memory for tpu_custom_call.1']
    #allocation6 [shape = 's32[1]{0}', space=sflag, size = 0x4, scoped, tag = 'scoped memory for tpu_custom_call.1']
    #allocation7 [shape = 'u8[159744]{0}', space=vmem, size = 0x27000, scoped, tag = 'input window, operand 2, single buffered']
    #allocation8 [shape = 's32[1]{0}', space=sflag, size = 0x4, scoped, tag = 'scoped memory for tpu_custom_call.1']
    #allocation9 [shape = 'u8[1024]{0}', space=vmem, size = 0x400, scoped, tag = 'input window, operand 3, single buffered']
    #allocation10 [shape = 'u8[1024]{0}', space=vmem, size = 0x400, scoped, tag = 'input window, operand 4, single buffered']
    #allocation11 [shape = 's32[1]{0}', space=sflag, size = 0x4, scoped, tag = 'scoped memory for tpu_custom_call.1']
    #allocation12 [shape = 'u8[1261568]{0}', space=vmem, size = 0x134000, scoped, tag = 'input window, operand 5, single buffered']
    #allocation13 [shape = 'u8[1024]{0}', space=vmem, size = 0x400, scoped, tag = 'input window, operand 6, single buffered']
    #allocation14 [shape = 's32[1]{0}', space=sflag, size = 0x4, scoped, tag = 'scoped memory for tpu_custom_call.1']
    #allocation15 [shape = 'u8[1024]{0}', space=vmem, size = 0x400, scoped, tag = 'input window, operand 7, single buffered']
    #allocation16 [shape = 'u8[32768]{0}', space=vmem, size = 0x8000, scoped, tag = 'output window, operand 0, single buffered']
    %13 = vsyncpa [#allocation5], 0
    %14 = vsyncpa [#allocation8], 0
    %15 = vsyncpa [#allocation11], 0
    %16 = vsyncpa [#allocation14], 0
    %17 = vsyncpa [#allocation6], 0
    // Predicated region
    $region2: #{tpu_custom_call.1} parent=1 // pred_check
      _
    $region3: #{tpu_custom_call.1} parent=1 // pred_check_branch
      %19 = sbr.rel (0) target = $region5
    $region4: #{tpu_custom_call.1} parent=1 // pred_region
      _
    $region5: #{tpu_custom_call.1} parent=1 // pred_fallthru
      _
    // Predicated region
    $region6: #{tpu_custom_call.1} parent=1 // pred_check
      _
    $region7: #{tpu_custom_call.1} parent=1 // pred_check_branch
      %21 = sbr.rel (0) target = $region9
    $region8: #{tpu_custom_call.1} parent=1 // pred_region
      %s23 = ssub.s32 512, 512
      %24 = vsyncadd [#allocation5], %s23
      %s25 = sshll.u32 [#allocation4], 4
      %s26 = int_to_ptr.vmem [resolvable:$true] %s25
      %31 = dma.hbm_to_vmem [thread:$0]  %s1, 512, %s26, [#allocation5], 128, 128, 8
    $region9: #{tpu_custom_call.1} parent=1 // pred_fallthru
      _
    // Predicated region
    $region10: #{tpu_custom_call.1} parent=1 // pred_check
      _
    $region11: #{tpu_custom_call.1} parent=1 // pred_check_branch
      %33 = sbr.rel (0) target = $region13
    $region12: #{tpu_custom_call.1} parent=1 // pred_region
      %s35 = ssub.s32 4992, 4992
      %36 = vsyncadd [#allocation8], %s35
      %s37 = sshll.u32 [#allocation7], 4
      %s38 = int_to_ptr.vmem [resolvable:$true] %s37
      %43 = dma.hbm_to_vmem [thread:$0]  %s2, 4992, %s38, [#allocation8], 128, 128, 8
    $region13: #{tpu_custom_call.1} parent=1 // pred_fallthru
      _
    // Predicated region
    $region14: #{tpu_custom_call.1} parent=1 // pred_check
      _
    $region15: #{tpu_custom_call.1} parent=1 // pred_check_branch
      %45 = sbr.rel (0) target = $region17
    $region16: #{tpu_custom_call.1} parent=1 // pred_region
      %s47 = ssub.s32 32, 32
      %48 = vsyncadd [#allocation8], %s47
      %s50 = sshll.u32 [#allocation9], 4
      %s51 = int_to_ptr.vmem [resolvable:$true] %s50
      %53 = dma.hbm_to_vmem [thread:$0]  %s3, 32, %s51, [#allocation8]
    $region17: #{tpu_custom_call.1} parent=1 // pred_fallthru
      _
    // Predicated region
    $region18: #{tpu_custom_call.1} parent=1 // pred_check
      _
    $region19: #{tpu_custom_call.1} parent=1 // pred_check_branch
      %55 = sbr.rel (0) target = $region21
    $region20: #{tpu_custom_call.1} parent=1 // pred_region
      %s57 = ssub.s32 32, 32
      %58 = vsyncadd [#allocation11], %s57
      %s60 = sshll.u32 [#allocation10], 4
      %s61 = int_to_ptr.vmem [resolvable:$true] %s60
      %63 = dma.hbm_to_vmem [thread:$0]  %s4, 32, %s61, [#allocation11]
    $region21: #{tpu_custom_call.1} parent=1 // pred_fallthru
      _
    // Predicated region
    $region22: #{tpu_custom_call.1} parent=1 // pred_check
      _
    $region23: #{tpu_custom_call.1} parent=1 // pred_check_branch
      %65 = sbr.rel (0) target = $region25
    $region24: #{tpu_custom_call.1} parent=1 // pred_region
      %s67 = ssub.s32 39424, 39424
      %68 = vsyncadd [#allocation11], %s67
      %s69 = sshll.u32 [#allocation12], 4
      %s70 = int_to_ptr.vmem [resolvable:$true] %s69
      %75 = dma.hbm_to_vmem [thread:$0]  %s5, 39424, %s70, [#allocation11], 128, 128, 8
    $region25: #{tpu_custom_call.1} parent=1 // pred_fallthru
      _
    // Predicated region
    $region26: #{tpu_custom_call.1} parent=1 // pred_check
      _
    $region27: #{tpu_custom_call.1} parent=1 // pred_check_branch
      %77 = sbr.rel (0) target = $region29
    $region28: #{tpu_custom_call.1} parent=1 // pred_region
      %s79 = ssub.s32 32, 32
      %80 = vsyncadd [#allocation14], %s79
      %s82 = sshll.u32 [#allocation13], 4
      %s83 = int_to_ptr.vmem [resolvable:$true] %s82
      %85 = dma.hbm_to_vmem [thread:$0]  %s6, 32, %s83, [#allocation14]
    $region29: #{tpu_custom_call.1} parent=1 // pred_fallthru
      _
    // Predicated region
    $region30: #{tpu_custom_call.1} parent=1 // pred_check
      _
    $region31: #{tpu_custom_call.1} parent=1 // pred_check_branch
      %87 = sbr.rel (0) target = $region33
    $region32: #{tpu_custom_call.1} parent=1 // pred_region
      %s89 = ssub.s32 32, 32
      %90 = vsyncadd [#allocation14], %s89
      %s92 = sshll.u32 [#allocation15], 4
      %s93 = int_to_ptr.vmem [resolvable:$true] %s92
      %95 = dma.hbm_to_vmem [thread:$0]  %s7, 32, %s93, [#allocation14]
    $region33: #{tpu_custom_call.1} parent=1 // pred_fallthru
      _
    // Predicated region
    $region34: #{tpu_custom_call.1} parent=1 // pred_check
      _
    $region35: #{tpu_custom_call.1} parent=1 // pred_check_branch
      %97 = sbr.rel (0) target = $region37
    $region36: #{tpu_custom_call.1} parent=1 // pred_region
      %98 = dma.done [#allocation5], 512
    $region37: #{tpu_custom_call.1} parent=1 // pred_fallthru
      _
    // Predicated region
    $region38: #{tpu_custom_call.1} parent=1 // pred_check
      _
    $region39: #{tpu_custom_call.1} parent=1 // pred_check_branch
      %100 = sbr.rel (0) target = $region41
    $region40: #{tpu_custom_call.1} parent=1 // pred_region
      %101 = dma.done [#allocation8], 4992
    $region41: #{tpu_custom_call.1} parent=1 // pred_fallthru
      _
    // Predicated region
    $region42: #{tpu_custom_call.1} parent=1 // pred_check
      _
    $region43: #{tpu_custom_call.1} parent=1 // pred_check_branch
      %103 = sbr.rel (0) target = $region45
    $region44: #{tpu_custom_call.1} parent=1 // pred_region
      %104 = dma.done [#allocation8], 32
    $region45: #{tpu_custom_call.1} parent=1 // pred_fallthru
      _
    // Predicated region
    $region46: #{tpu_custom_call.1} parent=1 // pred_check
      _
    $region47: #{tpu_custom_call.1} parent=1 // pred_check_branch
      %106 = sbr.rel (0) target = $region49
    $region48: #{tpu_custom_call.1} parent=1 // pred_region
      %107 = dma.done [#allocation11], 32
    $region49: #{tpu_custom_call.1} parent=1 // pred_fallthru
      _
    // Predicated region
    $region50: #{tpu_custom_call.1} parent=1 // pred_check
      _
    $region51: #{tpu_custom_call.1} parent=1 // pred_check_branch
      %109 = sbr.rel (0) target = $region53
    $region52: #{tpu_custom_call.1} parent=1 // pred_region
      %110 = dma.done [#allocation11], 39424
    $region53: #{tpu_custom_call.1} parent=1 // pred_fallthru
      _
    // Predicated region
    $region54: #{tpu_custom_call.1} parent=1 // pred_check
      _
    $region55: #{tpu_custom_call.1} parent=1 // pred_check_branch
      %112 = sbr.rel (0) target = $region57
    $region56: #{tpu_custom_call.1} parent=1 // pred_region
      %113 = dma.done [#allocation14], 32
    $region57: #{tpu_custom_call.1} parent=1 // pred_fallthru
      _
    // Predicated region
    $region58: #{tpu_custom_call.1} parent=1 // pred_check
      _
    $region59: #{tpu_custom_call.1} parent=1 // pred_check_branch
      %115 = sbr.rel (0) target = $region61
    $region60: #{tpu_custom_call.1} parent=1 // pred_region
      %116 = dma.done [#allocation14], 32
    $region61: #{tpu_custom_call.1} parent=1 // pred_fallthru
      _
    %v118 = vld [vmem:[#allocation4] sm:$0xff]
    %v119 = vld [vmem:[#allocation4 + $0x8] sm:$0xff]
    %v120 = vld [vmem:[#allocation4 + $0x10] sm:$0xff]
    %v121 = vld [vmem:[#allocation4 + $0x18] sm:$0xff]
    %vm122 = vcmask 354304
    %123 = vst.msk [vmem:[#allocation2] sm:$0x7] %vm122, 0.0
    %124 = vst.msk [vmem:[#allocation2 + $0x18] sm:$0x7] %vm122, 0.0
    %125 = vst.msk [vmem:[#allocation2 + $0x13] sm:$0x7] %vm122, 0.0
    %126 = vst.msk [vmem:[#allocation2 + $0x2b] sm:$0x7] %vm122, 0.0
    %vm127 = vcmask 48128
    %128 = vst.msk [vmem:[#allocation2 + $0x3] sm:$0xff] %vm127, 0.0
    %129 = vst.msk [vmem:[#allocation2 + $0xb] sm:$0xff] %vm127, 0.0
    %130 = vst.msk [vmem:[#allocation2 + $0x1b] sm:$0xff] %vm127, 0.0
    %131 = vst.msk [vmem:[#allocation2 + $0x23] sm:$0xff] %vm127, 0.0
    %vm132 = vcmask 359728
    %133 = vst.msk [vmem:[#allocation2 + $0x3] sm:$0xff] %vm132, 0.0
    %134 = vst.msk [vmem:[#allocation2 + $0xb] sm:$0xff] %vm132, 0.0
    %135 = vst.msk [vmem:[#allocation2 + $0x1b] sm:$0xff] %vm132, 0.0
    %136 = vst.msk [vmem:[#allocation2 + $0x23] sm:$0xff] %vm132, 0.0
    %141 = vrot.lane.b32.xlu0 %v118, 6
    %v142 = vpop.permute.xlu0 %141
    %143 = vrot.lane.b32.xlu0 %v119, 6
    %v144 = vpop.permute.xlu0 %143
    %145 = vrot.lane.b32.xlu0 %v120, 6
    %v146 = vpop.permute.xlu0 %145
    %147 = vrot.lane.b32.xlu0 %v121, 6
    %v148 = vpop.permute.xlu0 %147
    %vm153 = vcmask 310320
    %154 = vst.msk [vmem:[#allocation2 + $0x3] sm:$0xff] %vm153, %v142
    %155 = vst.msk [vmem:[#allocation2 + $0xb] sm:$0xff] %vm153, %v144
    %156 = vst.msk [vmem:[#allocation2 + $0x1b] sm:$0xff] %vm153, %v146
    %157 = vst.msk [vmem:[#allocation2 + $0x23] sm:$0xff] %vm153, %v148
    %v158 = vld [vmem:[#allocation2] sm:$0xff]
    %v159 = vld [vmem:[#allocation2 + $0x8] sm:$0xff]
    %v160 = vld [vmem:[#allocation2 + $0x18] sm:$0xff]
    %v161 = vld [vmem:[#allocation2 + $0x20] sm:$0xff]
    %v162 = vld [vmem:[#allocation2 + $0x1] sm:$0xff]
    %v163 = vld [vmem:[#allocation2 + $0x9] sm:$0xff]
    %v164 = vld [vmem:[#allocation2 + $0x19] sm:$0xff]
    %v165 = vld [vmem:[#allocation2 + $0x21] sm:$0xff]
    %v166 = vld [vmem:[#allocation2 + $0x2] sm:$0xff]
    %v167 = vld [vmem:[#allocation2 + $0xa] sm:$0xff]
    %v168 = vld [vmem:[#allocation2 + $0x1a] sm:$0xff]
    %v169 = vld [vmem:[#allocation2 + $0x22] sm:$0xff]
    %v170 = vld [vmem:[#allocation2 + $0x3] sm:$0xff]
    %v171 = vld [vmem:[#allocation2 + $0xb] sm:$0xff]
    %v172 = vld [vmem:[#allocation2 + $0x1b] sm:$0xff]
    %v173 = vld [vmem:[#allocation2 + $0x23] sm:$0xff]
    %v174 = vld [vmem:[#allocation2 + $0x4] sm:$0xff]
    %v175 = vld [vmem:[#allocation2 + $0xc] sm:$0xff]
    %v176 = vld [vmem:[#allocation2 + $0x1c] sm:$0xff]
    %v177 = vld [vmem:[#allocation2 + $0x24] sm:$0xff]
    %v178 = vld [vmem:[#allocation2 + $0x5] sm:$0xff]
    %v179 = vld [vmem:[#allocation2 + $0xd] sm:$0xff]
    %v180 = vld [vmem:[#allocation2 + $0x1d] sm:$0xff]
    %v181 = vld [vmem:[#allocation2 + $0x25] sm:$0xff]
    %v182 = vld [vmem:[#allocation2 + $0x6] sm:$0xff]
    %v183 = vld [vmem:[#allocation2 + $0xe] sm:$0xff]
    %v184 = vld [vmem:[#allocation2 + $0x1e] sm:$0xff]
    %v185 = vld [vmem:[#allocation2 + $0x26] sm:$0xff]
    %190 = vrot.lane.b32.xlu0 %v162, 44
    %v191 = vpop.permute.xlu0 %190
    %192 = vrot.lane.b32.xlu0 %v163, 44
    %v193 = vpop.permute.xlu0 %192
    %194 = vrot.lane.b32.xlu0 %v164, 44
    %v195 = vpop.permute.xlu0 %194
    %196 = vrot.lane.b32.xlu0 %v165, 44
    %v197 = vpop.permute.xlu0 %196
    %206 = vrot.lane.b32.xlu0 %v166, 88
    %v207 = vpop.permute.xlu0 %206
    %208 = vrot.lane.b32.xlu0 %v167, 88
    %v209 = vpop.permute.xlu0 %208
    %210 = vrot.lane.b32.xlu0 %v168, 88
    %v211 = vpop.permute.xlu0 %210
    %212 = vrot.lane.b32.xlu0 %v169, 88
    %v213 = vpop.permute.xlu0 %212
    %222 = vrot.lane.b32.xlu0 %v170, 4
    %v223 = vpop.permute.xlu0 %222
    %224 = vrot.lane.b32.xlu0 %v171, 4
    %v225 = vpop.permute.xlu0 %224
    %226 = vrot.lane.b32.xlu0 %v172, 4
    %v227 = vpop.permute.xlu0 %226
    %228 = vrot.lane.b32.xlu0 %v173, 4
    %v229 = vpop.permute.xlu0 %228
    %238 = vrot.lane.b32.xlu0 %v174, 48
    %v239 = vpop.permute.xlu0 %238
    %240 = vrot.lane.b32.xlu0 %v175, 48
    %v241 = vpop.permute.xlu0 %240
    %242 = vrot.lane.b32.xlu0 %v176, 48
    %v243 = vpop.permute.xlu0 %242
    %244 = vrot.lane.b32.xlu0 %v177, 48
    %v245 = vpop.permute.xlu0 %244
    %254 = vrot.lane.b32.xlu0 %v178, 92
    %v255 = vpop.permute.xlu0 %254
    %256 = vrot.lane.b32.xlu0 %v179, 92
    %v257 = vpop.permute.xlu0 %256
    %258 = vrot.lane.b32.xlu0 %v180, 92
    %v259 = vpop.permute.xlu0 %258
    %260 = vrot.lane.b32.xlu0 %v181, 92
    %v261 = vpop.permute.xlu0 %260
    %270 = vrot.lane.b32.xlu0 %v182, 8
    %v271 = vpop.permute.xlu0 %270
    %272 = vrot.lane.b32.xlu0 %v183, 8
    %v273 = vpop.permute.xlu0 %272
    %274 = vrot.lane.b32.xlu0 %v184, 8
    %v275 = vpop.permute.xlu0 %274
    %276 = vrot.lane.b32.xlu0 %v185, 8
    %v277 = vpop.permute.xlu0 %276
    %vm282 = vcmask 359424
    %v283 = vsel %vm282, %v158, %v191
    %v284 = vsel %vm282, %v159, %v193
    %v285 = vsel %vm282, %v160, %v195
    %v286 = vsel %vm282, %v161, %v197
    %vm287 = vcmask 719872
    %v288 = vsel %vm287, %v283, %v207
    %v289 = vsel %vm287, %v284, %v209
    %v290 = vsel %vm287, %v285, %v211
    %v291 = vsel %vm287, %v286, %v213
    %vm292 = vcmask 31744
    %v293 = vsel %vm292, %v207, %v223
    %v294 = vsel %vm292, %v209, %v225
    %v295 = vsel %vm292, %v211, %v227
    %v296 = vsel %vm292, %v213, %v229
    %vm297 = vcmask 392192
    %v298 = vsel %vm297, %v293, %v239
    %v299 = vsel %vm297, %v294, %v241
    %v300 = vsel %vm297, %v295, %v243
    %v301 = vsel %vm297, %v296, %v245
    %vm302 = vcmask 752640
    %v303 = vsel %vm302, %v298, %v255
    %v304 = vsel %vm302, %v299, %v257
    %v305 = vsel %vm302, %v300, %v259
    %v306 = vsel %vm302, %v301, %v261
    %vm307 = vcmask 64512
    %v308 = vsel %vm307, %v255, %v271
    %v309 = vsel %vm307, %v257, %v273
    %v310 = vsel %vm307, %v259, %v275
    %v311 = vsel %vm307, %v261, %v277
    %v312 = vpack.c.bf16 %v289, %v288
    %v313 = vpack.c.bf16 %v304, %v303
    %v314 = vpack.c.bf16 %v309, %v308
    %v315 = vpack.c.bf16 %v291, %v290
    %v316 = vpack.c.bf16 %v306, %v305
    %v317 = vpack.c.bf16 %v311, %v310
    %v318 = vld [vmem:[#allocation7] sm:$0xff]
    %v319 = vld [vmem:[#allocation7 + $0x8] sm:$0xff]
    %v320 = vld [vmem:[#allocation7 + $0x10] sm:$0xff]
    %v321 = vld [vmem:[#allocation7 + $0x18] sm:$0xff]
    %v322 = vld [vmem:[#allocation7 + $0x20] sm:$0xff]
    %v323 = vld [vmem:[#allocation7 + $0x28] sm:$0xff]
    %v324 = vld [vmem:[#allocation7 + $0x30] sm:$0xff]
    %v325 = vld [vmem:[#allocation7 + $0x38] sm:$0xff]
    %v326 = vld [vmem:[#allocation7 + $0x40] sm:$0xff]
    %v327 = vld [vmem:[#allocation7 + $0x48] sm:$0xff]
    %v328 = vld [vmem:[#allocation7 + $0x50] sm:$0xff]
    %v329 = vld [vmem:[#allocation7 + $0x58] sm:$0xff]
    %v330 = vld [vmem:[#allocation7 + $0x60] sm:$0xff]
    %v331 = vld [vmem:[#allocation7 + $0x68] sm:$0xff]
    %v332 = vld [vmem:[#allocation7 + $0x70] sm:$0xff]
    %v333 = vld [vmem:[#allocation7 + $0x78] sm:$0xff]
    %v334 = vld [vmem:[#allocation7 + $0x80] sm:$0xff]
    %v335 = vld [vmem:[#allocation7 + $0x88] sm:$0xff]
    %v336 = vld [vmem:[#allocation7 + $0x90] sm:$0xff]
    %v337 = vld [vmem:[#allocation7 + $0x98] sm:$0xff]
    %v338 = vld [vmem:[#allocation7 + $0xa0] sm:$0xff]
    %v339 = vld [vmem:[#allocation7 + $0xa8] sm:$0xff]
    %v340 = vld [vmem:[#allocation7 + $0xb0] sm:$0xff]
    %v341 = vld [vmem:[#allocation7 + $0xb8] sm:$0xff]
    %v342 = vld [vmem:[#allocation7 + $0xc0] sm:$0xff]
    %v343 = vld [vmem:[#allocation7 + $0xc8] sm:$0xff]
    %v344 = vld [vmem:[#allocation7 + $0xd0] sm:$0xff]
    %v345 = vld [vmem:[#allocation7 + $0xd8] sm:$0xff]
    %v346 = vld [vmem:[#allocation7 + $0xe0] sm:$0xff]
    %v347 = vld [vmem:[#allocation7 + $0xe8] sm:$0xff]
    %v348 = vld [vmem:[#allocation7 + $0xf0] sm:$0xff]
    %v349 = vld [vmem:[#allocation7 + $0xf8] sm:$0xff]
    %v350 = vld [vmem:[#allocation7 + $0x100] sm:$0xff]
    %v351 = vld [vmem:[#allocation7 + $0x108] sm:$0xff]
    %v352 = vld [vmem:[#allocation7 + $0x110] sm:$0xff]
    %v353 = vld [vmem:[#allocation7 + $0x118] sm:$0xff]
    %v354 = vld [vmem:[#allocation7 + $0x120] sm:$0xff]
    %v355 = vld [vmem:[#allocation7 + $0x128] sm:$0xff]
    %v356 = vld [vmem:[#allocation7 + $0x130] sm:$0x33]
    %v396 = vunpack.c.l.b16 %v318
    %v397 = vunpack.c.h.b16 %v318
    %v398 = vunpack.c.l.b16 %v319
    %v399 = vunpack.c.h.b16 %v319
    %v400 = vunpack.c.l.b16 %v320
    %v401 = vunpack.c.h.b16 %v320
    %v402 = vunpack.c.l.b16 %v321
    %v403 = vunpack.c.h.b16 %v321
    %v404 = vunpack.c.l.b16 %v322
    %v405 = vunpack.c.h.b16 %v322
    %v406 = vunpack.c.l.b16 %v323
    %v407 = vunpack.c.h.b16 %v323
    %v408 = vunpack.c.l.b16 %v324
    %v409 = vunpack.c.h.b16 %v324
    %v410 = vunpack.c.l.b16 %v325
    %v411 = vunpack.c.h.b16 %v325
    %v412 = vunpack.c.l.b16 %v326
    %v413 = vunpack.c.h.b16 %v326
    %v414 = vunpack.c.l.b16 %v327
    %v415 = vunpack.c.h.b16 %v327
    %v416 = vunpack.c.l.b16 %v328
    %v417 = vunpack.c.h.b16 %v328
    %v418 = vunpack.c.l.b16 %v329
    %v419 = vunpack.c.h.b16 %v329
    %v420 = vunpack.c.l.b16 %v330
    %v421 = vunpack.c.h.b16 %v330
    %v422 = vunpack.c.l.b16 %v331
    %v423 = vunpack.c.h.b16 %v331
    %v424 = vunpack.c.l.b16 %v332
    %v425 = vunpack.c.h.b16 %v332
    %v426 = vunpack.c.l.b16 %v333
    %v427 = vunpack.c.h.b16 %v333
    %v428 = vunpack.c.l.b16 %v334
    %v429 = vunpack.c.h.b16 %v334
    %v430 = vunpack.c.l.b16 %v335
    %v431 = vunpack.c.h.b16 %v335
    %v432 = vunpack.c.l.b16 %v336
    %v433 = vunpack.c.h.b16 %v336
    %v434 = vunpack.c.l.b16 %v337
    %v435 = vunpack.c.h.b16 %v337
    %v436 = vunpack.c.l.b16 %v338
    %v437 = vunpack.c.h.b16 %v338
    %v438 = vunpack.c.l.b16 %v339
    %v439 = vunpack.c.h.b16 %v339
    %v440 = vunpack.c.l.b16 %v340
    %v441 = vunpack.c.h.b16 %v340
    %v442 = vunpack.c.l.b16 %v341
    %v443 = vunpack.c.h.b16 %v341
    %v444 = vunpack.c.l.b16 %v342
    %v445 = vunpack.c.h.b16 %v342
    %v446 = vunpack.c.l.b16 %v343
    %v447 = vunpack.c.h.b16 %v343
    %v448 = vunpack.c.l.b16 %v344
    %v449 = vunpack.c.h.b16 %v344
    %v450 = vunpack.c.l.b16 %v345
    %v451 = vunpack.c.h.b16 %v345
    %v452 = vunpack.c.l.b16 %v346
    %v453 = vunpack.c.h.b16 %v346
    %v454 = vunpack.c.l.b16 %v347
    %v455 = vunpack.c.h.b16 %v347
    %v456 = vunpack.c.l.b16 %v348
    %v457 = vunpack.c.h.b16 %v348
    %v458 = vunpack.c.l.b16 %v349
    %v459 = vunpack.c.h.b16 %v349
    %v460 = vunpack.c.l.b16 %v350
    %v461 = vunpack.c.h.b16 %v350
    %v462 = vunpack.c.l.b16 %v351
    %v463 = vunpack.c.h.b16 %v351
    %v464 = vunpack.c.l.b16 %v352
    %v465 = vunpack.c.h.b16 %v352
    %v466 = vunpack.c.l.b16 %v353
    %v467 = vunpack.c.h.b16 %v353
    %v468 = vunpack.c.l.b16 %v354
    %v469 = vunpack.c.h.b16 %v354
    %v470 = vunpack.c.l.b16 %v355
    %v471 = vunpack.c.h.b16 %v355
    %v472 = vunpack.c.l.b16 %v356
    %v473 = vunpack.c.h.b16 %v356
    %v474 = vpack.c.b16 %v398, %v396
    %v475 = vpack.c.b16 %v399, %v397
    %v476 = vpack.c.b16 %v402, %v400
    %v477 = vpack.c.b16 %v403, %v401
    %v478 = vpack.c.b16 %v406, %v404
    %v479 = vpack.c.b16 %v407, %v405
    %v480 = vpack.c.b16 %v410, %v408
    %v481 = vpack.c.b16 %v411, %v409
    %v482 = vpack.c.b16 %v414, %v412
    %v483 = vpack.c.b16 %v415, %v413
    %v484 = vpack.c.b16 %v418, %v416
    %v485 = vpack.c.b16 %v419, %v417
    %v486 = vpack.c.b16 %v422, %v420
    %v487 = vpack.c.b16 %v423, %v421
    %v488 = vpack.c.b16 %v426, %v424
    %v489 = vpack.c.b16 %v427, %v425
    %v490 = vpack.c.b16 %v430, %v428
    %v491 = vpack.c.b16 %v431, %v429
    %v492 = vpack.c.b16 %v434, %v432
    %v493 = vpack.c.b16 %v435, %v433
    %v494 = vpack.c.b16 %v438, %v436
    %v495 = vpack.c.b16 %v439, %v437
    %v496 = vpack.c.b16 %v442, %v440
    %v497 = vpack.c.b16 %v443, %v441
    %v498 = vpack.c.b16 %v446, %v444
    %v499 = vpack.c.b16 %v447, %v445
    %v500 = vpack.c.b16 %v450, %v448
    %v501 = vpack.c.b16 %v451, %v449
    %v502 = vpack.c.b16 %v454, %v452
    %v503 = vpack.c.b16 %v455, %v453
    %v504 = vpack.c.b16 %v458, %v456
    %v505 = vpack.c.b16 %v459, %v457
    %v506 = vpack.c.b16 %v462, %v460
    %v507 = vpack.c.b16 %v463, %v461
    %v508 = vpack.c.b16 %v466, %v464
    %v509 = vpack.c.b16 %v467, %v465
    %v510 = vpack.c.b16 %v470, %v468
    %v511 = vpack.c.b16 %v471, %v469
    %v512 = vpack.c.b16 %v472, %v472
    %v513 = vpack.c.b16 %v473, %v473
    %vm552 = vcmask 424960
    %v554 = vsel %vm552, %v314, 0
    %v557 = vsel %vm552, %v317, 0
    %vm559 = vcmask 1041408
    %v561 = vsel %vm559, %v512, 0
    %v564 = vsel %vm559, %v513, 0
    %566 = vmatprep.subr.bf16.mxu0 %v475
    %567 = vmatpush1.bf16.msra.mxu0 %v474
    %568 = vmatprep.subr.bf16.mxu0 %v477
    %569 = vmatpush1.bf16.msra.mxu0 %v476
    %570 = vmatprep.subr.bf16.mxu0 %v479
    %571 = vmatpush1.bf16.msra.mxu0 %v478
    %572 = vmatprep.subr.bf16.mxu0 %v481
    %573 = vmatpush1.bf16.msra.mxu0 %v480
    %574 = vmatprep.subr.bf16.mxu0 %v483
    %575 = vmatpush1.bf16.msra.mxu0 %v482
    %576 = vmatprep.subr.bf16.mxu0 %v485
    %577 = vmatpush1.bf16.msra.mxu0 %v484
    %578 = vmatprep.subr.bf16.mxu0 %v487
    %579 = vmatpush1.bf16.msra.mxu0 %v486
    %580 = vmatprep.subr.bf16.mxu0 %v489
    %581 = vmatpush1.bf16.msra.mxu0 %v488
    %582 = vmatprep.subr.bf16.mxu0 %v491
    %583 = vmatpush1.bf16.msra.mxu0 %v490
    %584 = vmatprep.subr.bf16.mxu0 %v493
    %585 = vmatpush1.bf16.msra.mxu0 %v492
    %586 = vmatprep.subr.bf16.mxu0 %v495
    %587 = vmatpush1.bf16.msra.mxu0 %v494
    %588 = vmatprep.subr.bf16.mxu0 %v497
    %589 = vmatpush1.bf16.msra.mxu0 %v496
    %590 = vmatprep.subr.bf16.mxu0 %v499
    %591 = vmatpush1.bf16.msra.mxu0 %v498
    %592 = vmatprep.subr.bf16.mxu0 %v501
    %593 = vmatpush1.bf16.msra.mxu0 %v500
    %594 = vmatprep.subr.bf16.mxu0 %v503
    %595 = vmatpush1.bf16.msra.mxu0 %v502
    %596 = vmatprep.subr.bf16.mxu0 %v505
    %597 = vmatpush1.bf16.msra.mxu0 %v504
    %598 = vmatprep.mubr.bf16.mxu0 %v313
    %599 = vmatmul.mubr.bf16.gmra.mrb[0].mxu0 %v312
    %v600 = vpop.f32.mrb[0].mxu0
    %v601 = vadd.f32 0.0, %v600
    %v602 = vpop.f32.mrb[0].mxu0
    %v603 = vadd.f32 0.0, %v602
    %v604 = vpop.f32.mrb[0].mxu0
    %v605 = vadd.f32 0.0, %v604
    %v606 = vpop.f32.mrb[0].mxu0
    %v607 = vadd.f32 0.0, %v606
    %608 = vmatprep.mubr.bf16.mxu0 %v316
    %609 = vmatmul.mubr.bf16.gmra.mrb[0].mxu0 %v315
    %v610 = vpop.f32.mrb[0].mxu0
    %v611 = vadd.f32 0.0, %v610
    %v612 = vpop.f32.mrb[0].mxu0
    %v613 = vadd.f32 0.0, %v612
    %v614 = vpop.f32.mrb[0].mxu0
    %v615 = vadd.f32 0.0, %v614
    %v616 = vpop.f32.mrb[0].mxu0
    %v617 = vadd.f32 0.0, %v616
    %618 = vdwg.mxu0
    %619 = vmatprep.subr.bf16.mxu0 %v507
    %620 = vmatpush1.bf16.msra.mxu0 %v506
    %621 = vmatprep.subr.bf16.mxu0 %v509
    %622 = vmatpush1.bf16.msra.mxu0 %v508
    %623 = vmatprep.subr.bf16.mxu0 %v511
    %624 = vmatpush1.bf16.msra.mxu0 %v510
    %625 = vmatprep.subr.bf16.mxu0 %v564
    %626 = vmatpush1.bf16.msra.mxu0 %v561
    %627 = vmatprep.subr.bf16.mxu0 0
    %628 = vmatpush1.bf16.msra.mxu0 0
    %629 = vmatprep.subr.bf16.mxu0 0
    %630 = vmatpush1.bf16.msra.mxu0 0
    %631 = vmatprep.subr.bf16.mxu0 0
    %632 = vmatpush1.bf16.msra.mxu0 0
    %633 = vmatprep.subr.bf16.mxu0 0
    %634 = vmatpush1.bf16.msra.mxu0 0
    %635 = vmatprep.subr.bf16.mxu0 0
    %636 = vmatpush1.bf16.msra.mxu0 0
    %637 = vmatprep.subr.bf16.mxu0 0
    %638 = vmatpush1.bf16.msra.mxu0 0
    %639 = vmatprep.subr.bf16.mxu0 0
    %640 = vmatpush1.bf16.msra.mxu0 0
    %641 = vmatprep.subr.bf16.mxu0 0
    %642 = vmatpush1.bf16.msra.mxu0 0
    %643 = vmatprep.subr.bf16.mxu0 0
    %644 = vmatpush1.bf16.msra.mxu0 0
    %645 = vmatprep.subr.bf16.mxu0 0
    %646 = vmatpush1.bf16.msra.mxu0 0
    %647 = vmatprep.subr.bf16.mxu0 0
    %648 = vmatpush1.bf16.msra.mxu0 0
    %649 = vmatprep.subr.bf16.mxu0 0
    %650 = vmatpush1.bf16.msra.mxu0 0
    %651 = vmatprep.mubr.bf16.mxu0 0
    %652 = vmatmul.mubr.bf16.gmra.mrb[0].mxu0 %v554
    %v653 = vpop.f32.mrb[0].mxu0
    %v654 = vadd.f32 %v601, %v653
    %v655 = vpop.f32.mrb[0].mxu0
    %v656 = vadd.f32 %v603, %v655
    %v657 = vpop.f32.mrb[0].mxu0
    %v658 = vadd.f32 %v605, %v657
    %v659 = vpop.f32.mrb[0].mxu0
    %v660 = vadd.f32 %v607, %v659
    %661 = vmatprep.mubr.bf16.mxu0 0
    %662 = vmatmul.mubr.bf16.gmra.mrb[0].mxu0 %v557
    %v663 = vpop.f32.mrb[0].mxu0
    %v664 = vadd.f32 %v611, %v663
    %v665 = vpop.f32.mrb[0].mxu0
    %v666 = vadd.f32 %v613, %v665
    %v667 = vpop.f32.mrb[0].mxu0
    %v668 = vadd.f32 %v615, %v667
    %v669 = vpop.f32.mrb[0].mxu0
    %v670 = vadd.f32 %v617, %v669
    %671 = vdwg.mxu0
    %v672 = vadd.f32 %v654, %v658
    %v673 = vadd.f32 %v672, %v664
    %v674 = vadd.f32 %v673, %v668
    %v675 = vrot.slane %v674, 4
    %v676 = vadd.f32 %v674, %v675
    %v677 = vrot.slane %v676, 2
    %v678 = vadd.f32 %v676, %v677
    %v679 = vrot.slane %v678, 1
    %v680 = vadd.f32 %v678, %v679
    %v681 = vadd.f32 %v656, %v660
    %v682 = vadd.f32 %v681, %v666
    %v683 = vadd.f32 %v682, %v670
    %v684 = vrot.slane %v683, 4
    %v685 = vadd.f32 %v683, %v684
    %v686 = vrot.slane %v685, 2
    %v687 = vadd.f32 %v685, %v686
    %v688 = vrot.slane %v687, 1
    %v689 = vadd.f32 %v687, %v688
    %v690 = vmul.f32 %v654, %v654
    %v691 = vmul.f32 %v656, %v656
    %v692 = vmul.f32 %v658, %v658
    %v693 = vmul.f32 %v660, %v660
    %v694 = vmul.f32 %v664, %v664
    %v695 = vmul.f32 %v666, %v666
    %v696 = vmul.f32 %v668, %v668
    %v697 = vmul.f32 %v670, %v670
    %v698 = vadd.f32 %v690, %v692
    %v699 = vadd.f32 %v698, %v694
    %v700 = vadd.f32 %v699, %v696
    %v701 = vrot.slane %v700, 4
    %v702 = vadd.f32 %v700, %v701
    %v703 = vrot.slane %v702, 2
    %v704 = vadd.f32 %v702, %v703
    %v705 = vrot.slane %v704, 1
    %v706 = vadd.f32 %v704, %v705
    %v707 = vadd.f32 %v691, %v693
    %v708 = vadd.f32 %v707, %v695
    %v709 = vadd.f32 %v708, %v697
    %v710 = vrot.slane %v709, 4
    %v711 = vadd.f32 %v709, %v710
    %v712 = vrot.slane %v711, 2
    %v713 = vadd.f32 %v711, %v712
    %v714 = vrot.slane %v713, 1
    %v715 = vadd.f32 %v713, %v714
    %v716 = vld [vmem:[%s0] sm:$0xff]
    %v717 = vld [vmem:[%s0 + $0x8] sm:$0xff]
    %v718 = vld [vmem:[%s0 + $0x10] sm:$0xff]
    %v719 = vld [vmem:[%s0 + $0x18] sm:$0xff]
    %v720 = vld [vmem:[%s0 + $0x20] sm:$0xff]
    %v721 = vld [vmem:[%s0 + $0x28] sm:$0xff]
    %v722 = vld [vmem:[%s0 + $0x30] sm:$0xff]
    %v723 = vld [vmem:[%s0 + $0x38] sm:$0xff]
    %v724 = vld [vmem:[%s0 + $0x40] sm:$0xff]
    %v725 = vld [vmem:[%s0 + $0x48] sm:$0xff]
    %v726 = vld [vmem:[%s0 + $0x50] sm:$0xff]
    %v727 = vld [vmem:[%s0 + $0x58] sm:$0xff]
    %v728 = vld [vmem:[%s0 + $0x60] sm:$0xff]
    %v729 = vld [vmem:[%s0 + $0x68] sm:$0xff]
    %v730 = vld [vmem:[%s0 + $0x70] sm:$0xff]
    %v731 = vld [vmem:[%s0 + $0x78] sm:$0xff]
    %v732 = vld [vmem:[%s0 + $0x80] sm:$0xff]
    %v733 = vld [vmem:[%s0 + $0x88] sm:$0xff]
    %v734 = vld [vmem:[%s0 + $0x90] sm:$0xff]
    %v735 = vld [vmem:[%s0 + $0x98] sm:$0xff]
    %v736 = vld [vmem:[%s0 + $0xa0] sm:$0xff]
    %v737 = vld [vmem:[%s0 + $0xa8] sm:$0xff]
    %v738 = vld [vmem:[%s0 + $0xb0] sm:$0xff]
    %v739 = vld [vmem:[%s0 + $0xb8] sm:$0xff]
    %v740 = vld [vmem:[%s0 + $0xc0] sm:$0xff]
    %v741 = vld [vmem:[%s0 + $0xc8] sm:$0xff]
    %v742 = vld [vmem:[%s0 + $0xd0] sm:$0xff]
    %v743 = vld [vmem:[%s0 + $0xd8] sm:$0xff]
    %v744 = vld [vmem:[%s0 + $0xe0] sm:$0xff]
    %v745 = vld [vmem:[%s0 + $0xe8] sm:$0xff]
    %v746 = vld [vmem:[%s0 + $0xf0] sm:$0xff]
    %v747 = vld [vmem:[%s0 + $0xf8] sm:$0xff]
    %748 = vmatprep.subr.mxu0 0.0
    %749 = vmatpush1.msra.mxu0 %v716
    %750 = vmatprep.subr.mxu0 0.0
    %751 = vmatpush1.msra.mxu0 %v717
    %752 = vmatprep.subr.mxu0 0.0
    %753 = vmatpush1.msra.mxu0 %v718
    %754 = vmatprep.subr.mxu0 0.0
    %755 = vmatpush1.msra.mxu0 %v719
    %756 = vmatprep.subr.mxu0 0.0
    %757 = vmatpush1.msra.mxu0 %v720
    %758 = vmatprep.subr.mxu0 0.0
    %759 = vmatpush1.msra.mxu0 %v721
    %760 = vmatprep.subr.mxu0 0.0
    %761 = vmatpush1.msra.mxu0 %v722
    %762 = vmatprep.subr.mxu0 0.0
    %763 = vmatpush1.msra.mxu0 %v723
    %764 = vmatprep.subr.mxu0 0.0
    %765 = vmatpush1.msra.mxu0 %v724
    %766 = vmatprep.subr.mxu0 0.0
    %767 = vmatpush1.msra.mxu0 %v725
    %768 = vmatprep.subr.mxu0 0.0
    %769 = vmatpush1.msra.mxu0 %v726
    %770 = vmatprep.subr.mxu0 0.0
    %771 = vmatpush1.msra.mxu0 %v727
    %772 = vmatprep.subr.mxu0 0.0
    %773 = vmatpush1.msra.mxu0 %v728
    %774 = vmatprep.subr.mxu0 0.0
    %775 = vmatpush1.msra.mxu0 %v729
    %776 = vmatprep.subr.mxu0 0.0
    %777 = vmatpush1.msra.mxu0 %v730
    %778 = vmatprep.subr.mxu0 0.0
    %779 = vmatpush1.msra.mxu0 %v731
    %780 = vmatprep.subr.mxu0 0.0
    %781 = vmatpush1.msra.mxu0 %v732
    %782 = vmatprep.subr.mxu0 0.0
    %783 = vmatpush1.msra.mxu0 %v733
    %784 = vmatprep.subr.mxu0 0.0
    %785 = vmatpush1.msra.mxu0 %v734
    %786 = vmatprep.subr.mxu0 0.0
    %787 = vmatpush1.msra.mxu0 %v735
    %788 = vmatprep.subr.mxu0 0.0
    %789 = vmatpush1.msra.mxu0 %v736
    %790 = vmatprep.subr.mxu0 0.0
    %791 = vmatpush1.msra.mxu0 %v737
    %792 = vmatprep.subr.mxu0 0.0
    %793 = vmatpush1.msra.mxu0 %v738
    %794 = vmatprep.subr.mxu0 0.0
    %795 = vmatpush1.msra.mxu0 %v739
    %796 = vmatprep.subr.mxu0 0.0
    %797 = vmatpush1.msra.mxu0 %v740
    %798 = vmatprep.subr.mxu0 0.0
    %799 = vmatpush1.msra.mxu0 %v741
    %800 = vmatprep.subr.mxu0 0.0
    %801 = vmatpush1.msra.mxu0 %v742
    %802 = vmatprep.subr.mxu0 0.0
    %803 = vmatpush1.msra.mxu0 %v743
    %804 = vmatprep.subr.mxu0 0.0
    %805 = vmatpush1.msra.mxu0 %v744
    %806 = vmatprep.subr.mxu0 0.0
    %807 = vmatpush1.msra.mxu0 %v745
    %808 = vmatprep.subr.mxu0 0.0
    %809 = vmatpush1.msra.mxu0 %v746
    %810 = vmatprep.subr.mxu0 0.0
    %811 = vmatpush1.msra.mxu0 %v747
    %812 = vmatprep.mubr.f32.mxu0 %v689
    %813 = vmatmul.mubr.f32.gmra.mrb[0].mxu0 %v680
    %v814 = vpop.f32.mrb[0].mxu0
    %v815 = vadd.f32 0.0, %v814
    %v816 = vpop.f32.mrb[0].mxu0
    %817 = vdwg.mxu0
    %v818 = vrcp.pop 512.0
    %v819 = vmul.f32 %v815, %v818
    %820 = vmatprep.subr.mxu0 0.0
    %821 = vmatpush1.msra.mxu0 %v716
    %822 = vmatprep.subr.mxu0 0.0
    %823 = vmatpush1.msra.mxu0 %v717
    %824 = vmatprep.subr.mxu0 0.0
    %825 = vmatpush1.msra.mxu0 %v718
    %826 = vmatprep.subr.mxu0 0.0
    %827 = vmatpush1.msra.mxu0 %v719
    %828 = vmatprep.subr.mxu0 0.0
    %829 = vmatpush1.msra.mxu0 %v720
    %830 = vmatprep.subr.mxu0 0.0
    %831 = vmatpush1.msra.mxu0 %v721
    %832 = vmatprep.subr.mxu0 0.0
    %833 = vmatpush1.msra.mxu0 %v722
    %834 = vmatprep.subr.mxu0 0.0
    %835 = vmatpush1.msra.mxu0 %v723
    %836 = vmatprep.subr.mxu0 0.0
    %837 = vmatpush1.msra.mxu0 %v724
    %838 = vmatprep.subr.mxu0 0.0
    %839 = vmatpush1.msra.mxu0 %v725
    %840 = vmatprep.subr.mxu0 0.0
    %841 = vmatpush1.msra.mxu0 %v726
    %842 = vmatprep.subr.mxu0 0.0
    %843 = vmatpush1.msra.mxu0 %v727
    %844 = vmatprep.subr.mxu0 0.0
    %845 = vmatpush1.msra.mxu0 %v728
    %846 = vmatprep.subr.mxu0 0.0
    %847 = vmatpush1.msra.mxu0 %v729
    %848 = vmatprep.subr.mxu0 0.0
    %849 = vmatpush1.msra.mxu0 %v730
    %850 = vmatprep.subr.mxu0 0.0
    %851 = vmatpush1.msra.mxu0 %v731
    %852 = vmatprep.subr.mxu0 0.0
    %853 = vmatpush1.msra.mxu0 %v732
    %854 = vmatprep.subr.mxu0 0.0
    %855 = vmatpush1.msra.mxu0 %v733
    %856 = vmatprep.subr.mxu0 0.0
    %857 = vmatpush1.msra.mxu0 %v734
    %858 = vmatprep.subr.mxu0 0.0
    %859 = vmatpush1.msra.mxu0 %v735
    %860 = vmatprep.subr.mxu0 0.0
    %861 = vmatpush1.msra.mxu0 %v736
    %862 = vmatprep.subr.mxu0 0.0
    %863 = vmatpush1.msra.mxu0 %v737
    %864 = vmatprep.subr.mxu0 0.0
    %865 = vmatpush1.msra.mxu0 %v738
    %866 = vmatprep.subr.mxu0 0.0
    %867 = vmatpush1.msra.mxu0 %v739
    %868 = vmatprep.subr.mxu0 0.0
    %869 = vmatpush1.msra.mxu0 %v740
    %870 = vmatprep.subr.mxu0 0.0
    %871 = vmatpush1.msra.mxu0 %v741
    %872 = vmatprep.subr.mxu0 0.0
    %873 = vmatpush1.msra.mxu0 %v742
    %874 = vmatprep.subr.mxu0 0.0
    %875 = vmatpush1.msra.mxu0 %v743
    %876 = vmatprep.subr.mxu0 0.0
    %877 = vmatpush1.msra.mxu0 %v744
    %878 = vmatprep.subr.mxu0 0.0
    %879 = vmatpush1.msra.mxu0 %v745
    %880 = vmatprep.subr.mxu0 0.0
    %881 = vmatpush1.msra.mxu0 %v746
    %882 = vmatprep.subr.mxu0 0.0
    %883 = vmatpush1.msra.mxu0 %v747
    %884 = vmatprep.mubr.f32.mxu0 %v715
    %885 = vmatmul.mubr.f32.gmra.mrb[0].mxu0 %v706
    %v886 = vpop.f32.mrb[0].mxu0
    %v887 = vadd.f32 0.0, %v886
    %v888 = vpop.f32.mrb[0].mxu0
    %889 = vdwg.mxu0
    %v890 = vmul.f32 %v887, %v818
    %v891 = vmul.f32 %v819, %v819
    %v892 = vsub.f32 %v890, %v891
    %v893 = vmax.f32 %v892, 0.0
    %v894 = vadd.f32 %v893, 1e-05
    %v895 = vrsqrt.pop %v894
    %897 = vrot.lane.b32.xlu0 %v895, 16
    %v898 = vpop.permute.xlu0 %897
    %900 = vrot.lane.b32.xlu0 %v895, 32
    %v901 = vpop.permute.xlu0 %900
    %903 = vrot.lane.b32.xlu0 %v895, 48
    %v904 = vpop.permute.xlu0 %903
    %906 = vrot.lane.b32.xlu0 %v895, 64
    %v907 = vpop.permute.xlu0 %906
    %909 = vrot.lane.b32.xlu0 %v895, 80
    %v910 = vpop.permute.xlu0 %909
    %912 = vrot.lane.b32.xlu0 %v895, 96
    %v913 = vpop.permute.xlu0 %912
    %915 = vrot.lane.b32.xlu0 %v895, 112
    %v916 = vpop.permute.xlu0 %915
    %vm918 = vcmask 130048
    %v919 = vsel %vm918, %v895, %v898
    %vm920 = vcmask 261120
    %v921 = vsel %vm920, %v919, %v901
    %v922 = vsel %vm297, %v921, %v904
    %vm923 = vcmask 523264
    %v924 = vsel %vm923, %v922, %v907
    %vm925 = vcmask 654336
    %v926 = vsel %vm925, %v924, %v910
    %vm927 = vcmask 785408
    %v928 = vsel %vm927, %v926, %v913
    %vm929 = vcmask 916480
    %v930 = vsel %vm929, %v928, %v916
    %v931 = vld [vmem:[#allocation9] sm:$0x3]
    %v933 = vlaneseq
    %v934 = vshrl.u32 %v933, 7
    %v935 = vsub.s32 0, %v934
    %v936 = vrot.slane %v931, %v935
    %v937 = vlaneseq
    %v938 = vshrl.u32 %v937, 7
    %v939 = vsub.s32 1, %v938
    %v940 = vrot.slane %v931, %v939
    %v943 = vmul.f32 %v930, %v936
    %v944 = vmul.f32 %v930, %v940
    %946 = vrot.lane.b32.xlu0 %v819, 16
    %v947 = vpop.permute.xlu0 %946
    %949 = vrot.lane.b32.xlu0 %v819, 32
    %v950 = vpop.permute.xlu0 %949
    %952 = vrot.lane.b32.xlu0 %v819, 48
    %v953 = vpop.permute.xlu0 %952
    %955 = vrot.lane.b32.xlu0 %v819, 64
    %v956 = vpop.permute.xlu0 %955
    %958 = vrot.lane.b32.xlu0 %v819, 80
    %v959 = vpop.permute.xlu0 %958
    %961 = vrot.lane.b32.xlu0 %v819, 96
    %v962 = vpop.permute.xlu0 %961
    %964 = vrot.lane.b32.xlu0 %v819, 112
    %v965 = vpop.permute.xlu0 %964
    %v967 = vsel %vm918, %v819, %v947
    %v968 = vsel %vm920, %v967, %v950
    %v969 = vsel %vm297, %v968, %v953
    %v970 = vsel %vm923, %v969, %v956
    %v971 = vsel %vm925, %v970, %v959
    %v972 = vsel %vm927, %v971, %v962
    %v973 = vsel %vm929, %v972, %v965
    %v974 = vlaneseq
    %v975 = vshrl.u32 %v974, 7
    %v976 = vsub.s32 0, %v975
    %v977 = vrot.slane %v973, %v976
    %v978 = vsub.f32 %v654, %v977
    %v979 = vsub.f32 %v656, %v977
    %v980 = vsub.f32 %v658, %v977
    %v981 = vsub.f32 %v660, %v977
    %v982 = vsub.f32 %v664, %v977
    %v983 = vsub.f32 %v666, %v977
    %v984 = vsub.f32 %v668, %v977
    %v985 = vsub.f32 %v670, %v977
    %v986 = vlaneseq
    %v987 = vshrl.u32 %v986, 7
    %v988 = vsub.s32 0, %v987
    %v989 = vrot.slane %v943, %v988
    %v990 = vlaneseq
    %v991 = vshrl.u32 %v990, 7
    %v992 = vsub.s32 0, %v991
    %v993 = vrot.slane %v944, %v992
    %v994 = vmul.f32 %v978, %v989
    %v995 = vmul.f32 %v979, %v993
    %v996 = vmul.f32 %v980, %v989
    %v997 = vmul.f32 %v981, %v993
    %v998 = vmul.f32 %v982, %v989
    %v999 = vmul.f32 %v983, %v993
    %v1000 = vmul.f32 %v984, %v989
    %v1001 = vmul.f32 %v985, %v993
    %v1002 = vld [vmem:[#allocation10] sm:$0x3]
    %v1004 = vlaneseq
    %v1005 = vshrl.u32 %v1004, 7
    %v1006 = vsub.s32 0, %v1005
    %v1007 = vrot.slane %v1002, %v1006
    %v1008 = vlaneseq
    %v1009 = vshrl.u32 %v1008, 7
    %v1010 = vsub.s32 1, %v1009
    %v1011 = vrot.slane %v1002, %v1010
    %v1014 = vadd.f32 %v994, %v1007
    %v1015 = vadd.f32 %v995, %v1011
    %v1016 = vadd.f32 %v996, %v1007
    %v1017 = vadd.f32 %v997, %v1011
    %v1018 = vadd.f32 %v998, %v1007
    %v1019 = vadd.f32 %v999, %v1011
    %v1020 = vadd.f32 %v1000, %v1007
    %v1021 = vadd.f32 %v1001, %v1011
    %v1022 = vmax.f32 %v1014, 0.0
    %v1023 = vmax.f32 %v1015, 0.0
    %v1024 = vmax.f32 %v1016, 0.0
    %v1025 = vmax.f32 %v1017, 0.0
    %v1026 = vmax.f32 %v1018, 0.0
    %v1027 = vmax.f32 %v1019, 0.0
    %v1028 = vmax.f32 %v1020, 0.0
    %v1029 = vmax.f32 %v1021, 0.0
    %1030 = vst [vmem:[#allocation3] sm:$0x7] 0.0
    %1031 = vst [vmem:[#allocation3 + $0x8] sm:$0x7] 0.0
    %vm1032 = vcmask 780288
    %1033 = vst.msk [vmem:[#allocation3 + $0x10] sm:$0x7] %vm1032, 0.0
    %1034 = vst [vmem:[#allocation3 + $0x48] sm:$0x7] 0.0
    %1035 = vst [vmem:[#allocation3 + $0x50] sm:$0x7] 0.0
    %1036 = vst.msk [vmem:[#allocation3 + $0x58] sm:$0x7] %vm1032, 0.0
    %1037 = vst [vmem:[#allocation3 + $0x30] sm:$0x38] 0.0
    %1038 = vst [vmem:[#allocation3 + $0x38] sm:$0x38] 0.0
    %vm1039 = vcmask 783363
    %1040 = vst.msk [vmem:[#allocation3 + $0x40] sm:$0x38] %vm1039, 0.0
    %1041 = vst [vmem:[#allocation3 + $0x78] sm:$0x38] 0.0
    %1042 = vst [vmem:[#allocation3 + $0x80] sm:$0x38] 0.0
    %1043 = vst.msk [vmem:[#allocation3 + $0x88] sm:$0x38] %vm1039, 0.0
    %vm1044 = vcmask 392195
    %1045 = vst.msk [vmem:[#allocation3] sm:$0xf8] %vm1044, 0.0
    %1046 = vst.msk [vmem:[#allocation3 + $0x18] sm:$0xff] %vm297, 0.0
    %vm1047 = vcmask 387072
    %1048 = vst.msk [vmem:[#allocation3 + $0x30] sm:$0x7] %vm1047, 0.0
    %1049 = vst.msk [vmem:[#allocation3 + $0x48] sm:$0xf8] %vm1044, 0.0
    %1050 = vst.msk [vmem:[#allocation3 + $0x60] sm:$0xff] %vm297, 0.0
    %1051 = vst.msk [vmem:[#allocation3 + $0x78] sm:$0x7] %vm1047, 0.0
    %vm1052 = vcmask 785795
    %1053 = vst.msk [vmem:[#allocation3 + $0x10] sm:$0xf8] %vm1052, 0.0
    %vm1054 = vcmask 785792
    %1055 = vst.msk [vmem:[#allocation3 + $0x28] sm:$0xff] %vm1054, 0.0
    %vm1056 = vcmask 780672
    %1057 = vst.msk [vmem:[#allocation3 + $0x40] sm:$0x7] %vm1056, 0.0
    %1058 = vst.msk [vmem:[#allocation3 + $0x58] sm:$0xf8] %vm1052, 0.0
    %1059 = vst.msk [vmem:[#allocation3 + $0x70] sm:$0xff] %vm1054, 0.0
    %1060 = vst.msk [vmem:[#allocation3 + $0x88] sm:$0x7] %vm1056, 0.0
    %vm1069 = vcmask 1042432
    %v1070 = vrot.slane %v1022, 5
    %v1071 = vrot.slane %v1023, 5
    %v1072 = vrot.slane %v1024, 5
    %v1073 = vsel %vm1069, %v1070, %v1072
    %v1074 = vrot.slane %v1025, 5
    %v1075 = vsel %vm1069, %v1071, %v1074
    %v1076 = vrot.slane %v1026, 5
    %v1077 = vrot.slane %v1027, 5
    %v1078 = vrot.slane %v1028, 5
    %v1079 = vsel %vm1069, %v1076, %v1078
    %v1080 = vrot.slane %v1029, 5
    %v1081 = vsel %vm1069, %v1077, %v1080
    %1082 = vrot.lane.b32.xlu0 %v1070, 48
    %v1083 = vpop.permute.xlu0 %1082
    %1084 = vrot.lane.b32.xlu0 %v1071, 48
    %v1085 = vpop.permute.xlu0 %1084
    %1086 = vrot.lane.b32.xlu0 %v1073, 48
    %v1087 = vpop.permute.xlu0 %1086
    %1088 = vrot.lane.b32.xlu0 %v1075, 48
    %v1089 = vpop.permute.xlu0 %1088
    %1090 = vrot.lane.b32.xlu0 %v1072, 48
    %v1091 = vpop.permute.xlu0 %1090
    %1092 = vrot.lane.b32.xlu0 %v1074, 48
    %v1093 = vpop.permute.xlu0 %1092
    %1094 = vrot.lane.b32.xlu0 %v1076, 48
    %v1095 = vpop.permute.xlu0 %1094
    %1096 = vrot.lane.b32.xlu0 %v1077, 48
    %v1097 = vpop.permute.xlu0 %1096
    %1098 = vrot.lane.b32.xlu0 %v1079, 48
    %v1099 = vpop.permute.xlu0 %1098
    %1100 = vrot.lane.b32.xlu0 %v1081, 48
    %v1101 = vpop.permute.xlu0 %1100
    %1102 = vrot.lane.b32.xlu0 %v1078, 48
    %v1103 = vpop.permute.xlu0 %1102
    %1104 = vrot.lane.b32.xlu0 %v1080, 48
    %v1105 = vpop.permute.xlu0 %1104
    %v1106 = vsel %vm297, %v1083, %v1085
    %v1107 = vsel %vm297, %v1087, %v1089
    %v1108 = vsel %vm297, %v1091, %v1093
    %v1109 = vsel %vm297, %v1095, %v1097
    %v1110 = vsel %vm297, %v1099, %v1101
    %v1111 = vsel %vm297, %v1103, %v1105
    %vm1130 = vcmask 1047939
    %1131 = vst.msk [vmem:[#allocation3] sm:$0xf8] %vm1130, %v1083
    %1132 = vst [vmem:[#allocation3 + $0x8] sm:$0xf8] %v1106
    %1133 = vst.msk [vmem:[#allocation3 + $0x10] sm:$0xf8] %vm1044, %v1085
    %vm1134 = vcmask 1047936
    %1135 = vst.msk [vmem:[#allocation3 + $0x18] sm:$0xff] %vm1134, %v1087
    %1136 = vst [vmem:[#allocation3 + $0x20] sm:$0xff] %v1107
    %1137 = vst.msk [vmem:[#allocation3 + $0x28] sm:$0xff] %vm297, %v1089
    %vm1138 = vcmask 1042816
    %1139 = vst.msk [vmem:[#allocation3 + $0x30] sm:$0x7] %vm1138, %v1091
    %1140 = vst [vmem:[#allocation3 + $0x38] sm:$0x7] %v1108
    %1141 = vst.msk [vmem:[#allocation3 + $0x40] sm:$0x7] %vm1047, %v1093
    %1142 = vst.msk [vmem:[#allocation3 + $0x48] sm:$0xf8] %vm1130, %v1095
    %1143 = vst [vmem:[#allocation3 + $0x50] sm:$0xf8] %v1109
    %1144 = vst.msk [vmem:[#allocation3 + $0x58] sm:$0xf8] %vm1044, %v1097
    %1145 = vst.msk [vmem:[#allocation3 + $0x60] sm:$0xff] %vm1134, %v1099
    %1146 = vst [vmem:[#allocation3 + $0x68] sm:$0xff] %v1110
    %1147 = vst.msk [vmem:[#allocation3 + $0x70] sm:$0xff] %vm297, %v1101
    %1148 = vst.msk [vmem:[#allocation3 + $0x78] sm:$0x7] %vm1138, %v1103
    %1149 = vst [vmem:[#allocation3 + $0x80] sm:$0x7] %v1111
    %1150 = vst.msk [vmem:[#allocation3 + $0x88] sm:$0x7] %vm1047, %v1105
    %v1151 = vld [vmem:[#allocation3] sm:$0xff]
    %v1152 = vld [vmem:[#allocation3 + $0x8] sm:$0xff]
    %v1153 = vld [vmem:[#allocation3 + $0x10] sm:$0xff]
    %v1154 = vld [vmem:[#allocation3 + $0x18] sm:$0xff]
    %v1155 = vld [vmem:[#allocation3 + $0x20] sm:$0xff]
    %v1156 = vld [vmem:[#allocation3 + $0x28] sm:$0xff]
    %v1157 = vld [vmem:[#allocation3 + $0x48] sm:$0xff]
    %v1158 = vld [vmem:[#allocation3 + $0x50] sm:$0xff]
    %v1159 = vld [vmem:[#allocation3 + $0x58] sm:$0xff]
    %v1160 = vld [vmem:[#allocation3 + $0x60] sm:$0xff]
    %v1161 = vld [vmem:[#allocation3 + $0x68] sm:$0xff]
    %v1162 = vld [vmem:[#allocation3 + $0x70] sm:$0xff]
    %v1163 = vld [vmem:[#allocation3] sm:$0xfe]
    %v1164 = vld [vmem:[#allocation3 + $0x8] sm:$0xfe]
    %v1165 = vld [vmem:[#allocation3 + $0x10] sm:$0xfe]
    %v1166 = vld [vmem:[#allocation3 + $0x30] sm:$0x1]
    %v1167 = vld [vmem:[#allocation3 + $0x38] sm:$0x1]
    %v1168 = vld [vmem:[#allocation3 + $0x40] sm:$0x1]
    %v1169 = vld [vmem:[#allocation3 + $0x48] sm:$0xfe]
    %v1170 = vld [vmem:[#allocation3 + $0x50] sm:$0xfe]
    %v1171 = vld [vmem:[#allocation3 + $0x58] sm:$0xfe]
    %v1172 = vld [vmem:[#allocation3 + $0x78] sm:$0x1]
    %v1173 = vld [vmem:[#allocation3 + $0x80] sm:$0x1]
    %v1174 = vld [vmem:[#allocation3 + $0x88] sm:$0x1]
    %v1175 = vld [vmem:[#allocation3] sm:$0xfc]
    %v1176 = vld [vmem:[#allocation3 + $0x8] sm:$0xfc]
    %v1177 = vld [vmem:[#allocation3 + $0x10] sm:$0xfc]
    %v1178 = vld [vmem:[#allocation3 + $0x30] sm:$0x3]
    %v1179 = vld [vmem:[#allocation3 + $0x38] sm:$0x3]
    %v1180 = vld [vmem:[#allocation3 + $0x40] sm:$0x3]
    %v1181 = vld [vmem:[#allocation3 + $0x48] sm:$0xfc]
    %v1182 = vld [vmem:[#allocation3 + $0x50] sm:$0xfc]
    %v1183 = vld [vmem:[#allocation3 + $0x58] sm:$0xfc]
    %v1184 = vld [vmem:[#allocation3 + $0x78] sm:$0x3]
    %v1185 = vld [vmem:[#allocation3 + $0x80] sm:$0x3]
    %v1186 = vld [vmem:[#allocation3 + $0x88] sm:$0x3]
    %v1187 = vld [vmem:[#allocation3] sm:$0xf8]
    %v1188 = vld [vmem:[#allocation3 + $0x8] sm:$0xf8]
    %v1189 = vld [vmem:[#allocation3 + $0x10] sm:$0xf8]
    %v1190 = vld [vmem:[#allocation3 + $0x30] sm:$0x7]
    %v1191 = vld [vmem:[#allocation3 + $0x38] sm:$0x7]
    %v1192 = vld [vmem:[#allocation3 + $0x40] sm:$0x7]
    %v1193 = vld [vmem:[#allocation3 + $0x48] sm:$0xf8]
    %v1194 = vld [vmem:[#allocation3 + $0x50] sm:$0xf8]
    %v1195 = vld [vmem:[#allocation3 + $0x58] sm:$0xf8]
    %v1196 = vld [vmem:[#allocation3 + $0x78] sm:$0x7]
    %v1197 = vld [vmem:[#allocation3 + $0x80] sm:$0x7]
    %v1198 = vld [vmem:[#allocation3 + $0x88] sm:$0x7]
    %v1199 = vld [vmem:[#allocation3] sm:$0xf0]
    %v1200 = vld [vmem:[#allocation3 + $0x8] sm:$0xf0]
    %v1201 = vld [vmem:[#allocation3 + $0x10] sm:$0xf0]
    %v1202 = vld [vmem:[#allocation3 + $0x30] sm:$0xf]
    %v1203 = vld [vmem:[#allocation3 + $0x38] sm:$0xf]
    %v1204 = vld [vmem:[#allocation3 + $0x40] sm:$0xf]
    %v1205 = vld [vmem:[#allocation3 + $0x48] sm:$0xf0]
    %v1206 = vld [vmem:[#allocation3 + $0x50] sm:$0xf0]
    %v1207 = vld [vmem:[#allocation3 + $0x58] sm:$0xf0]
    %v1208 = vld [vmem:[#allocation3 + $0x78] sm:$0xf]
    %v1209 = vld [vmem:[#allocation3 + $0x80] sm:$0xf]
    %v1210 = vld [vmem:[#allocation3 + $0x88] sm:$0xf]
    %v1211 = vld [vmem:[#allocation3] sm:$0xe0]
    %v1212 = vld [vmem:[#allocation3 + $0x8] sm:$0xe0]
    %v1213 = vld [vmem:[#allocation3 + $0x10] sm:$0xe0]
    %v1214 = vld [vmem:[#allocation3 + $0x30] sm:$0x1f]
    %v1215 = vld [vmem:[#allocation3 + $0x38] sm:$0x1f]
    %v1216 = vld [vmem:[#allocation3 + $0x40] sm:$0x1f]
    %v1217 = vld [vmem:[#allocation3 + $0x48] sm:$0xe0]
    %v1218 = vld [vmem:[#allocation3 + $0x50] sm:$0xe0]
    %v1219 = vld [vmem:[#allocation3 + $0x58] sm:$0xe0]
    %v1220 = vld [vmem:[#allocation3 + $0x78] sm:$0x1f]
    %v1221 = vld [vmem:[#allocation3 + $0x80] sm:$0x1f]
    %v1222 = vld [vmem:[#allocation3 + $0x88] sm:$0x1f]
    %v1223 = vld [vmem:[#allocation3] sm:$0xc0]
    %v1224 = vld [vmem:[#allocation3 + $0x8] sm:$0xc0]
    %v1225 = vld [vmem:[#allocation3 + $0x10] sm:$0xc0]
    %v1226 = vld [vmem:[#allocation3 + $0x30] sm:$0x3f]
    %v1227 = vld [vmem:[#allocation3 + $0x38] sm:$0x3f]
    %v1228 = vld [vmem:[#allocation3 + $0x40] sm:$0x3f]
    %v1229 = vld [vmem:[#allocation3 + $0x48] sm:$0xc0]
    %v1230 = vld [vmem:[#allocation3 + $0x50] sm:$0xc0]
    %v1231 = vld [vmem:[#allocation3 + $0x58] sm:$0xc0]
    %v1232 = vld [vmem:[#allocation3 + $0x78] sm:$0x3f]
    %v1233 = vld [vmem:[#allocation3 + $0x80] sm:$0x3f]
    %v1234 = vld [vmem:[#allocation3 + $0x88] sm:$0x3f]
    %vm1253 = vcmask 1046528
    %v1254 = vrot.slane %v1163, 1
    %v1255 = vrot.slane %v1154, 1
    %v1256 = vsel %vm1253, %v1254, %v1255
    %v1257 = vrot.slane %v1164, 1
    %v1258 = vrot.slane %v1155, 1
    %v1259 = vsel %vm1253, %v1257, %v1258
    %v1260 = vrot.slane %v1165, 1
    %v1261 = vrot.slane %v1156, 1
    %v1262 = vsel %vm1253, %v1260, %v1261
    %v1263 = vrot.slane %v1166, 1
    %v1264 = vsel %vm1253, %v1255, %v1263
    %v1265 = vrot.slane %v1167, 1
    %v1266 = vsel %vm1253, %v1258, %v1265
    %v1267 = vrot.slane %v1168, 1
    %v1268 = vsel %vm1253, %v1261, %v1267
    %v1269 = vrot.slane %v1169, 1
    %v1270 = vrot.slane %v1160, 1
    %v1271 = vsel %vm1253, %v1269, %v1270
    %v1272 = vrot.slane %v1170, 1
    %v1273 = vrot.slane %v1161, 1
    %v1274 = vsel %vm1253, %v1272, %v1273
    %v1275 = vrot.slane %v1171, 1
    %v1276 = vrot.slane %v1162, 1
    %v1277 = vsel %vm1253, %v1275, %v1276
    %v1278 = vrot.slane %v1172, 1
    %v1279 = vsel %vm1253, %v1270, %v1278
    %v1280 = vrot.slane %v1173, 1
    %v1281 = vsel %vm1253, %v1273, %v1280
    %v1282 = vrot.slane %v1174, 1
    %v1283 = vsel %vm1253, %v1276, %v1282
    %1284 = vrot.lane.b32.xlu0 %v1256, 96
    %v1285 = vpop.permute.xlu0 %1284
    %1286 = vrot.lane.b32.xlu0 %v1259, 96
    %v1287 = vpop.permute.xlu0 %1286
    %1288 = vrot.lane.b32.xlu0 %v1262, 96
    %v1289 = vpop.permute.xlu0 %1288
    %1290 = vrot.lane.b32.xlu0 %v1264, 96
    %v1291 = vpop.permute.xlu0 %1290
    %1292 = vrot.lane.b32.xlu0 %v1266, 96
    %v1293 = vpop.permute.xlu0 %1292
    %1294 = vrot.lane.b32.xlu0 %v1268, 96
    %v1295 = vpop.permute.xlu0 %1294
    %1296 = vrot.lane.b32.xlu0 %v1271, 96
    %v1297 = vpop.permute.xlu0 %1296
    %1298 = vrot.lane.b32.xlu0 %v1274, 96
    %v1299 = vpop.permute.xlu0 %1298
    %1300 = vrot.lane.b32.xlu0 %v1277, 96
    %v1301 = vpop.permute.xlu0 %1300
    %1302 = vrot.lane.b32.xlu0 %v1279, 96
    %v1303 = vpop.permute.xlu0 %1302
    %1304 = vrot.lane.b32.xlu0 %v1281, 96
    %v1305 = vpop.permute.xlu0 %1304
    %1306 = vrot.lane.b32.xlu0 %v1283, 96
    %v1307 = vpop.permute.xlu0 %1306
    %v1308 = vsel %vm927, %v1285, %v1287
    %v1309 = vsel %vm927, %v1287, %v1289
    %v1310 = vsel %vm927, %v1291, %v1293
    %v1311 = vsel %vm927, %v1293, %v1295
    %v1312 = vsel %vm927, %v1297, %v1299
    %v1313 = vsel %vm927, %v1299, %v1301
    %v1314 = vsel %vm927, %v1303, %v1305
    %v1315 = vsel %vm927, %v1305, %v1307
    %vm1344 = vcmask 1045504
    %v1345 = vrot.slane %v1175, 2
    %v1346 = vrot.slane %v1154, 2
    %v1347 = vsel %vm1344, %v1345, %v1346
    %v1348 = vrot.slane %v1176, 2
    %v1349 = vrot.slane %v1155, 2
    %v1350 = vsel %vm1344, %v1348, %v1349
    %v1351 = vrot.slane %v1177, 2
    %v1352 = vrot.slane %v1156, 2
    %v1353 = vsel %vm1344, %v1351, %v1352
    %v1354 = vrot.slane %v1178, 2
    %v1355 = vsel %vm1344, %v1346, %v1354
    %v1356 = vrot.slane %v1179, 2
    %v1357 = vsel %vm1344, %v1349, %v1356
    %v1358 = vrot.slane %v1180, 2
    %v1359 = vsel %vm1344, %v1352, %v1358
    %v1360 = vrot.slane %v1181, 2
    %v1361 = vrot.slane %v1160, 2
    %v1362 = vsel %vm1344, %v1360, %v1361
    %v1363 = vrot.slane %v1182, 2
    %v1364 = vrot.slane %v1161, 2
    %v1365 = vsel %vm1344, %v1363, %v1364
    %v1366 = vrot.slane %v1183, 2
    %v1367 = vrot.slane %v1162, 2
    %v1368 = vsel %vm1344, %v1366, %v1367
    %v1369 = vrot.slane %v1184, 2
    %v1370 = vsel %vm1344, %v1361, %v1369
    %v1371 = vrot.slane %v1185, 2
    %v1372 = vsel %vm1344, %v1364, %v1371
    %v1373 = vrot.slane %v1186, 2
    %v1374 = vsel %vm1344, %v1367, %v1373
    %1375 = vrot.lane.b32.xlu0 %v1347, 64
    %v1376 = vpop.permute.xlu0 %1375
    %1377 = vrot.lane.b32.xlu0 %v1350, 64
    %v1378 = vpop.permute.xlu0 %1377
    %1379 = vrot.lane.b32.xlu0 %v1353, 64
    %v1380 = vpop.permute.xlu0 %1379
    %1381 = vrot.lane.b32.xlu0 %v1355, 64
    %v1382 = vpop.permute.xlu0 %1381
    %1383 = vrot.lane.b32.xlu0 %v1357, 64
    %v1384 = vpop.permute.xlu0 %1383
    %1385 = vrot.lane.b32.xlu0 %v1359, 64
    %v1386 = vpop.permute.xlu0 %1385
    %1387 = vrot.lane.b32.xlu0 %v1362, 64
    %v1388 = vpop.permute.xlu0 %1387
    %1389 = vrot.lane.b32.xlu0 %v1365, 64
    %v1390 = vpop.permute.xlu0 %1389
    %1391 = vrot.lane.b32.xlu0 %v1368, 64
    %v1392 = vpop.permute.xlu0 %1391
    %1393 = vrot.lane.b32.xlu0 %v1370, 64
    %v1394 = vpop.permute.xlu0 %1393
    %1395 = vrot.lane.b32.xlu0 %v1372, 64
    %v1396 = vpop.permute.xlu0 %1395
    %1397 = vrot.lane.b32.xlu0 %v1374, 64
    %v1398 = vpop.permute.xlu0 %1397
    %v1399 = vsel %vm923, %v1376, %v1378
    %v1400 = vsel %vm923, %v1378, %v1380
    %v1401 = vsel %vm923, %v1382, %v1384
    %v1402 = vsel %vm923, %v1384, %v1386
    %v1403 = vsel %vm923, %v1388, %v1390
    %v1404 = vsel %vm923, %v1390, %v1392
    %v1405 = vsel %vm923, %v1394, %v1396
    %v1406 = vsel %vm923, %v1396, %v1398
    %vm1435 = vcmask 1044480
    %v1436 = vrot.slane %v1187, 3
    %v1437 = vrot.slane %v1154, 3
    %v1438 = vsel %vm1435, %v1436, %v1437
    %v1439 = vrot.slane %v1188, 3
    %v1440 = vrot.slane %v1155, 3
    %v1441 = vsel %vm1435, %v1439, %v1440
    %v1442 = vrot.slane %v1189, 3
    %v1443 = vrot.slane %v1156, 3
    %v1444 = vsel %vm1435, %v1442, %v1443
    %v1445 = vrot.slane %v1190, 3
    %v1446 = vsel %vm1435, %v1437, %v1445
    %v1447 = vrot.slane %v1191, 3
    %v1448 = vsel %vm1435, %v1440, %v1447
    %v1449 = vrot.slane %v1192, 3
    %v1450 = vsel %vm1435, %v1443, %v1449
    %v1451 = vrot.slane %v1193, 3
    %v1452 = vrot.slane %v1160, 3
    %v1453 = vsel %vm1435, %v1451, %v1452
    %v1454 = vrot.slane %v1194, 3
    %v1455 = vrot.slane %v1161, 3
    %v1456 = vsel %vm1435, %v1454, %v1455
    %v1457 = vrot.slane %v1195, 3
    %v1458 = vrot.slane %v1162, 3
    %v1459 = vsel %vm1435, %v1457, %v1458
    %v1460 = vrot.slane %v1196, 3
    %v1461 = vsel %vm1435, %v1452, %v1460
    %v1462 = vrot.slane %v1197, 3
    %v1463 = vsel %vm1435, %v1455, %v1462
    %v1464 = vrot.slane %v1198, 3
    %v1465 = vsel %vm1435, %v1458, %v1464
    %1466 = vrot.lane.b32.xlu0 %v1438, 32
    %v1467 = vpop.permute.xlu0 %1466
    %1468 = vrot.lane.b32.xlu0 %v1441, 32
    %v1469 = vpop.permute.xlu0 %1468
    %1470 = vrot.lane.b32.xlu0 %v1444, 32
    %v1471 = vpop.permute.xlu0 %1470
    %1472 = vrot.lane.b32.xlu0 %v1446, 32
    %v1473 = vpop.permute.xlu0 %1472
    %1474 = vrot.lane.b32.xlu0 %v1448, 32
    %v1475 = vpop.permute.xlu0 %1474
    %1476 = vrot.lane.b32.xlu0 %v1450, 32
    %v1477 = vpop.permute.xlu0 %1476
    %1478 = vrot.lane.b32.xlu0 %v1453, 32
    %v1479 = vpop.permute.xlu0 %1478
    %1480 = vrot.lane.b32.xlu0 %v1456, 32
    %v1481 = vpop.permute.xlu0 %1480
    %1482 = vrot.lane.b32.xlu0 %v1459, 32
    %v1483 = vpop.permute.xlu0 %1482
    %1484 = vrot.lane.b32.xlu0 %v1461, 32
    %v1485 = vpop.permute.xlu0 %1484
    %1486 = vrot.lane.b32.xlu0 %v1463, 32
    %v1487 = vpop.permute.xlu0 %1486
    %1488 = vrot.lane.b32.xlu0 %v1465, 32
    %v1489 = vpop.permute.xlu0 %1488
    %v1490 = vsel %vm920, %v1467, %v1469
    %v1491 = vsel %vm920, %v1469, %v1471
    %v1492 = vsel %vm920, %v1473, %v1475
    %v1493 = vsel %vm920, %v1475, %v1477
    %v1494 = vsel %vm920, %v1479, %v1481
    %v1495 = vsel %vm920, %v1481, %v1483
    %v1496 = vsel %vm920, %v1485, %v1487
    %v1497 = vsel %vm920, %v1487, %v1489
    %vm1522 = vcmask 1043456
    %v1523 = vrot.slane %v1199, 4
    %v1524 = vrot.slane %v1154, 4
    %v1525 = vsel %vm1522, %v1523, %v1524
    %v1526 = vrot.slane %v1200, 4
    %v1527 = vrot.slane %v1155, 4
    %v1528 = vsel %vm1522, %v1526, %v1527
    %v1529 = vrot.slane %v1201, 4
    %v1530 = vrot.slane %v1156, 4
    %v1531 = vsel %vm1522, %v1529, %v1530
    %v1532 = vrot.slane %v1202, 4
    %v1533 = vsel %vm1522, %v1524, %v1532
    %v1534 = vrot.slane %v1203, 4
    %v1535 = vsel %vm1522, %v1527, %v1534
    %v1536 = vrot.slane %v1204, 4
    %v1537 = vsel %vm1522, %v1530, %v1536
    %v1538 = vrot.slane %v1205, 4
    %v1539 = vrot.slane %v1160, 4
    %v1540 = vsel %vm1522, %v1538, %v1539
    %v1541 = vrot.slane %v1206, 4
    %v1542 = vrot.slane %v1161, 4
    %v1543 = vsel %vm1522, %v1541, %v1542
    %v1544 = vrot.slane %v1207, 4
    %v1545 = vrot.slane %v1162, 4
    %v1546 = vsel %vm1522, %v1544, %v1545
    %v1547 = vrot.slane %v1208, 4
    %v1548 = vsel %vm1522, %v1539, %v1547
    %v1549 = vrot.slane %v1209, 4
    %v1550 = vsel %vm1522, %v1542, %v1549
    %v1551 = vrot.slane %v1210, 4
    %v1552 = vsel %vm1522, %v1545, %v1551
    %v1577 = vrot.slane %v1211, 5
    %v1578 = vrot.slane %v1154, 5
    %v1579 = vsel %vm1069, %v1577, %v1578
    %v1580 = vrot.slane %v1212, 5
    %v1581 = vrot.slane %v1155, 5
    %v1582 = vsel %vm1069, %v1580, %v1581
    %v1583 = vrot.slane %v1213, 5
    %v1584 = vrot.slane %v1156, 5
    %v1585 = vsel %vm1069, %v1583, %v1584
    %v1586 = vrot.slane %v1214, 5
    %v1587 = vsel %vm1069, %v1578, %v1586
    %v1588 = vrot.slane %v1215, 5
    %v1589 = vsel %vm1069, %v1581, %v1588
    %v1590 = vrot.slane %v1216, 5
    %v1591 = vsel %vm1069, %v1584, %v1590
    %v1592 = vrot.slane %v1217, 5
    %v1593 = vrot.slane %v1160, 5
    %v1594 = vsel %vm1069, %v1592, %v1593
    %v1595 = vrot.slane %v1218, 5
    %v1596 = vrot.slane %v1161, 5
    %v1597 = vsel %vm1069, %v1595, %v1596
    %v1598 = vrot.slane %v1219, 5
    %v1599 = vrot.slane %v1162, 5
    %v1600 = vsel %vm1069, %v1598, %v1599
    %v1601 = vrot.slane %v1220, 5
    %v1602 = vsel %vm1069, %v1593, %v1601
    %v1603 = vrot.slane %v1221, 5
    %v1604 = vsel %vm1069, %v1596, %v1603
    %v1605 = vrot.slane %v1222, 5
    %v1606 = vsel %vm1069, %v1599, %v1605
    %1607 = vrot.lane.b32.xlu0 %v1579, 96
    %v1608 = vpop.permute.xlu0 %1607
    %1609 = vrot.lane.b32.xlu0 %v1582, 96
    %v1610 = vpop.permute.xlu0 %1609
    %1611 = vrot.lane.b32.xlu0 %v1585, 96
    %v1612 = vpop.permute.xlu0 %1611
    %1613 = vrot.lane.b32.xlu0 %v1587, 96
    %v1614 = vpop.permute.xlu0 %1613
    %1615 = vrot.lane.b32.xlu0 %v1589, 96
    %v1616 = vpop.permute.xlu0 %1615
    %1617 = vrot.lane.b32.xlu0 %v1591, 96
    %v1618 = vpop.permute.xlu0 %1617
    %1619 = vrot.lane.b32.xlu0 %v1594, 96
    %v1620 = vpop.permute.xlu0 %1619
    %1621 = vrot.lane.b32.xlu0 %v1597, 96
    %v1622 = vpop.permute.xlu0 %1621
    %1623 = vrot.lane.b32.xlu0 %v1600, 96
    %v1624 = vpop.permute.xlu0 %1623
    %1625 = vrot.lane.b32.xlu0 %v1602, 96
    %v1626 = vpop.permute.xlu0 %1625
    %1627 = vrot.lane.b32.xlu0 %v1604, 96
    %v1628 = vpop.permute.xlu0 %1627
    %1629 = vrot.lane.b32.xlu0 %v1606, 96
    %v1630 = vpop.permute.xlu0 %1629
    %v1631 = vsel %vm927, %v1608, %v1610
    %v1632 = vsel %vm927, %v1610, %v1612
    %v1633 = vsel %vm927, %v1614, %v1616
    %v1634 = vsel %vm927, %v1616, %v1618
    %v1635 = vsel %vm927, %v1620, %v1622
    %v1636 = vsel %vm927, %v1622, %v1624
    %v1637 = vsel %vm927, %v1626, %v1628
    %v1638 = vsel %vm927, %v1628, %v1630
    %v1667 = vrot.slane %v1223, 6
    %v1668 = vrot.slane %v1154, 6
    %v1669 = vsel %vm559, %v1667, %v1668
    %v1670 = vrot.slane %v1224, 6
    %v1671 = vrot.slane %v1155, 6
    %v1672 = vsel %vm559, %v1670, %v1671
    %v1673 = vrot.slane %v1225, 6
    %v1674 = vrot.slane %v1156, 6
    %v1675 = vsel %vm559, %v1673, %v1674
    %v1676 = vrot.slane %v1226, 6
    %v1677 = vsel %vm559, %v1668, %v1676
    %v1678 = vrot.slane %v1227, 6
    %v1679 = vsel %vm559, %v1671, %v1678
    %v1680 = vrot.slane %v1228, 6
    %v1681 = vsel %vm559, %v1674, %v1680
    %v1682 = vrot.slane %v1229, 6
    %v1683 = vrot.slane %v1160, 6
    %v1684 = vsel %vm559, %v1682, %v1683
    %v1685 = vrot.slane %v1230, 6
    %v1686 = vrot.slane %v1161, 6
    %v1687 = vsel %vm559, %v1685, %v1686
    %v1688 = vrot.slane %v1231, 6
    %v1689 = vrot.slane %v1162, 6
    %v1690 = vsel %vm559, %v1688, %v1689
    %v1691 = vrot.slane %v1232, 6
    %v1692 = vsel %vm559, %v1683, %v1691
    %v1693 = vrot.slane %v1233, 6
    %v1694 = vsel %vm559, %v1686, %v1693
    %v1695 = vrot.slane %v1234, 6
    %v1696 = vsel %vm559, %v1689, %v1695
    %1697 = vrot.lane.b32.xlu0 %v1669, 64
    %v1698 = vpop.permute.xlu0 %1697
    %1699 = vrot.lane.b32.xlu0 %v1672, 64
    %v1700 = vpop.permute.xlu0 %1699
    %1701 = vrot.lane.b32.xlu0 %v1675, 64
    %v1702 = vpop.permute.xlu0 %1701
    %1703 = vrot.lane.b32.xlu0 %v1677, 64
    %v1704 = vpop.permute.xlu0 %1703
    %1705 = vrot.lane.b32.xlu0 %v1679, 64
    %v1706 = vpop.permute.xlu0 %1705
    %1707 = vrot.lane.b32.xlu0 %v1681, 64
    %v1708 = vpop.permute.xlu0 %1707
    %1709 = vrot.lane.b32.xlu0 %v1684, 64
    %v1710 = vpop.permute.xlu0 %1709
    %1711 = vrot.lane.b32.xlu0 %v1687, 64
    %v1712 = vpop.permute.xlu0 %1711
    %1713 = vrot.lane.b32.xlu0 %v1690, 64
    %v1714 = vpop.permute.xlu0 %1713
    %1715 = vrot.lane.b32.xlu0 %v1692, 64
    %v1716 = vpop.permute.xlu0 %1715
    %1717 = vrot.lane.b32.xlu0 %v1694, 64
    %v1718 = vpop.permute.xlu0 %1717
    %1719 = vrot.lane.b32.xlu0 %v1696, 64
    %v1720 = vpop.permute.xlu0 %1719
    %v1721 = vsel %vm923, %v1698, %v1700
    %v1722 = vsel %vm923, %v1700, %v1702
    %v1723 = vsel %vm923, %v1704, %v1706
    %v1724 = vsel %vm923, %v1706, %v1708
    %v1725 = vsel %vm923, %v1710, %v1712
    %v1726 = vsel %vm923, %v1712, %v1714
    %v1727 = vsel %vm923, %v1716, %v1718
    %v1728 = vsel %vm923, %v1718, %v1720
    %v1745 = vsel %vm927, %v1153, %v1285
    %v1746 = vsel %vm927, %v1156, %v1291
    %v1747 = vsel %vm927, %v1159, %v1297
    %v1748 = vsel %vm927, %v1162, %v1303
    %v1749 = vsel %vm923, %v1289, %v1376
    %v1750 = vsel %vm923, %v1295, %v1382
    %v1751 = vsel %vm923, %v1301, %v1388
    %v1752 = vsel %vm923, %v1307, %v1394
    %v1753 = vsel %vm920, %v1380, %v1467
    %v1754 = vsel %vm920, %v1386, %v1473
    %v1755 = vsel %vm920, %v1392, %v1479
    %v1756 = vsel %vm920, %v1398, %v1485
    %v1757 = vsel %vm927, %v1531, %v1608
    %v1758 = vsel %vm927, %v1537, %v1614
    %v1759 = vsel %vm927, %v1546, %v1620
    %v1760 = vsel %vm927, %v1552, %v1626
    %v1761 = vsel %vm923, %v1612, %v1698
    %v1762 = vsel %vm923, %v1618, %v1704
    %v1763 = vsel %vm923, %v1624, %v1710
    %v1764 = vsel %vm923, %v1630, %v1716
    %v1765 = vpack.c.bf16 %v1154, %v1151
    %v1766 = vpack.c.bf16 %v1155, %v1152
    %v1767 = vpack.c.bf16 %v1746, %v1745
    %v1768 = vpack.c.bf16 %v1310, %v1308
    %v1769 = vpack.c.bf16 %v1311, %v1309
    %v1770 = vpack.c.bf16 %v1750, %v1749
    %v1771 = vpack.c.bf16 %v1401, %v1399
    %v1772 = vpack.c.bf16 %v1402, %v1400
    %v1773 = vpack.c.bf16 %v1754, %v1753
    %v1774 = vpack.c.bf16 %v1492, %v1490
    %v1775 = vpack.c.bf16 %v1493, %v1491
    %v1776 = vpack.c.bf16 %v1533, %v1525
    %v1777 = vpack.c.bf16 %v1535, %v1528
    %v1778 = vpack.c.bf16 %v1758, %v1757
    %v1779 = vpack.c.bf16 %v1633, %v1631
    %v1780 = vpack.c.bf16 %v1634, %v1632
    %v1781 = vpack.c.bf16 %v1762, %v1761
    %v1782 = vpack.c.bf16 %v1723, %v1721
    %v1783 = vpack.c.bf16 %v1724, %v1722
    %v1784 = vpack.c.bf16 %v1708, %v1702
    %v1785 = vpack.c.bf16 %v1160, %v1157
    %v1786 = vpack.c.bf16 %v1161, %v1158
    %v1787 = vpack.c.bf16 %v1748, %v1747
    %v1788 = vpack.c.bf16 %v1314, %v1312
    %v1789 = vpack.c.bf16 %v1315, %v1313
    %v1790 = vpack.c.bf16 %v1752, %v1751
    %v1791 = vpack.c.bf16 %v1405, %v1403
    %v1792 = vpack.c.bf16 %v1406, %v1404
    %v1793 = vpack.c.bf16 %v1756, %v1755
    %v1794 = vpack.c.bf16 %v1496, %v1494
    %v1795 = vpack.c.bf16 %v1497, %v1495
    %v1796 = vpack.c.bf16 %v1548, %v1540
    %v1797 = vpack.c.bf16 %v1550, %v1543
    %v1798 = vpack.c.bf16 %v1760, %v1759
    %v1799 = vpack.c.bf16 %v1637, %v1635
    %v1800 = vpack.c.bf16 %v1638, %v1636
    %v1801 = vpack.c.bf16 %v1764, %v1763
    %v1802 = vpack.c.bf16 %v1727, %v1725
    %v1803 = vpack.c.bf16 %v1728, %v1726
    %v1804 = vpack.c.bf16 %v1720, %v1714
    %v1805 = vld [vmem:[#allocation12] sm:$0xff]
    %v1806 = vld [vmem:[#allocation12 + $0x8] sm:$0xff]
    %v1807 = vld [vmem:[#allocation12 + $0x10] sm:$0xff]
    %v1808 = vld [vmem:[#allocation12 + $0x18] sm:$0xff]
    %v1809 = vld [vmem:[#allocation12 + $0x20] sm:$0xff]
    %v1810 = vld [vmem:[#allocation12 + $0x28] sm:$0xff]
    %v1811 = vld [vmem:[#allocation12 + $0x30] sm:$0xff]
    %v1812 = vld [vmem:[#allocation12 + $0x38] sm:$0xff]
    %v1813 = vld [vmem:[#allocation12 + $0x40] sm:$0xff]
    %v1814 = vld [vmem:[#allocation12 + $0x48] sm:$0xff]
    %v1815 = vld [vmem:[#allocation12 + $0x50] sm:$0xff]
    %v1816 = vld [vmem:[#allocation12 + $0x58] sm:$0xff]
    %v1817 = vld [vmem:[#allocation12 + $0x60] sm:$0xff]
    %v1818 = vld [vmem:[#allocation12 + $0x68] sm:$0xff]
    %v1819 = vld [vmem:[#allocation12 + $0x70] sm:$0xff]
    %v1820 = vld [vmem:[#allocation12 + $0x78] sm:$0xff]
    %v1821 = vld [vmem:[#allocation12 + $0x80] sm:$0xff]
    %v1822 = vld [vmem:[#allocation12 + $0x88] sm:$0xff]
    %v1823 = vld [vmem:[#allocation12 + $0x90] sm:$0xff]
    %v1824 = vld [vmem:[#allocation12 + $0x98] sm:$0xff]
    %v1825 = vld [vmem:[#allocation12 + $0xa0] sm:$0xff]
    %v1826 = vld [vmem:[#allocation12 + $0xa8] sm:$0xff]
    %v1827 = vld [vmem:[#allocation12 + $0xb0] sm:$0xff]
    %v1828 = vld [vmem:[#allocation12 + $0xb8] sm:$0xff]
    %v1829 = vld [vmem:[#allocation12 + $0xc0] sm:$0xff]
    %v1830 = vld [vmem:[#allocation12 + $0xc8] sm:$0xff]
    %v1831 = vld [vmem:[#allocation12 + $0xd0] sm:$0xff]
    %v1832 = vld [vmem:[#allocation12 + $0xd8] sm:$0xff]
    %v1833 = vld [vmem:[#allocation12 + $0xe0] sm:$0xff]
    %v1834 = vld [vmem:[#allocation12 + $0xe8] sm:$0xff]
    %v1835 = vld [vmem:[#allocation12 + $0xf0] sm:$0xff]
    %v1836 = vld [vmem:[#allocation12 + $0xf8] sm:$0xff]
    %v1837 = vld [vmem:[#allocation12 + $0x100] sm:$0xff]
    %v1838 = vld [vmem:[#allocation12 + $0x108] sm:$0xff]
    %v1839 = vld [vmem:[#allocation12 + $0x110] sm:$0xff]
    %v1840 = vld [vmem:[#allocation12 + $0x118] sm:$0xff]
    %v1841 = vld [vmem:[#allocation12 + $0x120] sm:$0xff]
    %v1842 = vld [vmem:[#allocation12 + $0x128] sm:$0xff]
    %v1843 = vld [vmem:[#allocation12 + $0x130] sm:$0xff]
    %v1844 = vld [vmem:[#allocation12 + $0x138] sm:$0xff]
    %v1845 = vld [vmem:[#allocation12 + $0x140] sm:$0xff]
    %v1846 = vld [vmem:[#allocation12 + $0x148] sm:$0xff]
    %v1847 = vld [vmem:[#allocation12 + $0x150] sm:$0xff]
    %v1848 = vld [vmem:[#allocation12 + $0x158] sm:$0xff]
    %v1849 = vld [vmem:[#allocation12 + $0x160] sm:$0xff]
    %v1850 = vld [vmem:[#allocation12 + $0x168] sm:$0xff]
    %v1851 = vld [vmem:[#allocation12 + $0x170] sm:$0xff]
    %v1852 = vld [vmem:[#allocation12 + $0x178] sm:$0xff]
    %v1853 = vld [vmem:[#allocation12 + $0x180] sm:$0xff]
    %v1854 = vld [vmem:[#allocation12 + $0x188] sm:$0xff]
    %v1855 = vld [vmem:[#allocation12 + $0x190] sm:$0xff]
    %v1856 = vld [vmem:[#allocation12 + $0x198] sm:$0xff]
    %v1857 = vld [vmem:[#allocation12 + $0x1a0] sm:$0xff]
    %v1858 = vld [vmem:[#allocation12 + $0x1a8] sm:$0xff]
    %v1859 = vld [vmem:[#allocation12 + $0x1b0] sm:$0xff]
    %v1860 = vld [vmem:[#allocation12 + $0x1b8] sm:$0xff]
    %v1861 = vld [vmem:[#allocation12 + $0x1c0] sm:$0xff]
    %v1862 = vld [vmem:[#allocation12 + $0x1c8] sm:$0xff]
    %v1863 = vld [vmem:[#allocation12 + $0x1d0] sm:$0xff]
    %v1864 = vld [vmem:[#allocation12 + $0x1d8] sm:$0xff]
    %v1865 = vld [vmem:[#allocation12 + $0x1e0] sm:$0xff]
    %v1866 = vld [vmem:[#allocation12 + $0x1e8] sm:$0xff]
    %v1867 = vld [vmem:[#allocation12 + $0x1f0] sm:$0xff]
    %v1868 = vld [vmem:[#allocation12 + $0x1f8] sm:$0xff]
    %v1869 = vld [vmem:[#allocation12 + $0x200] sm:$0xff]
    %v1870 = vld [vmem:[#allocation12 + $0x208] sm:$0xff]
    %v1871 = vld [vmem:[#allocation12 + $0x210] sm:$0xff]
    %v1872 = vld [vmem:[#allocation12 + $0x218] sm:$0xff]
    %v1873 = vld [vmem:[#allocation12 + $0x220] sm:$0xff]
    %v1874 = vld [vmem:[#allocation12 + $0x228] sm:$0xff]
    %v1875 = vld [vmem:[#allocation12 + $0x230] sm:$0xff]
    %v1876 = vld [vmem:[#allocation12 + $0x238] sm:$0xff]
    %v1877 = vld [vmem:[#allocation12 + $0x240] sm:$0xff]
    %v1878 = vld [vmem:[#allocation12 + $0x248] sm:$0xff]
    %v1879 = vld [vmem:[#allocation12 + $0x250] sm:$0xff]
    %v1880 = vld [vmem:[#allocation12 + $0x258] sm:$0xff]
    %v1881 = vld [vmem:[#allocation12 + $0x260] sm:$0xff]
    %v1882 = vld [vmem:[#allocation12 + $0x268] sm:$0xff]
    %v1883 = vld [vmem:[#allocation12 + $0x270] sm:$0xff]
    %v1884 = vld [vmem:[#allocation12 + $0x278] sm:$0xff]
    %v1885 = vld [vmem:[#allocation12 + $0x280] sm:$0xff]
    %v1886 = vld [vmem:[#allocation12 + $0x288] sm:$0xff]
    %v1887 = vld [vmem:[#allocation12 + $0x290] sm:$0xff]
    %v1888 = vld [vmem:[#allocation12 + $0x298] sm:$0xff]
    %v1889 = vld [vmem:[#allocation12 + $0x2a0] sm:$0xff]
    %v1890 = vld [vmem:[#allocation12 + $0x2a8] sm:$0xff]
    %v1891 = vld [vmem:[#allocation12 + $0x2b0] sm:$0xff]
    %v1892 = vld [vmem:[#allocation12 + $0x2b8] sm:$0xff]
    %v1893 = vld [vmem:[#allocation12 + $0x2c0] sm:$0xff]
    %v1894 = vld [vmem:[#allocation12 + $0x2c8] sm:$0xff]
    %v1895 = vld [vmem:[#allocation12 + $0x2d0] sm:$0xff]
    %v1896 = vld [vmem:[#allocation12 + $0x2d8] sm:$0xff]
    %v1897 = vld [vmem:[#allocation12 + $0x2e0] sm:$0xff]
    %v1898 = vld [vmem:[#allocation12 + $0x2e8] sm:$0xff]
    %v1899 = vld [vmem:[#allocation12 + $0x2f0] sm:$0xff]
    %v1900 = vld [vmem:[#allocation12 + $0x2f8] sm:$0xff]
    %v1901 = vld [vmem:[#allocation12 + $0x300] sm:$0xff]
    %v1902 = vld [vmem:[#allocation12 + $0x308] sm:$0xff]
    %v1903 = vld [vmem:[#allocation12 + $0x310] sm:$0xff]
    %v1904 = vld [vmem:[#allocation12 + $0x318] sm:$0xff]
    %v1905 = vld [vmem:[#allocation12 + $0x320] sm:$0xff]
    %v1906 = vld [vmem:[#allocation12 + $0x328] sm:$0xff]
    %v1907 = vld [vmem:[#allocation12 + $0x330] sm:$0xff]
    %v1908 = vld [vmem:[#allocation12 + $0x338] sm:$0xff]
    %v1909 = vld [vmem:[#allocation12 + $0x340] sm:$0xff]
    %v1910 = vld [vmem:[#allocation12 + $0x348] sm:$0xff]
    %v1911 = vld [vmem:[#allocation12 + $0x350] sm:$0xff]
    %v1912 = vld [vmem:[#allocation12 + $0x358] sm:$0xff]
    %v1913 = vld [vmem:[#allocation12 + $0x360] sm:$0xff]
    %v1914 = vld [vmem:[#allocation12 + $0x368] sm:$0xff]
    %v1915 = vld [vmem:[#allocation12 + $0x370] sm:$0xff]
    %v1916 = vld [vmem:[#allocation12 + $0x378] sm:$0xff]
    %v1917 = vld [vmem:[#allocation12 + $0x380] sm:$0xff]
    %v1918 = vld [vmem:[#allocation12 + $0x388] sm:$0xff]
    %v1919 = vld [vmem:[#allocation12 + $0x390] sm:$0xff]
    %v1920 = vld [vmem:[#allocation12 + $0x398] sm:$0xff]
    %v1921 = vld [vmem:[#allocation12 + $0x3a0] sm:$0xff]
    %v1922 = vld [vmem:[#allocation12 + $0x3a8] sm:$0xff]
    %v1923 = vld [vmem:[#allocation12 + $0x3b0] sm:$0xff]
    %v1924 = vld [vmem:[#allocation12 + $0x3b8] sm:$0xff]
    %v1925 = vld [vmem:[#allocation12 + $0x3c0] sm:$0xff]
    %v1926 = vld [vmem:[#allocation12 + $0x3c8] sm:$0xff]
    %v1927 = vld [vmem:[#allocation12 + $0x3d0] sm:$0xff]
    %v1928 = vld [vmem:[#allocation12 + $0x3d8] sm:$0xff]
    %v1929 = vld [vmem:[#allocation12 + $0x3e0] sm:$0xff]
    %v1930 = vld [vmem:[#allocation12 + $0x3e8] sm:$0xff]
    %v1931 = vld [vmem:[#allocation12 + $0x3f0] sm:$0xff]
    %v1932 = vld [vmem:[#allocation12 + $0x3f8] sm:$0xff]
    %v1933 = vld [vmem:[#allocation12 + $0x400] sm:$0xff]
    %v1934 = vld [vmem:[#allocation12 + $0x408] sm:$0xff]
    %v1935 = vld [vmem:[#allocation12 + $0x410] sm:$0xff]
    %v1936 = vld [vmem:[#allocation12 + $0x418] sm:$0xff]
    %v1937 = vld [vmem:[#allocation12 + $0x420] sm:$0xff]
    %v1938 = vld [vmem:[#allocation12 + $0x428] sm:$0xff]
    %v1939 = vld [vmem:[#allocation12 + $0x430] sm:$0xff]
    %v1940 = vld [vmem:[#allocation12 + $0x438] sm:$0xff]
    %v1941 = vld [vmem:[#allocation12 + $0x440] sm:$0xff]
    %v1942 = vld [vmem:[#allocation12 + $0x448] sm:$0xff]
    %v1943 = vld [vmem:[#allocation12 + $0x450] sm:$0xff]
    %v1944 = vld [vmem:[#allocation12 + $0x458] sm:$0xff]
    %v1945 = vld [vmem:[#allocation12 + $0x460] sm:$0xff]
    %v1946 = vld [vmem:[#allocation12 + $0x468] sm:$0xff]
    %v1947 = vld [vmem:[#allocation12 + $0x470] sm:$0xff]
    %v1948 = vld [vmem:[#allocation12 + $0x478] sm:$0xff]
    %v1949 = vld [vmem:[#allocation12 + $0x480] sm:$0xff]
    %v1950 = vld [vmem:[#allocation12 + $0x488] sm:$0xff]
    %v1951 = vld [vmem:[#allocation12 + $0x490] sm:$0xff]
    %v1952 = vld [vmem:[#allocation12 + $0x498] sm:$0xff]
    %v1953 = vld [vmem:[#allocation12 + $0x4a0] sm:$0xff]
    %v1954 = vld [vmem:[#allocation12 + $0x4a8] sm:$0xff]
    %v1955 = vld [vmem:[#allocation12 + $0x4b0] sm:$0xff]
    %v1956 = vld [vmem:[#allocation12 + $0x4b8] sm:$0xff]
    %v1957 = vld [vmem:[#allocation12 + $0x4c0] sm:$0xff]
    %v1958 = vld [vmem:[#allocation12 + $0x4c8] sm:$0xff]
    %v1959 = vld [vmem:[#allocation12 + $0x4d0] sm:$0xff]
    %v1960 = vld [vmem:[#allocation12 + $0x4d8] sm:$0xff]
    %v1961 = vld [vmem:[#allocation12 + $0x4e0] sm:$0xff]
    %v1962 = vld [vmem:[#allocation12 + $0x4e8] sm:$0xff]
    %v1963 = vld [vmem:[#allocation12 + $0x4f0] sm:$0xff]
    %v1964 = vld [vmem:[#allocation12 + $0x4f8] sm:$0xff]
    %v1965 = vld [vmem:[#allocation12 + $0x500] sm:$0xff]
    %v1966 = vld [vmem:[#allocation12 + $0x508] sm:$0xff]
    %v1967 = vld [vmem:[#allocation12 + $0x510] sm:$0xff]
    %v1968 = vld [vmem:[#allocation12 + $0x518] sm:$0xff]
    %v1969 = vld [vmem:[#allocation12 + $0x520] sm:$0xff]
    %v1970 = vld [vmem:[#allocation12 + $0x528] sm:$0xff]
    %v1971 = vld [vmem:[#allocation12 + $0x530] sm:$0xff]
    %v1972 = vld [vmem:[#allocation12 + $0x538] sm:$0xff]
    %v1973 = vld [vmem:[#allocation12 + $0x540] sm:$0xff]
    %v1974 = vld [vmem:[#allocation12 + $0x548] sm:$0xff]
    %v1975 = vld [vmem:[#allocation12 + $0x550] sm:$0xff]
    %v1976 = vld [vmem:[#allocation12 + $0x558] sm:$0xff]
    %v1977 = vld [vmem:[#allocation12 + $0x560] sm:$0xff]
    %v1978 = vld [vmem:[#allocation12 + $0x568] sm:$0xff]
    %v1979 = vld [vmem:[#allocation12 + $0x570] sm:$0xff]
    %v1980 = vld [vmem:[#allocation12 + $0x578] sm:$0xff]
    %v1981 = vld [vmem:[#allocation12 + $0x580] sm:$0xff]
    %v1982 = vld [vmem:[#allocation12 + $0x588] sm:$0xff]
    %v1983 = vld [vmem:[#allocation12 + $0x590] sm:$0xff]
    %v1984 = vld [vmem:[#allocation12 + $0x598] sm:$0xff]
    %v1985 = vld [vmem:[#allocation12 + $0x5a0] sm:$0xff]
    %v1986 = vld [vmem:[#allocation12 + $0x5a8] sm:$0xff]
    %v1987 = vld [vmem:[#allocation12 + $0x5b0] sm:$0xff]
    %v1988 = vld [vmem:[#allocation12 + $0x5b8] sm:$0xff]
    %v1989 = vld [vmem:[#allocation12 + $0x5c0] sm:$0xff]
    %v1990 = vld [vmem:[#allocation12 + $0x5c8] sm:$0xff]
    %v1991 = vld [vmem:[#allocation12 + $0x5d0] sm:$0xff]
    %v1992 = vld [vmem:[#allocation12 + $0x5d8] sm:$0xff]
    %v1993 = vld [vmem:[#allocation12 + $0x5e0] sm:$0xff]
    %v1994 = vld [vmem:[#allocation12 + $0x5e8] sm:$0xff]
    %v1995 = vld [vmem:[#allocation12 + $0x5f0] sm:$0xff]
    %v1996 = vld [vmem:[#allocation12 + $0x5f8] sm:$0xff]
    %v1997 = vld [vmem:[#allocation12 + $0x600] sm:$0xff]
    %v1998 = vld [vmem:[#allocation12 + $0x608] sm:$0xff]
    %v1999 = vld [vmem:[#allocation12 + $0x610] sm:$0xff]
    %v2000 = vld [vmem:[#allocation12 + $0x618] sm:$0xff]
    %v2001 = vld [vmem:[#allocation12 + $0x620] sm:$0xff]
    %v2002 = vld [vmem:[#allocation12 + $0x628] sm:$0xff]
    %v2003 = vld [vmem:[#allocation12 + $0x630] sm:$0xff]
    %v2004 = vld [vmem:[#allocation12 + $0x638] sm:$0xff]
    %v2005 = vld [vmem:[#allocation12 + $0x640] sm:$0xff]
    %v2006 = vld [vmem:[#allocation12 + $0x648] sm:$0xff]
    %v2007 = vld [vmem:[#allocation12 + $0x650] sm:$0xff]
    %v2008 = vld [vmem:[#allocation12 + $0x658] sm:$0xff]
    %v2009 = vld [vmem:[#allocation12 + $0x660] sm:$0xff]
    %v2010 = vld [vmem:[#allocation12 + $0x668] sm:$0xff]
    %v2011 = vld [vmem:[#allocation12 + $0x670] sm:$0xff]
    %v2012 = vld [vmem:[#allocation12 + $0x678] sm:$0xff]
    %v2013 = vld [vmem:[#allocation12 + $0x680] sm:$0xff]
    %v2014 = vld [vmem:[#allocation12 + $0x688] sm:$0xff]
    %v2015 = vld [vmem:[#allocation12 + $0x690] sm:$0xff]
    %v2016 = vld [vmem:[#allocation12 + $0x698] sm:$0xff]
    %v2017 = vld [vmem:[#allocation12 + $0x6a0] sm:$0xff]
    %v2018 = vld [vmem:[#allocation12 + $0x6a8] sm:$0xff]
    %v2019 = vld [vmem:[#allocation12 + $0x6b0] sm:$0xff]
    %v2020 = vld [vmem:[#allocation12 + $0x6b8] sm:$0xff]
    %v2021 = vld [vmem:[#allocation12 + $0x6c0] sm:$0xff]
    %v2022 = vld [vmem:[#allocation12 + $0x6c8] sm:$0xff]
    %v2023 = vld [vmem:[#allocation12 + $0x6d0] sm:$0xff]
    %v2024 = vld [vmem:[#allocation12 + $0x6d8] sm:$0xff]
    %v2025 = vld [vmem:[#allocation12 + $0x6e0] sm:$0xff]
    %v2026 = vld [vmem:[#allocation12 + $0x6e8] sm:$0xff]
    %v2027 = vld [vmem:[#allocation12 + $0x6f0] sm:$0xff]
    %v2028 = vld [vmem:[#allocation12 + $0x6f8] sm:$0xff]
    %v2029 = vld [vmem:[#allocation12 + $0x700] sm:$0xff]
    %v2030 = vld [vmem:[#allocation12 + $0x708] sm:$0xff]
    %v2031 = vld [vmem:[#allocation12 + $0x710] sm:$0xff]
    %v2032 = vld [vmem:[#allocation12 + $0x718] sm:$0xff]
    %v2033 = vld [vmem:[#allocation12 + $0x720] sm:$0xff]
    %v2034 = vld [vmem:[#allocation12 + $0x728] sm:$0xff]
    %v2035 = vld [vmem:[#allocation12 + $0x730] sm:$0xff]
    %v2036 = vld [vmem:[#allocation12 + $0x738] sm:$0xff]
    %v2037 = vld [vmem:[#allocation12 + $0x740] sm:$0xff]
    %v2038 = vld [vmem:[#allocation12 + $0x748] sm:$0xff]
    %v2039 = vld [vmem:[#allocation12 + $0x750] sm:$0xff]
    %v2040 = vld [vmem:[#allocation12 + $0x758] sm:$0xff]
    %v2041 = vld [vmem:[#allocation12 + $0x760] sm:$0xff]
    %v2042 = vld [vmem:[#allocation12 + $0x768] sm:$0xff]
    %v2043 = vld [vmem:[#allocation12 + $0x770] sm:$0xff]
    %v2044 = vld [vmem:[#allocation12 + $0x778] sm:$0xff]
    %v2045 = vld [vmem:[#allocation12 + $0x780] sm:$0xff]
    %v2046 = vld [vmem:[#allocation12 + $0x788] sm:$0xff]
    %v2047 = vld [vmem:[#allocation12 + $0x790] sm:$0xff]
    %v2048 = vld [vmem:[#allocation12 + $0x798] sm:$0xff]
    %v2049 = vld [vmem:[#allocation12 + $0x7a0] sm:$0xff]
    %v2050 = vld [vmem:[#allocation12 + $0x7a8] sm:$0xff]
    %v2051 = vld [vmem:[#allocation12 + $0x7b0] sm:$0xff]
    %v2052 = vld [vmem:[#allocation12 + $0x7b8] sm:$0xff]
    %v2053 = vld [vmem:[#allocation12 + $0x7c0] sm:$0xff]
    %v2054 = vld [vmem:[#allocation12 + $0x7c8] sm:$0xff]
    %v2055 = vld [vmem:[#allocation12 + $0x7d0] sm:$0xff]
    %v2056 = vld [vmem:[#allocation12 + $0x7d8] sm:$0xff]
    %v2057 = vld [vmem:[#allocation12 + $0x7e0] sm:$0xff]
    %v2058 = vld [vmem:[#allocation12 + $0x7e8] sm:$0xff]
    %v2059 = vld [vmem:[#allocation12 + $0x7f0] sm:$0xff]
    %v2060 = vld [vmem:[#allocation12 + $0x7f8] sm:$0xff]
    %v2061 = vld [vmem:[#allocation12 + $0x800] sm:$0xff]
    %v2062 = vld [vmem:[#allocation12 + $0x808] sm:$0xff]
    %v2063 = vld [vmem:[#allocation12 + $0x810] sm:$0xff]
    %v2064 = vld [vmem:[#allocation12 + $0x818] sm:$0xff]
    %v2065 = vld [vmem:[#allocation12 + $0x820] sm:$0xff]
    %v2066 = vld [vmem:[#allocation12 + $0x828] sm:$0xff]
    %v2067 = vld [vmem:[#allocation12 + $0x830] sm:$0xff]
    %v2068 = vld [vmem:[#allocation12 + $0x838] sm:$0xff]
    %v2069 = vld [vmem:[#allocation12 + $0x840] sm:$0xff]
    %v2070 = vld [vmem:[#allocation12 + $0x848] sm:$0xff]
    %v2071 = vld [vmem:[#allocation12 + $0x850] sm:$0xff]
    %v2072 = vld [vmem:[#allocation12 + $0x858] sm:$0xff]
    %v2073 = vld [vmem:[#allocation12 + $0x860] sm:$0xff]
    %v2074 = vld [vmem:[#allocation12 + $0x868] sm:$0xff]
    %v2075 = vld [vmem:[#allocation12 + $0x870] sm:$0xff]
    %v2076 = vld [vmem:[#allocation12 + $0x878] sm:$0xff]
    %v2077 = vld [vmem:[#allocation12 + $0x880] sm:$0xff]
    %v2078 = vld [vmem:[#allocation12 + $0x888] sm:$0xff]
    %v2079 = vld [vmem:[#allocation12 + $0x890] sm:$0xff]
    %v2080 = vld [vmem:[#allocation12 + $0x898] sm:$0xff]
    %v2081 = vld [vmem:[#allocation12 + $0x8a0] sm:$0xff]
    %v2082 = vld [vmem:[#allocation12 + $0x8a8] sm:$0xff]
    %v2083 = vld [vmem:[#allocation12 + $0x8b0] sm:$0xff]
    %v2084 = vld [vmem:[#allocation12 + $0x8b8] sm:$0xff]
    %v2085 = vld [vmem:[#allocation12 + $0x8c0] sm:$0xff]
    %v2086 = vld [vmem:[#allocation12 + $0x8c8] sm:$0xff]
    %v2087 = vld [vmem:[#allocation12 + $0x8d0] sm:$0xff]
    %v2088 = vld [vmem:[#allocation12 + $0x8d8] sm:$0xff]
    %v2089 = vld [vmem:[#allocation12 + $0x8e0] sm:$0xff]
    %v2090 = vld [vmem:[#allocation12 + $0x8e8] sm:$0xff]
    %v2091 = vld [vmem:[#allocation12 + $0x8f0] sm:$0xff]
    %v2092 = vld [vmem:[#allocation12 + $0x8f8] sm:$0xff]
    %v2093 = vld [vmem:[#allocation12 + $0x900] sm:$0xff]
    %v2094 = vld [vmem:[#allocation12 + $0x908] sm:$0xff]
    %v2095 = vld [vmem:[#allocation12 + $0x910] sm:$0xff]
    %v2096 = vld [vmem:[#allocation12 + $0x918] sm:$0xff]
    %v2097 = vld [vmem:[#allocation12 + $0x920] sm:$0xff]
    %v2098 = vld [vmem:[#allocation12 + $0x928] sm:$0xff]
    %v2099 = vld [vmem:[#allocation12 + $0x930] sm:$0xff]
    %v2100 = vld [vmem:[#allocation12 + $0x938] sm:$0xff]
    %v2101 = vld [vmem:[#allocation12 + $0x940] sm:$0xff]
    %v2102 = vld [vmem:[#allocation12 + $0x948] sm:$0xff]
    %v2103 = vld [vmem:[#allocation12 + $0x950] sm:$0xff]
    %v2104 = vld [vmem:[#allocation12 + $0x958] sm:$0xff]
    %v2105 = vld [vmem:[#allocation12 + $0x960] sm:$0xff]
    %v2106 = vld [vmem:[#allocation12 + $0x968] sm:$0xff]
    %v2107 = vld [vmem:[#allocation12 + $0x970] sm:$0xff]
    %v2108 = vld [vmem:[#allocation12 + $0x978] sm:$0xff]
    %v2109 = vld [vmem:[#allocation12 + $0x980] sm:$0xff]
    %v2110 = vld [vmem:[#allocation12 + $0x988] sm:$0xff]
    %v2111 = vld [vmem:[#allocation12 + $0x990] sm:$0xff]
    %v2112 = vld [vmem:[#allocation12 + $0x998] sm:$0xff]
    %v2421 = vunpack.c.l.b16 %v1805
    %v2422 = vunpack.c.h.b16 %v1805
    %v2423 = vunpack.c.l.b16 %v1806
    %v2424 = vunpack.c.h.b16 %v1806
    %v2425 = vunpack.c.l.b16 %v1807
    %v2426 = vunpack.c.h.b16 %v1807
    %v2427 = vunpack.c.l.b16 %v1808
    %v2428 = vunpack.c.h.b16 %v1808
    %v2429 = vunpack.c.l.b16 %v1809
    %v2430 = vunpack.c.h.b16 %v1809
    %v2431 = vunpack.c.l.b16 %v1810
    %v2432 = vunpack.c.h.b16 %v1810
    %v2433 = vunpack.c.l.b16 %v1811
    %v2434 = vunpack.c.h.b16 %v1811
    %v2435 = vunpack.c.l.b16 %v1812
    %v2436 = vunpack.c.h.b16 %v1812
    %v2437 = vunpack.c.l.b16 %v1813
    %v2438 = vunpack.c.h.b16 %v1813
    %v2439 = vunpack.c.l.b16 %v1814
    %v2440 = vunpack.c.h.b16 %v1814
    %v2441 = vunpack.c.l.b16 %v1815
    %v2442 = vunpack.c.h.b16 %v1815
    %v2443 = vunpack.c.l.b16 %v1816
    %v2444 = vunpack.c.h.b16 %v1816
    %v2445 = vunpack.c.l.b16 %v1817
    %v2446 = vunpack.c.h.b16 %v1817
    %v2447 = vunpack.c.l.b16 %v1818
    %v2448 = vunpack.c.h.b16 %v1818
    %v2449 = vunpack.c.l.b16 %v1819
    %v2450 = vunpack.c.h.b16 %v1819
    %v2451 = vunpack.c.l.b16 %v1820
    %v2452 = vunpack.c.h.b16 %v1820
    %v2453 = vunpack.c.l.b16 %v1821
    %v2454 = vunpack.c.h.b16 %v1821
    %v2455 = vunpack.c.l.b16 %v1822
    %v2456 = vunpack.c.h.b16 %v1822
    %v2457 = vunpack.c.l.b16 %v1823
    %v2458 = vunpack.c.h.b16 %v1823
    %v2459 = vunpack.c.l.b16 %v1824
    %v2460 = vunpack.c.h.b16 %v1824
    %v2461 = vunpack.c.l.b16 %v1825
    %v2462 = vunpack.c.h.b16 %v1825
    %v2463 = vunpack.c.l.b16 %v1826
    %v2464 = vunpack.c.h.b16 %v1826
    %v2465 = vunpack.c.l.b16 %v1827
    %v2466 = vunpack.c.h.b16 %v1827
    %v2467 = vunpack.c.l.b16 %v1828
    %v2468 = vunpack.c.h.b16 %v1828
    %v2469 = vunpack.c.l.b16 %v1829
    %v2470 = vunpack.c.h.b16 %v1829
    %v2471 = vunpack.c.l.b16 %v1830
    %v2472 = vunpack.c.h.b16 %v1830
    %v2473 = vunpack.c.l.b16 %v1831
    %v2474 = vunpack.c.h.b16 %v1831
    %v2475 = vunpack.c.l.b16 %v1832
    %v2476 = vunpack.c.h.b16 %v1832
    %v2477 = vunpack.c.l.b16 %v1833
    %v2478 = vunpack.c.h.b16 %v1833
    %v2479 = vunpack.c.l.b16 %v1834
    %v2480 = vunpack.c.h.b16 %v1834
    %v2481 = vunpack.c.l.b16 %v1835
    %v2482 = vunpack.c.h.b16 %v1835
    %v2483 = vunpack.c.l.b16 %v1836
    %v2484 = vunpack.c.h.b16 %v1836
    %v2485 = vunpack.c.l.b16 %v1837
    %v2486 = vunpack.c.h.b16 %v1837
    %v2487 = vunpack.c.l.b16 %v1838
    %v2488 = vunpack.c.h.b16 %v1838
    %v2489 = vunpack.c.l.b16 %v1839
    %v2490 = vunpack.c.h.b16 %v1839
    %v2491 = vunpack.c.l.b16 %v1840
    %v2492 = vunpack.c.h.b16 %v1840
    %v2493 = vunpack.c.l.b16 %v1841
    %v2494 = vunpack.c.h.b16 %v1841
    %v2495 = vunpack.c.l.b16 %v1842
    %v2496 = vunpack.c.h.b16 %v1842
    %v2497 = vunpack.c.l.b16 %v1843
    %v2498 = vunpack.c.h.b16 %v1843
    %v2499 = vunpack.c.l.b16 %v1844
    %v2500 = vunpack.c.h.b16 %v1844
    %v2501 = vunpack.c.l.b16 %v1845
    %v2502 = vunpack.c.h.b16 %v1845
    %v2503 = vunpack.c.l.b16 %v1846
    %v2504 = vunpack.c.h.b16 %v1846
    %v2505 = vunpack.c.l.b16 %v1847
    %v2506 = vunpack.c.h.b16 %v1847
    %v2507 = vunpack.c.l.b16 %v1848
    %v2508 = vunpack.c.h.b16 %v1848
    %v2509 = vunpack.c.l.b16 %v1849
    %v2510 = vunpack.c.h.b16 %v1849
    %v2511 = vunpack.c.l.b16 %v1850
    %v2512 = vunpack.c.h.b16 %v1850
    %v2513 = vunpack.c.l.b16 %v1851
    %v2514 = vunpack.c.h.b16 %v1851
    %v2515 = vunpack.c.l.b16 %v1852
    %v2516 = vunpack.c.h.b16 %v1852
    %v2517 = vunpack.c.l.b16 %v1853
    %v2518 = vunpack.c.h.b16 %v1853
    %v2519 = vunpack.c.l.b16 %v1854
    %v2520 = vunpack.c.h.b16 %v1854
    %v2521 = vunpack.c.l.b16 %v1855
    %v2522 = vunpack.c.h.b16 %v1855
    %v2523 = vunpack.c.l.b16 %v1856
    %v2524 = vunpack.c.h.b16 %v1856
    %v2525 = vunpack.c.l.b16 %v1857
    %v2526 = vunpack.c.h.b16 %v1857
    %v2527 = vunpack.c.l.b16 %v1858
    %v2528 = vunpack.c.h.b16 %v1858
    %v2529 = vunpack.c.l.b16 %v1859
    %v2530 = vunpack.c.h.b16 %v1859
    %v2531 = vunpack.c.l.b16 %v1860
    %v2532 = vunpack.c.h.b16 %v1860
    %v2533 = vunpack.c.l.b16 %v1861
    %v2534 = vunpack.c.h.b16 %v1861
    %v2535 = vunpack.c.l.b16 %v1862
    %v2536 = vunpack.c.h.b16 %v1862
    %v2537 = vunpack.c.l.b16 %v1863
    %v2538 = vunpack.c.h.b16 %v1863
    %v2539 = vunpack.c.l.b16 %v1864
    %v2540 = vunpack.c.h.b16 %v1864
    %v2541 = vunpack.c.l.b16 %v1865
    %v2542 = vunpack.c.h.b16 %v1865
    %v2543 = vunpack.c.l.b16 %v1866
    %v2544 = vunpack.c.h.b16 %v1866
    %v2545 = vunpack.c.l.b16 %v1867
    %v2546 = vunpack.c.h.b16 %v1867
    %v2547 = vunpack.c.l.b16 %v1868
    %v2548 = vunpack.c.h.b16 %v1868
    %v2549 = vunpack.c.l.b16 %v1869
    %v2550 = vunpack.c.h.b16 %v1869
    %v2551 = vunpack.c.l.b16 %v1870
    %v2552 = vunpack.c.h.b16 %v1870
    %v2553 = vunpack.c.l.b16 %v1871
    %v2554 = vunpack.c.h.b16 %v1871
    %v2555 = vunpack.c.l.b16 %v1872
    %v2556 = vunpack.c.h.b16 %v1872
    %v2557 = vunpack.c.l.b16 %v1873
    %v2558 = vunpack.c.h.b16 %v1873
    %v2559 = vunpack.c.l.b16 %v1874
    %v2560 = vunpack.c.h.b16 %v1874
    %v2561 = vunpack.c.l.b16 %v1875
    %v2562 = vunpack.c.h.b16 %v1875
    %v2563 = vunpack.c.l.b16 %v1876
    %v2564 = vunpack.c.h.b16 %v1876
    %v2565 = vunpack.c.l.b16 %v1877
    %v2566 = vunpack.c.h.b16 %v1877
    %v2567 = vunpack.c.l.b16 %v1878
    %v2568 = vunpack.c.h.b16 %v1878
    %v2569 = vunpack.c.l.b16 %v1879
    %v2570 = vunpack.c.h.b16 %v1879
    %v2571 = vunpack.c.l.b16 %v1880
    %v2572 = vunpack.c.h.b16 %v1880
    %v2573 = vunpack.c.l.b16 %v1881
    %v2574 = vunpack.c.h.b16 %v1881
    %v2575 = vunpack.c.l.b16 %v1882
    %v2576 = vunpack.c.h.b16 %v1882
    %v2577 = vunpack.c.l.b16 %v1883
    %v2578 = vunpack.c.h.b16 %v1883
    %v2579 = vunpack.c.l.b16 %v1884
    %v2580 = vunpack.c.h.b16 %v1884
    %v2581 = vunpack.c.l.b16 %v1885
    %v2582 = vunpack.c.h.b16 %v1885
    %v2583 = vunpack.c.l.b16 %v1886
    %v2584 = vunpack.c.h.b16 %v1886
    %v2585 = vunpack.c.l.b16 %v1887
    %v2586 = vunpack.c.h.b16 %v1887
    %v2587 = vunpack.c.l.b16 %v1888
    %v2588 = vunpack.c.h.b16 %v1888
    %v2589 = vunpack.c.l.b16 %v1889
    %v2590 = vunpack.c.h.b16 %v1889
    %v2591 = vunpack.c.l.b16 %v1890
    %v2592 = vunpack.c.h.b16 %v1890
    %v2593 = vunpack.c.l.b16 %v1891
    %v2594 = vunpack.c.h.b16 %v1891
    %v2595 = vunpack.c.l.b16 %v1892
    %v2596 = vunpack.c.h.b16 %v1892
    %v2597 = vunpack.c.l.b16 %v1893
    %v2598 = vunpack.c.h.b16 %v1893
    %v2599 = vunpack.c.l.b16 %v1894
    %v2600 = vunpack.c.h.b16 %v1894
    %v2601 = vunpack.c.l.b16 %v1895
    %v2602 = vunpack.c.h.b16 %v1895
    %v2603 = vunpack.c.l.b16 %v1896
    %v2604 = vunpack.c.h.b16 %v1896
    %v2605 = vunpack.c.l.b16 %v1897
    %v2606 = vunpack.c.h.b16 %v1897
    %v2607 = vunpack.c.l.b16 %v1898
    %v2608 = vunpack.c.h.b16 %v1898
    %v2609 = vunpack.c.l.b16 %v1899
    %v2610 = vunpack.c.h.b16 %v1899
    %v2611 = vunpack.c.l.b16 %v1900
    %v2612 = vunpack.c.h.b16 %v1900
    %v2613 = vunpack.c.l.b16 %v1901
    %v2614 = vunpack.c.h.b16 %v1901
    %v2615 = vunpack.c.l.b16 %v1902
    %v2616 = vunpack.c.h.b16 %v1902
    %v2617 = vunpack.c.l.b16 %v1903
    %v2618 = vunpack.c.h.b16 %v1903
    %v2619 = vunpack.c.l.b16 %v1904
    %v2620 = vunpack.c.h.b16 %v1904
    %v2621 = vunpack.c.l.b16 %v1905
    %v2622 = vunpack.c.h.b16 %v1905
    %v2623 = vunpack.c.l.b16 %v1906
    %v2624 = vunpack.c.h.b16 %v1906
    %v2625 = vunpack.c.l.b16 %v1907
    %v2626 = vunpack.c.h.b16 %v1907
    %v2627 = vunpack.c.l.b16 %v1908
    %v2628 = vunpack.c.h.b16 %v1908
    %v2629 = vunpack.c.l.b16 %v1909
    %v2630 = vunpack.c.h.b16 %v1909
    %v2631 = vunpack.c.l.b16 %v1910
    %v2632 = vunpack.c.h.b16 %v1910
    %v2633 = vunpack.c.l.b16 %v1911
    %v2634 = vunpack.c.h.b16 %v1911
    %v2635 = vunpack.c.l.b16 %v1912
    %v2636 = vunpack.c.h.b16 %v1912
    %v2637 = vunpack.c.l.b16 %v1913
    %v2638 = vunpack.c.h.b16 %v1913
    %v2639 = vunpack.c.l.b16 %v1914
    %v2640 = vunpack.c.h.b16 %v1914
    %v2641 = vunpack.c.l.b16 %v1915
    %v2642 = vunpack.c.h.b16 %v1915
    %v2643 = vunpack.c.l.b16 %v1916
    %v2644 = vunpack.c.h.b16 %v1916
    %v2645 = vunpack.c.l.b16 %v1917
    %v2646 = vunpack.c.h.b16 %v1917
    %v2647 = vunpack.c.l.b16 %v1918
    %v2648 = vunpack.c.h.b16 %v1918
    %v2649 = vunpack.c.l.b16 %v1919
    %v2650 = vunpack.c.h.b16 %v1919
    %v2651 = vunpack.c.l.b16 %v1920
    %v2652 = vunpack.c.h.b16 %v1920
    %v2653 = vunpack.c.l.b16 %v1921
    %v2654 = vunpack.c.h.b16 %v1921
    %v2655 = vunpack.c.l.b16 %v1922
    %v2656 = vunpack.c.h.b16 %v1922
    %v2657 = vunpack.c.l.b16 %v1923
    %v2658 = vunpack.c.h.b16 %v1923
    %v2659 = vunpack.c.l.b16 %v1924
    %v2660 = vunpack.c.h.b16 %v1924
    %v2661 = vunpack.c.l.b16 %v1925
    %v2662 = vunpack.c.h.b16 %v1925
    %v2663 = vunpack.c.l.b16 %v1926
    %v2664 = vunpack.c.h.b16 %v1926
    %v2665 = vunpack.c.l.b16 %v1927
    %v2666 = vunpack.c.h.b16 %v1927
    %v2667 = vunpack.c.l.b16 %v1928
    %v2668 = vunpack.c.h.b16 %v1928
    %v2669 = vunpack.c.l.b16 %v1929
    %v2670 = vunpack.c.h.b16 %v1929
    %v2671 = vunpack.c.l.b16 %v1930
    %v2672 = vunpack.c.h.b16 %v1930
    %v2673 = vunpack.c.l.b16 %v1931
    %v2674 = vunpack.c.h.b16 %v1931
    %v2675 = vunpack.c.l.b16 %v1932
    %v2676 = vunpack.c.h.b16 %v1932
    %v2677 = vunpack.c.l.b16 %v1933
    %v2678 = vunpack.c.h.b16 %v1933
    %v2679 = vunpack.c.l.b16 %v1934
    %v2680 = vunpack.c.h.b16 %v1934
    %v2681 = vunpack.c.l.b16 %v1935
    %v2682 = vunpack.c.h.b16 %v1935
    %v2683 = vunpack.c.l.b16 %v1936
    %v2684 = vunpack.c.h.b16 %v1936
    %v2685 = vunpack.c.l.b16 %v1937
    %v2686 = vunpack.c.h.b16 %v1937
    %v2687 = vunpack.c.l.b16 %v1938
    %v2688 = vunpack.c.h.b16 %v1938
    %v2689 = vunpack.c.l.b16 %v1939
    %v2690 = vunpack.c.h.b16 %v1939
    %v2691 = vunpack.c.l.b16 %v1940
    %v2692 = vunpack.c.h.b16 %v1940
    %v2693 = vunpack.c.l.b16 %v1941
    %v2694 = vunpack.c.h.b16 %v1941
    %v2695 = vunpack.c.l.b16 %v1942
    %v2696 = vunpack.c.h.b16 %v1942
    %v2697 = vunpack.c.l.b16 %v1943
    %v2698 = vunpack.c.h.b16 %v1943
    %v2699 = vunpack.c.l.b16 %v1944
    %v2700 = vunpack.c.h.b16 %v1944
    %v2701 = vunpack.c.l.b16 %v1945
    %v2702 = vunpack.c.h.b16 %v1945
    %v2703 = vunpack.c.l.b16 %v1946
    %v2704 = vunpack.c.h.b16 %v1946
    %v2705 = vunpack.c.l.b16 %v1947
    %v2706 = vunpack.c.h.b16 %v1947
    %v2707 = vunpack.c.l.b16 %v1948
    %v2708 = vunpack.c.h.b16 %v1948
    %v2709 = vunpack.c.l.b16 %v1949
    %v2710 = vunpack.c.h.b16 %v1949
    %v2711 = vunpack.c.l.b16 %v1950
    %v2712 = vunpack.c.h.b16 %v1950
    %v2713 = vunpack.c.l.b16 %v1951
    %v2714 = vunpack.c.h.b16 %v1951
    %v2715 = vunpack.c.l.b16 %v1952
    %v2716 = vunpack.c.h.b16 %v1952
    %v2717 = vunpack.c.l.b16 %v1953
    %v2718 = vunpack.c.h.b16 %v1953
    %v2719 = vunpack.c.l.b16 %v1954
    %v2720 = vunpack.c.h.b16 %v1954
    %v2721 = vunpack.c.l.b16 %v1955
    %v2722 = vunpack.c.h.b16 %v1955
    %v2723 = vunpack.c.l.b16 %v1956
    %v2724 = vunpack.c.h.b16 %v1956
    %v2725 = vunpack.c.l.b16 %v1957
    %v2726 = vunpack.c.h.b16 %v1957
    %v2727 = vunpack.c.l.b16 %v1958
    %v2728 = vunpack.c.h.b16 %v1958
    %v2729 = vunpack.c.l.b16 %v1959
    %v2730 = vunpack.c.h.b16 %v1959
    %v2731 = vunpack.c.l.b16 %v1960
    %v2732 = vunpack.c.h.b16 %v1960
    %v2733 = vunpack.c.l.b16 %v1961
    %v2734 = vunpack.c.h.b16 %v1961
    %v2735 = vunpack.c.l.b16 %v1962
    %v2736 = vunpack.c.h.b16 %v1962
    %v2737 = vunpack.c.l.b16 %v1963
    %v2738 = vunpack.c.h.b16 %v1963
    %v2739 = vunpack.c.l.b16 %v1964
    %v2740 = vunpack.c.h.b16 %v1964
    %v2741 = vunpack.c.l.b16 %v1965
    %v2742 = vunpack.c.h.b16 %v1965
    %v2743 = vunpack.c.l.b16 %v1966
    %v2744 = vunpack.c.h.b16 %v1966
    %v2745 = vunpack.c.l.b16 %v1967
    %v2746 = vunpack.c.h.b16 %v1967
    %v2747 = vunpack.c.l.b16 %v1968
    %v2748 = vunpack.c.h.b16 %v1968
    %v2749 = vunpack.c.l.b16 %v1969
    %v2750 = vunpack.c.h.b16 %v1969
    %v2751 = vunpack.c.l.b16 %v1970
    %v2752 = vunpack.c.h.b16 %v1970
    %v2753 = vunpack.c.l.b16 %v1971
    %v2754 = vunpack.c.h.b16 %v1971
    %v2755 = vunpack.c.l.b16 %v1972
    %v2756 = vunpack.c.h.b16 %v1972
    %v2757 = vunpack.c.l.b16 %v1973
    %v2758 = vunpack.c.h.b16 %v1973
    %v2759 = vunpack.c.l.b16 %v1974
    %v2760 = vunpack.c.h.b16 %v1974
    %v2761 = vunpack.c.l.b16 %v1975
    %v2762 = vunpack.c.h.b16 %v1975
    %v2763 = vunpack.c.l.b16 %v1976
    %v2764 = vunpack.c.h.b16 %v1976
    %v2765 = vunpack.c.l.b16 %v1977
    %v2766 = vunpack.c.h.b16 %v1977
    %v2767 = vunpack.c.l.b16 %v1978
    %v2768 = vunpack.c.h.b16 %v1978
    %v2769 = vunpack.c.l.b16 %v1979
    %v2770 = vunpack.c.h.b16 %v1979
    %v2771 = vunpack.c.l.b16 %v1980
    %v2772 = vunpack.c.h.b16 %v1980
    %v2773 = vunpack.c.l.b16 %v1981
    %v2774 = vunpack.c.h.b16 %v1981
    %v2775 = vunpack.c.l.b16 %v1982
    %v2776 = vunpack.c.h.b16 %v1982
    %v2777 = vunpack.c.l.b16 %v1983
    %v2778 = vunpack.c.h.b16 %v1983
    %v2779 = vunpack.c.l.b16 %v1984
    %v2780 = vunpack.c.h.b16 %v1984
    %v2781 = vunpack.c.l.b16 %v1985
    %v2782 = vunpack.c.h.b16 %v1985
    %v2783 = vunpack.c.l.b16 %v1986
    %v2784 = vunpack.c.h.b16 %v1986
    %v2785 = vunpack.c.l.b16 %v1987
    %v2786 = vunpack.c.h.b16 %v1987
    %v2787 = vunpack.c.l.b16 %v1988
    %v2788 = vunpack.c.h.b16 %v1988
    %v2789 = vunpack.c.l.b16 %v1989
    %v2790 = vunpack.c.h.b16 %v1989
    %v2791 = vunpack.c.l.b16 %v1990
    %v2792 = vunpack.c.h.b16 %v1990
    %v2793 = vunpack.c.l.b16 %v1991
    %v2794 = vunpack.c.h.b16 %v1991
    %v2795 = vunpack.c.l.b16 %v1992
    %v2796 = vunpack.c.h.b16 %v1992
    %v2797 = vunpack.c.l.b16 %v1993
    %v2798 = vunpack.c.h.b16 %v1993
    %v2799 = vunpack.c.l.b16 %v1994
    %v2800 = vunpack.c.h.b16 %v1994
    %v2801 = vunpack.c.l.b16 %v1995
    %v2802 = vunpack.c.h.b16 %v1995
    %v2803 = vunpack.c.l.b16 %v1996
    %v2804 = vunpack.c.h.b16 %v1996
    %v2805 = vunpack.c.l.b16 %v1997
    %v2806 = vunpack.c.h.b16 %v1997
    %v2807 = vunpack.c.l.b16 %v1998
    %v2808 = vunpack.c.h.b16 %v1998
    %v2809 = vunpack.c.l.b16 %v1999
    %v2810 = vunpack.c.h.b16 %v1999
    %v2811 = vunpack.c.l.b16 %v2000
    %v2812 = vunpack.c.h.b16 %v2000
    %v2813 = vunpack.c.l.b16 %v2001
    %v2814 = vunpack.c.h.b16 %v2001
    %v2815 = vunpack.c.l.b16 %v2002
    %v2816 = vunpack.c.h.b16 %v2002
    %v2817 = vunpack.c.l.b16 %v2003
    %v2818 = vunpack.c.h.b16 %v2003
    %v2819 = vunpack.c.l.b16 %v2004
    %v2820 = vunpack.c.h.b16 %v2004
    %v2821 = vunpack.c.l.b16 %v2005
    %v2822 = vunpack.c.h.b16 %v2005
    %v2823 = vunpack.c.l.b16 %v2006
    %v2824 = vunpack.c.h.b16 %v2006
    %v2825 = vunpack.c.l.b16 %v2007
    %v2826 = vunpack.c.h.b16 %v2007
    %v2827 = vunpack.c.l.b16 %v2008
    %v2828 = vunpack.c.h.b16 %v2008
    %v2829 = vunpack.c.l.b16 %v2009
    %v2830 = vunpack.c.h.b16 %v2009
    %v2831 = vunpack.c.l.b16 %v2010
    %v2832 = vunpack.c.h.b16 %v2010
    %v2833 = vunpack.c.l.b16 %v2011
    %v2834 = vunpack.c.h.b16 %v2011
    %v2835 = vunpack.c.l.b16 %v2012
    %v2836 = vunpack.c.h.b16 %v2012
    %v2837 = vunpack.c.l.b16 %v2013
    %v2838 = vunpack.c.h.b16 %v2013
    %v2839 = vunpack.c.l.b16 %v2014
    %v2840 = vunpack.c.h.b16 %v2014
    %v2841 = vunpack.c.l.b16 %v2015
    %v2842 = vunpack.c.h.b16 %v2015
    %v2843 = vunpack.c.l.b16 %v2016
    %v2844 = vunpack.c.h.b16 %v2016
    %v2845 = vunpack.c.l.b16 %v2017
    %v2846 = vunpack.c.h.b16 %v2017
    %v2847 = vunpack.c.l.b16 %v2018
    %v2848 = vunpack.c.h.b16 %v2018
    %v2849 = vunpack.c.l.b16 %v2019
    %v2850 = vunpack.c.h.b16 %v2019
    %v2851 = vunpack.c.l.b16 %v2020
    %v2852 = vunpack.c.h.b16 %v2020
    %v2853 = vunpack.c.l.b16 %v2021
    %v2854 = vunpack.c.h.b16 %v2021
    %v2855 = vunpack.c.l.b16 %v2022
    %v2856 = vunpack.c.h.b16 %v2022
    %v2857 = vunpack.c.l.b16 %v2023
    %v2858 = vunpack.c.h.b16 %v2023
    %v2859 = vunpack.c.l.b16 %v2024
    %v2860 = vunpack.c.h.b16 %v2024
    %v2861 = vunpack.c.l.b16 %v2025
    %v2862 = vunpack.c.h.b16 %v2025
    %v2863 = vunpack.c.l.b16 %v2026
    %v2864 = vunpack.c.h.b16 %v2026
    %v2865 = vunpack.c.l.b16 %v2027
    %v2866 = vunpack.c.h.b16 %v2027
    %v2867 = vunpack.c.l.b16 %v2028
    %v2868 = vunpack.c.h.b16 %v2028
    %v2869 = vunpack.c.l.b16 %v2029
    %v2870 = vunpack.c.h.b16 %v2029
    %v2871 = vunpack.c.l.b16 %v2030
    %v2872 = vunpack.c.h.b16 %v2030
    %v2873 = vunpack.c.l.b16 %v2031
    %v2874 = vunpack.c.h.b16 %v2031
    %v2875 = vunpack.c.l.b16 %v2032
    %v2876 = vunpack.c.h.b16 %v2032
    %v2877 = vunpack.c.l.b16 %v2033
    %v2878 = vunpack.c.h.b16 %v2033
    %v2879 = vunpack.c.l.b16 %v2034
    %v2880 = vunpack.c.h.b16 %v2034
    %v2881 = vunpack.c.l.b16 %v2035
    %v2882 = vunpack.c.h.b16 %v2035
    %v2883 = vunpack.c.l.b16 %v2036
    %v2884 = vunpack.c.h.b16 %v2036
    %v2885 = vunpack.c.l.b16 %v2037
    %v2886 = vunpack.c.h.b16 %v2037
    %v2887 = vunpack.c.l.b16 %v2038
    %v2888 = vunpack.c.h.b16 %v2038
    %v2889 = vunpack.c.l.b16 %v2039
    %v2890 = vunpack.c.h.b16 %v2039
    %v2891 = vunpack.c.l.b16 %v2040
    %v2892 = vunpack.c.h.b16 %v2040
    %v2893 = vunpack.c.l.b16 %v2041
    %v2894 = vunpack.c.h.b16 %v2041
    %v2895 = vunpack.c.l.b16 %v2042
    %v2896 = vunpack.c.h.b16 %v2042
    %v2897 = vunpack.c.l.b16 %v2043
    %v2898 = vunpack.c.h.b16 %v2043
    %v2899 = vunpack.c.l.b16 %v2044
    %v2900 = vunpack.c.h.b16 %v2044
    %v2901 = vunpack.c.l.b16 %v2045
    %v2902 = vunpack.c.h.b16 %v2045
    %v2903 = vunpack.c.l.b16 %v2046
    %v2904 = vunpack.c.h.b16 %v2046
    %v2905 = vunpack.c.l.b16 %v2047
    %v2906 = vunpack.c.h.b16 %v2047
    %v2907 = vunpack.c.l.b16 %v2048
    %v2908 = vunpack.c.h.b16 %v2048
    %v2909 = vunpack.c.l.b16 %v2049
    %v2910 = vunpack.c.h.b16 %v2049
    %v2911 = vunpack.c.l.b16 %v2050
    %v2912 = vunpack.c.h.b16 %v2050
    %v2913 = vunpack.c.l.b16 %v2051
    %v2914 = vunpack.c.h.b16 %v2051
    %v2915 = vunpack.c.l.b16 %v2052
    %v2916 = vunpack.c.h.b16 %v2052
    %v2917 = vunpack.c.l.b16 %v2053
    %v2918 = vunpack.c.h.b16 %v2053
    %v2919 = vunpack.c.l.b16 %v2054
    %v2920 = vunpack.c.h.b16 %v2054
    %v2921 = vunpack.c.l.b16 %v2055
    %v2922 = vunpack.c.h.b16 %v2055
    %v2923 = vunpack.c.l.b16 %v2056
    %v2924 = vunpack.c.h.b16 %v2056
    %v2925 = vunpack.c.l.b16 %v2057
    %v2926 = vunpack.c.h.b16 %v2057
    %v2927 = vunpack.c.l.b16 %v2058
    %v2928 = vunpack.c.h.b16 %v2058
    %v2929 = vunpack.c.l.b16 %v2059
    %v2930 = vunpack.c.h.b16 %v2059
    %v2931 = vunpack.c.l.b16 %v2060
    %v2932 = vunpack.c.h.b16 %v2060
    %v2933 = vunpack.c.l.b16 %v2061
    %v2934 = vunpack.c.h.b16 %v2061
    %v2935 = vunpack.c.l.b16 %v2062
    %v2936 = vunpack.c.h.b16 %v2062
    %v2937 = vunpack.c.l.b16 %v2063
    %v2938 = vunpack.c.h.b16 %v2063
    %v2939 = vunpack.c.l.b16 %v2064
    %v2940 = vunpack.c.h.b16 %v2064
    %v2941 = vunpack.c.l.b16 %v2065
    %v2942 = vunpack.c.h.b16 %v2065
    %v2943 = vunpack.c.l.b16 %v2066
    %v2944 = vunpack.c.h.b16 %v2066
    %v2945 = vunpack.c.l.b16 %v2067
    %v2946 = vunpack.c.h.b16 %v2067
    %v2947 = vunpack.c.l.b16 %v2068
    %v2948 = vunpack.c.h.b16 %v2068
    %v2949 = vunpack.c.l.b16 %v2069
    %v2950 = vunpack.c.h.b16 %v2069
    %v2951 = vunpack.c.l.b16 %v2070
    %v2952 = vunpack.c.h.b16 %v2070
    %v2953 = vunpack.c.l.b16 %v2071
    %v2954 = vunpack.c.h.b16 %v2071
    %v2955 = vunpack.c.l.b16 %v2072
    %v2956 = vunpack.c.h.b16 %v2072
    %v2957 = vunpack.c.l.b16 %v2073
    %v2958 = vunpack.c.h.b16 %v2073
    %v2959 = vunpack.c.l.b16 %v2074
    %v2960 = vunpack.c.h.b16 %v2074
    %v2961 = vunpack.c.l.b16 %v2075
    %v2962 = vunpack.c.h.b16 %v2075
    %v2963 = vunpack.c.l.b16 %v2076
    %v2964 = vunpack.c.h.b16 %v2076
    %v2965 = vunpack.c.l.b16 %v2077
    %v2966 = vunpack.c.h.b16 %v2077
    %v2967 = vunpack.c.l.b16 %v2078
    %v2968 = vunpack.c.h.b16 %v2078
    %v2969 = vunpack.c.l.b16 %v2079
    %v2970 = vunpack.c.h.b16 %v2079
    %v2971 = vunpack.c.l.b16 %v2080
    %v2972 = vunpack.c.h.b16 %v2080
    %v2973 = vunpack.c.l.b16 %v2081
    %v2974 = vunpack.c.h.b16 %v2081
    %v2975 = vunpack.c.l.b16 %v2082
    %v2976 = vunpack.c.h.b16 %v2082
    %v2977 = vunpack.c.l.b16 %v2083
    %v2978 = vunpack.c.h.b16 %v2083
    %v2979 = vunpack.c.l.b16 %v2084
    %v2980 = vunpack.c.h.b16 %v2084
    %v2981 = vunpack.c.l.b16 %v2085
    %v2982 = vunpack.c.h.b16 %v2085
    %v2983 = vunpack.c.l.b16 %v2086
    %v2984 = vunpack.c.h.b16 %v2086
    %v2985 = vunpack.c.l.b16 %v2087
    %v2986 = vunpack.c.h.b16 %v2087
    %v2987 = vunpack.c.l.b16 %v2088
    %v2988 = vunpack.c.h.b16 %v2088
    %v2989 = vunpack.c.l.b16 %v2089
    %v2990 = vunpack.c.h.b16 %v2089
    %v2991 = vunpack.c.l.b16 %v2090
    %v2992 = vunpack.c.h.b16 %v2090
    %v2993 = vunpack.c.l.b16 %v2091
    %v2994 = vunpack.c.h.b16 %v2091
    %v2995 = vunpack.c.l.b16 %v2092
    %v2996 = vunpack.c.h.b16 %v2092
    %v2997 = vunpack.c.l.b16 %v2093
    %v2998 = vunpack.c.h.b16 %v2093
    %v2999 = vunpack.c.l.b16 %v2094
    %v3000 = vunpack.c.h.b16 %v2094
    %v3001 = vunpack.c.l.b16 %v2095
    %v3002 = vunpack.c.h.b16 %v2095
    %v3003 = vunpack.c.l.b16 %v2096
    %v3004 = vunpack.c.h.b16 %v2096
    %v3005 = vunpack.c.l.b16 %v2097
    %v3006 = vunpack.c.h.b16 %v2097
    %v3007 = vunpack.c.l.b16 %v2098
    %v3008 = vunpack.c.h.b16 %v2098
    %v3009 = vunpack.c.l.b16 %v2099
    %v3010 = vunpack.c.h.b16 %v2099
    %v3011 = vunpack.c.l.b16 %v2100
    %v3012 = vunpack.c.h.b16 %v2100
    %v3013 = vunpack.c.l.b16 %v2101
    %v3014 = vunpack.c.h.b16 %v2101
    %v3015 = vunpack.c.l.b16 %v2102
    %v3016 = vunpack.c.h.b16 %v2102
    %v3017 = vunpack.c.l.b16 %v2103
    %v3018 = vunpack.c.h.b16 %v2103
    %v3019 = vunpack.c.l.b16 %v2104
    %v3020 = vunpack.c.h.b16 %v2104
    %v3021 = vunpack.c.l.b16 %v2105
    %v3022 = vunpack.c.h.b16 %v2105
    %v3023 = vunpack.c.l.b16 %v2106
    %v3024 = vunpack.c.h.b16 %v2106
    %v3025 = vunpack.c.l.b16 %v2107
    %v3026 = vunpack.c.h.b16 %v2107
    %v3027 = vunpack.c.l.b16 %v2108
    %v3028 = vunpack.c.h.b16 %v2108
    %v3029 = vunpack.c.l.b16 %v2109
    %v3030 = vunpack.c.h.b16 %v2109
    %v3031 = vunpack.c.l.b16 %v2110
    %v3032 = vunpack.c.h.b16 %v2110
    %v3033 = vunpack.c.l.b16 %v2111
    %v3034 = vunpack.c.h.b16 %v2111
    %v3035 = vunpack.c.l.b16 %v2112
    %v3036 = vunpack.c.h.b16 %v2112
    %v3037 = vpack.c.b16 %v2423, %v2421
    %v3038 = vpack.c.b16 %v2424, %v2422
    %v3039 = vpack.c.b16 %v2427, %v2425
    %v3040 = vpack.c.b16 %v2428, %v2426
    %v3041 = vpack.c.b16 %v2431, %v2429
    %v3042 = vpack.c.b16 %v2432, %v2430
    %v3043 = vpack.c.b16 %v2435, %v2433
    %v3044 = vpack.c.b16 %v2436, %v2434
    %v3045 = vpack.c.b16 %v2439, %v2437
    %v3046 = vpack.c.b16 %v2440, %v2438
    %v3047 = vpack.c.b16 %v2443, %v2441
    %v3048 = vpack.c.b16 %v2444, %v2442
    %v3049 = vpack.c.b16 %v2447, %v2445
    %v3050 = vpack.c.b16 %v2448, %v2446
    %v3051 = vpack.c.b16 %v2451, %v2449
    %v3052 = vpack.c.b16 %v2452, %v2450
    %v3053 = vpack.c.b16 %v2455, %v2453
    %v3054 = vpack.c.b16 %v2456, %v2454
    %v3055 = vpack.c.b16 %v2459, %v2457
    %v3056 = vpack.c.b16 %v2460, %v2458
    %v3057 = vpack.c.b16 %v2463, %v2461
    %v3058 = vpack.c.b16 %v2464, %v2462
    %v3059 = vpack.c.b16 %v2467, %v2465
    %v3060 = vpack.c.b16 %v2468, %v2466
    %v3061 = vpack.c.b16 %v2471, %v2469
    %v3062 = vpack.c.b16 %v2472, %v2470
    %v3063 = vpack.c.b16 %v2475, %v2473
    %v3064 = vpack.c.b16 %v2476, %v2474
    %v3065 = vpack.c.b16 %v2479, %v2477
    %v3066 = vpack.c.b16 %v2480, %v2478
    %v3067 = vpack.c.b16 %v2483, %v2481
    %v3068 = vpack.c.b16 %v2484, %v2482
    %v3069 = vpack.c.b16 %v2487, %v2485
    %v3070 = vpack.c.b16 %v2488, %v2486
    %v3071 = vpack.c.b16 %v2491, %v2489
    %v3072 = vpack.c.b16 %v2492, %v2490
    %v3073 = vpack.c.b16 %v2495, %v2493
    %v3074 = vpack.c.b16 %v2496, %v2494
    %v3075 = vpack.c.b16 %v2499, %v2497
    %v3076 = vpack.c.b16 %v2500, %v2498
    %v3077 = vpack.c.b16 %v2503, %v2501
    %v3078 = vpack.c.b16 %v2504, %v2502
    %v3079 = vpack.c.b16 %v2507, %v2505
    %v3080 = vpack.c.b16 %v2508, %v2506
    %v3081 = vpack.c.b16 %v2511, %v2509
    %v3082 = vpack.c.b16 %v2512, %v2510
    %v3083 = vpack.c.b16 %v2515, %v2513
    %v3084 = vpack.c.b16 %v2516, %v2514
    %v3085 = vpack.c.b16 %v2519, %v2517
    %v3086 = vpack.c.b16 %v2520, %v2518
    %v3087 = vpack.c.b16 %v2523, %v2521
    %v3088 = vpack.c.b16 %v2524, %v2522
    %v3089 = vpack.c.b16 %v2527, %v2525
    %v3090 = vpack.c.b16 %v2528, %v2526
    %v3091 = vpack.c.b16 %v2531, %v2529
    %v3092 = vpack.c.b16 %v2532, %v2530
    %v3093 = vpack.c.b16 %v2535, %v2533
    %v3094 = vpack.c.b16 %v2536, %v2534
    %v3095 = vpack.c.b16 %v2539, %v2537
    %v3096 = vpack.c.b16 %v2540, %v2538
    %v3097 = vpack.c.b16 %v2543, %v2541
    %v3098 = vpack.c.b16 %v2544, %v2542
    %v3099 = vpack.c.b16 %v2547, %v2545
    %v3100 = vpack.c.b16 %v2548, %v2546
    %v3101 = vpack.c.b16 %v2551, %v2549
    %v3102 = vpack.c.b16 %v2552, %v2550
    %v3103 = vpack.c.b16 %v2555, %v2553
    %v3104 = vpack.c.b16 %v2556, %v2554
    %v3105 = vpack.c.b16 %v2559, %v2557
    %v3106 = vpack.c.b16 %v2560, %v2558
    %v3107 = vpack.c.b16 %v2563, %v2561
    %v3108 = vpack.c.b16 %v2564, %v2562
    %v3109 = vpack.c.b16 %v2567, %v2565
    %v3110 = vpack.c.b16 %v2568, %v2566
    %v3111 = vpack.c.b16 %v2571, %v2569
    %v3112 = vpack.c.b16 %v2572, %v2570
    %v3113 = vpack.c.b16 %v2575, %v2573
    %v3114 = vpack.c.b16 %v2576, %v2574
    %v3115 = vpack.c.b16 %v2579, %v2577
    %v3116 = vpack.c.b16 %v2580, %v2578
    %v3117 = vpack.c.b16 %v2583, %v2581
    %v3118 = vpack.c.b16 %v2584, %v2582
    %v3119 = vpack.c.b16 %v2587, %v2585
    %v3120 = vpack.c.b16 %v2588, %v2586
    %v3121 = vpack.c.b16 %v2591, %v2589
    %v3122 = vpack.c.b16 %v2592, %v2590
    %v3123 = vpack.c.b16 %v2595, %v2593
    %v3124 = vpack.c.b16 %v2596, %v2594
    %v3125 = vpack.c.b16 %v2599, %v2597
    %v3126 = vpack.c.b16 %v2600, %v2598
    %v3127 = vpack.c.b16 %v2603, %v2601
    %v3128 = vpack.c.b16 %v2604, %v2602
    %v3129 = vpack.c.b16 %v2607, %v2605
    %v3130 = vpack.c.b16 %v2608, %v2606
    %v3131 = vpack.c.b16 %v2611, %v2609
    %v3132 = vpack.c.b16 %v2612, %v2610
    %v3133 = vpack.c.b16 %v2615, %v2613
    %v3134 = vpack.c.b16 %v2616, %v2614
    %v3135 = vpack.c.b16 %v2619, %v2617
    %v3136 = vpack.c.b16 %v2620, %v2618
    %v3137 = vpack.c.b16 %v2623, %v2621
    %v3138 = vpack.c.b16 %v2624, %v2622
    %v3139 = vpack.c.b16 %v2627, %v2625
    %v3140 = vpack.c.b16 %v2628, %v2626
    %v3141 = vpack.c.b16 %v2631, %v2629
    %v3142 = vpack.c.b16 %v2632, %v2630
    %v3143 = vpack.c.b16 %v2635, %v2633
    %v3144 = vpack.c.b16 %v2636, %v2634
    %v3145 = vpack.c.b16 %v2639, %v2637
    %v3146 = vpack.c.b16 %v2640, %v2638
    %v3147 = vpack.c.b16 %v2643, %v2641
    %v3148 = vpack.c.b16 %v2644, %v2642
    %v3149 = vpack.c.b16 %v2647, %v2645
    %v3150 = vpack.c.b16 %v2648, %v2646
    %v3151 = vpack.c.b16 %v2651, %v2649
    %v3152 = vpack.c.b16 %v2652, %v2650
    %v3153 = vpack.c.b16 %v2655, %v2653
    %v3154 = vpack.c.b16 %v2656, %v2654
    %v3155 = vpack.c.b16 %v2659, %v2657
    %v3156 = vpack.c.b16 %v2660, %v2658
    %v3157 = vpack.c.b16 %v2663, %v2661
    %v3158 = vpack.c.b16 %v2664, %v2662
    %v3159 = vpack.c.b16 %v2667, %v2665
    %v3160 = vpack.c.b16 %v2668, %v2666
    %v3161 = vpack.c.b16 %v2671, %v2669
    %v3162 = vpack.c.b16 %v2672, %v2670
    %v3163 = vpack.c.b16 %v2675, %v2673
    %v3164 = vpack.c.b16 %v2676, %v2674
    %v3165 = vpack.c.b16 %v2679, %v2677
    %v3166 = vpack.c.b16 %v2680, %v2678
    %v3167 = vpack.c.b16 %v2683, %v2681
    %v3168 = vpack.c.b16 %v2684, %v2682
    %v3169 = vpack.c.b16 %v2687, %v2685
    %v3170 = vpack.c.b16 %v2688, %v2686
    %v3171 = vpack.c.b16 %v2691, %v2689
    %v3172 = vpack.c.b16 %v2692, %v2690
    %v3173 = vpack.c.b16 %v2695, %v2693
    %v3174 = vpack.c.b16 %v2696, %v2694
    %v3175 = vpack.c.b16 %v2699, %v2697
    %v3176 = vpack.c.b16 %v2700, %v2698
    %v3177 = vpack.c.b16 %v2703, %v2701
    %v3178 = vpack.c.b16 %v2704, %v2702
    %v3179 = vpack.c.b16 %v2707, %v2705
    %v3180 = vpack.c.b16 %v2708, %v2706
    %v3181 = vpack.c.b16 %v2711, %v2709
    %v3182 = vpack.c.b16 %v2712, %v2710
    %v3183 = vpack.c.b16 %v2715, %v2713
    %v3184 = vpack.c.b16 %v2716, %v2714
    %v3185 = vpack.c.b16 %v2719, %v2717
    %v3186 = vpack.c.b16 %v2720, %v2718
    %v3187 = vpack.c.b16 %v2723, %v2721
    %v3188 = vpack.c.b16 %v2724, %v2722
    %v3189 = vpack.c.b16 %v2727, %v2725
    %v3190 = vpack.c.b16 %v2728, %v2726
    %v3191 = vpack.c.b16 %v2731, %v2729
    %v3192 = vpack.c.b16 %v2732, %v2730
    %v3193 = vpack.c.b16 %v2735, %v2733
    %v3194 = vpack.c.b16 %v2736, %v2734
    %v3195 = vpack.c.b16 %v2739, %v2737
    %v3196 = vpack.c.b16 %v2740, %v2738
    %v3197 = vpack.c.b16 %v2743, %v2741
    %v3198 = vpack.c.b16 %v2744, %v2742
    %v3199 = vpack.c.b16 %v2747, %v2745
    %v3200 = vpack.c.b16 %v2748, %v2746
    %v3201 = vpack.c.b16 %v2751, %v2749
    %v3202 = vpack.c.b16 %v2752, %v2750
    %v3203 = vpack.c.b16 %v2755, %v2753
    %v3204 = vpack.c.b16 %v2756, %v2754
    %v3205 = vpack.c.b16 %v2759, %v2757
    %v3206 = vpack.c.b16 %v2760, %v2758
    %v3207 = vpack.c.b16 %v2763, %v2761
    %v3208 = vpack.c.b16 %v2764, %v2762
    %v3209 = vpack.c.b16 %v2767, %v2765
    %v3210 = vpack.c.b16 %v2768, %v2766
    %v3211 = vpack.c.b16 %v2771, %v2769
    %v3212 = vpack.c.b16 %v2772, %v2770
    %v3213 = vpack.c.b16 %v2775, %v2773
    %v3214 = vpack.c.b16 %v2776, %v2774
    %v3215 = vpack.c.b16 %v2779, %v2777
    %v3216 = vpack.c.b16 %v2780, %v2778
    %v3217 = vpack.c.b16 %v2783, %v2781
    %v3218 = vpack.c.b16 %v2784, %v2782
    %v3219 = vpack.c.b16 %v2787, %v2785
    %v3220 = vpack.c.b16 %v2788, %v2786
    %v3221 = vpack.c.b16 %v2791, %v2789
    %v3222 = vpack.c.b16 %v2792, %v2790
    %v3223 = vpack.c.b16 %v2795, %v2793
    %v3224 = vpack.c.b16 %v2796, %v2794
    %v3225 = vpack.c.b16 %v2799, %v2797
    %v3226 = vpack.c.b16 %v2800, %v2798
    %v3227 = vpack.c.b16 %v2803, %v2801
    %v3228 = vpack.c.b16 %v2804, %v2802
    %v3229 = vpack.c.b16 %v2807, %v2805
    %v3230 = vpack.c.b16 %v2808, %v2806
    %v3231 = vpack.c.b16 %v2811, %v2809
    %v3232 = vpack.c.b16 %v2812, %v2810
    %v3233 = vpack.c.b16 %v2815, %v2813
    %v3234 = vpack.c.b16 %v2816, %v2814
    %v3235 = vpack.c.b16 %v2819, %v2817
    %v3236 = vpack.c.b16 %v2820, %v2818
    %v3237 = vpack.c.b16 %v2823, %v2821
    %v3238 = vpack.c.b16 %v2824, %v2822
    %v3239 = vpack.c.b16 %v2827, %v2825
    %v3240 = vpack.c.b16 %v2828, %v2826
    %v3241 = vpack.c.b16 %v2831, %v2829
    %v3242 = vpack.c.b16 %v2832, %v2830
    %v3243 = vpack.c.b16 %v2835, %v2833
    %v3244 = vpack.c.b16 %v2836, %v2834
    %v3245 = vpack.c.b16 %v2839, %v2837
    %v3246 = vpack.c.b16 %v2840, %v2838
    %v3247 = vpack.c.b16 %v2843, %v2841
    %v3248 = vpack.c.b16 %v2844, %v2842
    %v3249 = vpack.c.b16 %v2847, %v2845
    %v3250 = vpack.c.b16 %v2848, %v2846
    %v3251 = vpack.c.b16 %v2851, %v2849
    %v3252 = vpack.c.b16 %v2852, %v2850
    %v3253 = vpack.c.b16 %v2855, %v2853
    %v3254 = vpack.c.b16 %v2856, %v2854
    %v3255 = vpack.c.b16 %v2859, %v2857
    %v3256 = vpack.c.b16 %v2860, %v2858
    %v3257 = vpack.c.b16 %v2863, %v2861
    %v3258 = vpack.c.b16 %v2864, %v2862
    %v3259 = vpack.c.b16 %v2867, %v2865
    %v3260 = vpack.c.b16 %v2868, %v2866
    %v3261 = vpack.c.b16 %v2871, %v2869
    %v3262 = vpack.c.b16 %v2872, %v2870
    %v3263 = vpack.c.b16 %v2875, %v2873
    %v3264 = vpack.c.b16 %v2876, %v2874
    %v3265 = vpack.c.b16 %v2879, %v2877
    %v3266 = vpack.c.b16 %v2880, %v2878
    %v3267 = vpack.c.b16 %v2883, %v2881
    %v3268 = vpack.c.b16 %v2884, %v2882
    %v3269 = vpack.c.b16 %v2887, %v2885
    %v3270 = vpack.c.b16 %v2888, %v2886
    %v3271 = vpack.c.b16 %v2891, %v2889
    %v3272 = vpack.c.b16 %v2892, %v2890
    %v3273 = vpack.c.b16 %v2895, %v2893
    %v3274 = vpack.c.b16 %v2896, %v2894
    %v3275 = vpack.c.b16 %v2899, %v2897
    %v3276 = vpack.c.b16 %v2900, %v2898
    %v3277 = vpack.c.b16 %v2903, %v2901
    %v3278 = vpack.c.b16 %v2904, %v2902
    %v3279 = vpack.c.b16 %v2907, %v2905
    %v3280 = vpack.c.b16 %v2908, %v2906
    %v3281 = vpack.c.b16 %v2911, %v2909
    %v3282 = vpack.c.b16 %v2912, %v2910
    %v3283 = vpack.c.b16 %v2915, %v2913
    %v3284 = vpack.c.b16 %v2916, %v2914
    %v3285 = vpack.c.b16 %v2919, %v2917
    %v3286 = vpack.c.b16 %v2920, %v2918
    %v3287 = vpack.c.b16 %v2923, %v2921
    %v3288 = vpack.c.b16 %v2924, %v2922
    %v3289 = vpack.c.b16 %v2927, %v2925
    %v3290 = vpack.c.b16 %v2928, %v2926
    %v3291 = vpack.c.b16 %v2931, %v2929
    %v3292 = vpack.c.b16 %v2932, %v2930
    %v3293 = vpack.c.b16 %v2935, %v2933
    %v3294 = vpack.c.b16 %v2936, %v2934
    %v3295 = vpack.c.b16 %v2939, %v2937
    %v3296 = vpack.c.b16 %v2940, %v2938
    %v3297 = vpack.c.b16 %v2943, %v2941
    %v3298 = vpack.c.b16 %v2944, %v2942
    %v3299 = vpack.c.b16 %v2947, %v2945
    %v3300 = vpack.c.b16 %v2948, %v2946
    %v3301 = vpack.c.b16 %v2951, %v2949
    %v3302 = vpack.c.b16 %v2952, %v2950
    %v3303 = vpack.c.b16 %v2955, %v2953
    %v3304 = vpack.c.b16 %v2956, %v2954
    %v3305 = vpack.c.b16 %v2959, %v2957
    %v3306 = vpack.c.b16 %v2960, %v2958
    %v3307 = vpack.c.b16 %v2963, %v2961
    %v3308 = vpack.c.b16 %v2964, %v2962
    %v3309 = vpack.c.b16 %v2967, %v2965
    %v3310 = vpack.c.b16 %v2968, %v2966
    %v3311 = vpack.c.b16 %v2971, %v2969
    %v3312 = vpack.c.b16 %v2972, %v2970
    %v3313 = vpack.c.b16 %v2975, %v2973
    %v3314 = vpack.c.b16 %v2976, %v2974
    %v3315 = vpack.c.b16 %v2979, %v2977
    %v3316 = vpack.c.b16 %v2980, %v2978
    %v3317 = vpack.c.b16 %v2983, %v2981
    %v3318 = vpack.c.b16 %v2984, %v2982
    %v3319 = vpack.c.b16 %v2987, %v2985
    %v3320 = vpack.c.b16 %v2988, %v2986
    %v3321 = vpack.c.b16 %v2991, %v2989
    %v3322 = vpack.c.b16 %v2992, %v2990
    %v3323 = vpack.c.b16 %v2995, %v2993
    %v3324 = vpack.c.b16 %v2996, %v2994
    %v3325 = vpack.c.b16 %v2999, %v2997
    %v3326 = vpack.c.b16 %v3000, %v2998
    %v3327 = vpack.c.b16 %v3003, %v3001
    %v3328 = vpack.c.b16 %v3004, %v3002
    %v3329 = vpack.c.b16 %v3007, %v3005
    %v3330 = vpack.c.b16 %v3008, %v3006
    %v3331 = vpack.c.b16 %v3011, %v3009
    %v3332 = vpack.c.b16 %v3012, %v3010
    %v3333 = vpack.c.b16 %v3015, %v3013
    %v3334 = vpack.c.b16 %v3016, %v3014
    %v3335 = vpack.c.b16 %v3019, %v3017
    %v3336 = vpack.c.b16 %v3020, %v3018
    %v3337 = vpack.c.b16 %v3023, %v3021
    %v3338 = vpack.c.b16 %v3024, %v3022
    %v3339 = vpack.c.b16 %v3027, %v3025
    %v3340 = vpack.c.b16 %v3028, %v3026
    %v3341 = vpack.c.b16 %v3031, %v3029
    %v3342 = vpack.c.b16 %v3032, %v3030
    %v3343 = vpack.c.b16 %v3035, %v3033
    %v3344 = vpack.c.b16 %v3036, %v3034
    %v3654 = vsel %vm920, %v1784, 0
    %v3657 = vsel %vm920, %v1804, 0
    %3659 = vmatprep.subr.bf16.mxu0 %v3038
    %3660 = vmatpush1.bf16.msra.mxu0 %v3037
    %3661 = vmatprep.subr.bf16.mxu0 %v3040
    %3662 = vmatpush1.bf16.msra.mxu0 %v3039
    %3663 = vmatprep.subr.bf16.mxu0 %v3042
    %3664 = vmatpush1.bf16.msra.mxu0 %v3041
    %3665 = vmatprep.subr.bf16.mxu0 %v3044
    %3666 = vmatpush1.bf16.msra.mxu0 %v3043
    %3667 = vmatprep.subr.bf16.mxu0 %v3046
    %3668 = vmatpush1.bf16.msra.mxu0 %v3045
    %3669 = vmatprep.subr.bf16.mxu0 %v3048
    %3670 = vmatpush1.bf16.msra.mxu0 %v3047
    %3671 = vmatprep.subr.bf16.mxu0 %v3050
    %3672 = vmatpush1.bf16.msra.mxu0 %v3049
    %3673 = vmatprep.subr.bf16.mxu0 %v3052
    %3674 = vmatpush1.bf16.msra.mxu0 %v3051
    %3675 = vmatprep.subr.bf16.mxu0 %v3054
    %3676 = vmatpush1.bf16.msra.mxu0 %v3053
    %3677 = vmatprep.subr.bf16.mxu0 %v3056
    %3678 = vmatpush1.bf16.msra.mxu0 %v3055
    %3679 = vmatprep.subr.bf16.mxu0 %v3058
    %3680 = vmatpush1.bf16.msra.mxu0 %v3057
    %3681 = vmatprep.subr.bf16.mxu0 %v3060
    %3682 = vmatpush1.bf16.msra.mxu0 %v3059
    %3683 = vmatprep.subr.bf16.mxu0 %v3062
    %3684 = vmatpush1.bf16.msra.mxu0 %v3061
    %3685 = vmatprep.subr.bf16.mxu0 %v3064
    %3686 = vmatpush1.bf16.msra.mxu0 %v3063
    %3687 = vmatprep.subr.bf16.mxu0 %v3066
    %3688 = vmatpush1.bf16.msra.mxu0 %v3065
    %3689 = vmatprep.subr.bf16.mxu0 %v3068
    %3690 = vmatpush1.bf16.msra.mxu0 %v3067
    %3691 = vmatprep.mubr.bf16.mxu0 %v1766
    %3692 = vmatmul.mubr.bf16.gmra.mrb[0].mxu0 %v1765
    %v3693 = vpop.f32.mrb[0].mxu0
    %v3694 = vadd.f32 0.0, %v3693
    %v3695 = vpop.f32.mrb[0].mxu0
    %v3696 = vadd.f32 0.0, %v3695
    %v3697 = vpop.f32.mrb[0].mxu0
    %v3698 = vadd.f32 0.0, %v3697
    %v3699 = vpop.f32.mrb[0].mxu0
    %v3700 = vadd.f32 0.0, %v3699
    %3701 = vmatprep.mubr.bf16.mxu0 %v1786
    %3702 = vmatmul.mubr.bf16.gmra.mrb[0].mxu0 %v1785
    %v3703 = vpop.f32.mrb[0].mxu0
    %v3704 = vadd.f32 0.0, %v3703
    %v3705 = vpop.f32.mrb[0].mxu0
    %v3706 = vadd.f32 0.0, %v3705
    %v3707 = vpop.f32.mrb[0].mxu0
    %v3708 = vadd.f32 0.0, %v3707
    %v3709 = vpop.f32.mrb[0].mxu0
    %v3710 = vadd.f32 0.0, %v3709
    %3711 = vdwg.mxu0
    %3712 = vmatprep.subr.bf16.mxu0 %v3070
    %3713 = vmatpush1.bf16.msra.mxu0 %v3069
    %3714 = vmatprep.subr.bf16.mxu0 %v3072
    %3715 = vmatpush1.bf16.msra.mxu0 %v3071
    %3716 = vmatprep.subr.bf16.mxu0 %v3074
    %3717 = vmatpush1.bf16.msra.mxu0 %v3073
    %3718 = vmatprep.subr.bf16.mxu0 %v3076
    %3719 = vmatpush1.bf16.msra.mxu0 %v3075
    %3720 = vmatprep.subr.bf16.mxu0 %v3078
    %3721 = vmatpush1.bf16.msra.mxu0 %v3077
    %3722 = vmatprep.subr.bf16.mxu0 %v3080
    %3723 = vmatpush1.bf16.msra.mxu0 %v3079
    %3724 = vmatprep.subr.bf16.mxu0 %v3082
    %3725 = vmatpush1.bf16.msra.mxu0 %v3081
    %3726 = vmatprep.subr.bf16.mxu0 %v3084
    %3727 = vmatpush1.bf16.msra.mxu0 %v3083
    %3728 = vmatprep.subr.bf16.mxu0 %v3086
    %3729 = vmatpush1.bf16.msra.mxu0 %v3085
    %3730 = vmatprep.subr.bf16.mxu0 %v3088
    %3731 = vmatpush1.bf16.msra.mxu0 %v3087
    %3732 = vmatprep.subr.bf16.mxu0 %v3090
    %3733 = vmatpush1.bf16.msra.mxu0 %v3089
    %3734 = vmatprep.subr.bf16.mxu0 %v3092
    %3735 = vmatpush1.bf16.msra.mxu0 %v3091
    %3736 = vmatprep.subr.bf16.mxu0 %v3094
    %3737 = vmatpush1.bf16.msra.mxu0 %v3093
    %3738 = vmatprep.subr.bf16.mxu0 %v3096
    %3739 = vmatpush1.bf16.msra.mxu0 %v3095
    %3740 = vmatprep.subr.bf16.mxu0 %v3098
    %3741 = vmatpush1.bf16.msra.mxu0 %v3097
    %3742 = vmatprep.subr.bf16.mxu0 %v3100
    %3743 = vmatpush1.bf16.msra.mxu0 %v3099
    %3744 = vmatprep.mubr.bf16.mxu0 %v1768
    %3745 = vmatmul.mubr.bf16.gmra.mrb[0].mxu0 %v1767
    %v3746 = vpop.f32.mrb[0].mxu0
    %v3747 = vadd.f32 %v3694, %v3746
    %v3748 = vpop.f32.mrb[0].mxu0
    %v3749 = vadd.f32 %v3696, %v3748
    %v3750 = vpop.f32.mrb[0].mxu0
    %v3751 = vadd.f32 %v3698, %v3750
    %v3752 = vpop.f32.mrb[0].mxu0
    %v3753 = vadd.f32 %v3700, %v3752
    %3754 = vmatprep.mubr.bf16.mxu0 %v1788
    %3755 = vmatmul.mubr.bf16.gmra.mrb[0].mxu0 %v1787
    %v3756 = vpop.f32.mrb[0].mxu0
    %v3757 = vadd.f32 %v3704, %v3756
    %v3758 = vpop.f32.mrb[0].mxu0
    %v3759 = vadd.f32 %v3706, %v3758
    %v3760 = vpop.f32.mrb[0].mxu0
    %v3761 = vadd.f32 %v3708, %v3760
    %v3762 = vpop.f32.mrb[0].mxu0
    %v3763 = vadd.f32 %v3710, %v3762
    %3764 = vdwg.mxu0
    %3765 = vmatprep.subr.bf16.mxu0 %v3102
    %3766 = vmatpush1.bf16.msra.mxu0 %v3101
    %3767 = vmatprep.subr.bf16.mxu0 %v3104
    %3768 = vmatpush1.bf16.msra.mxu0 %v3103
    %3769 = vmatprep.subr.bf16.mxu0 %v3106
    %3770 = vmatpush1.bf16.msra.mxu0 %v3105
    %3771 = vmatprep.subr.bf16.mxu0 %v3108
    %3772 = vmatpush1.bf16.msra.mxu0 %v3107
    %3773 = vmatprep.subr.bf16.mxu0 %v3110
    %3774 = vmatpush1.bf16.msra.mxu0 %v3109
    %3775 = vmatprep.subr.bf16.mxu0 %v3112
    %3776 = vmatpush1.bf16.msra.mxu0 %v3111
    %3777 = vmatprep.subr.bf16.mxu0 %v3114
    %3778 = vmatpush1.bf16.msra.mxu0 %v3113
    %3779 = vmatprep.subr.bf16.mxu0 %v3116
    %3780 = vmatpush1.bf16.msra.mxu0 %v3115
    %3781 = vmatprep.subr.bf16.mxu0 %v3118
    %3782 = vmatpush1.bf16.msra.mxu0 %v3117
    %3783 = vmatprep.subr.bf16.mxu0 %v3120
    %3784 = vmatpush1.bf16.msra.mxu0 %v3119
    %3785 = vmatprep.subr.bf16.mxu0 %v3122
    %3786 = vmatpush1.bf16.msra.mxu0 %v3121
    %3787 = vmatprep.subr.bf16.mxu0 %v3124
    %3788 = vmatpush1.bf16.msra.mxu0 %v3123
    %3789 = vmatprep.subr.bf16.mxu0 %v3126
    %3790 = vmatpush1.bf16.msra.mxu0 %v3125
    %3791 = vmatprep.subr.bf16.mxu0 %v3128
    %3792 = vmatpush1.bf16.msra.mxu0 %v3127
    %3793 = vmatprep.subr.bf16.mxu0 %v3130
    %3794 = vmatpush1.bf16.msra.mxu0 %v3129
    %3795 = vmatprep.subr.bf16.mxu0 %v3132
    %3796 = vmatpush1.bf16.msra.mxu0 %v3131
    %3797 = vmatprep.mubr.bf16.mxu0 %v1770
    %3798 = vmatmul.mubr.bf16.gmra.mrb[0].mxu0 %v1769
    %v3799 = vpop.f32.mrb[0].mxu0
    %v3800 = vadd.f32 %v3747, %v3799
    %v3801 = vpop.f32.mrb[0].mxu0
    %v3802 = vadd.f32 %v3749, %v3801
    %v3803 = vpop.f32.mrb[0].mxu0
    %v3804 = vadd.f32 %v3751, %v3803
    %v3805 = vpop.f32.mrb[0].mxu0
    %v3806 = vadd.f32 %v3753, %v3805
    %3807 = vmatprep.mubr.bf16.mxu0 %v1790
    %3808 = vmatmul.mubr.bf16.gmra.mrb[0].mxu0 %v1789
    %v3809 = vpop.f32.mrb[0].mxu0
    %v3810 = vadd.f32 %v3757, %v3809
    %v3811 = vpop.f32.mrb[0].mxu0
    %v3812 = vadd.f32 %v3759, %v3811
    %v3813 = vpop.f32.mrb[0].mxu0
    %v3814 = vadd.f32 %v3761, %v3813
    %v3815 = vpop.f32.mrb[0].mxu0
    %v3816 = vadd.f32 %v3763, %v3815
    %3817 = vdwg.mxu0
    %3818 = vmatprep.subr.bf16.mxu0 %v3134
    %3819 = vmatpush1.bf16.msra.mxu0 %v3133
    %3820 = vmatprep.subr.bf16.mxu0 %v3136
    %3821 = vmatpush1.bf16.msra.mxu0 %v3135
    %3822 = vmatprep.subr.bf16.mxu0 %v3138
    %3823 = vmatpush1.bf16.msra.mxu0 %v3137
    %3824 = vmatprep.subr.bf16.mxu0 %v3140
    %3825 = vmatpush1.bf16.msra.mxu0 %v3139
    %3826 = vmatprep.subr.bf16.mxu0 %v3142
    %3827 = vmatpush1.bf16.msra.mxu0 %v3141
    %3828 = vmatprep.subr.bf16.mxu0 %v3144
    %3829 = vmatpush1.bf16.msra.mxu0 %v3143
    %3830 = vmatprep.subr.bf16.mxu0 %v3146
    %3831 = vmatpush1.bf16.msra.mxu0 %v3145
    %3832 = vmatprep.subr.bf16.mxu0 %v3148
    %3833 = vmatpush1.bf16.msra.mxu0 %v3147
    %3834 = vmatprep.subr.bf16.mxu0 %v3150
    %3835 = vmatpush1.bf16.msra.mxu0 %v3149
    %3836 = vmatprep.subr.bf16.mxu0 %v3152
    %3837 = vmatpush1.bf16.msra.mxu0 %v3151
    %3838 = vmatprep.subr.bf16.mxu0 %v3154
    %3839 = vmatpush1.bf16.msra.mxu0 %v3153
    %3840 = vmatprep.subr.bf16.mxu0 %v3156
    %3841 = vmatpush1.bf16.msra.mxu0 %v3155
    %3842 = vmatprep.subr.bf16.mxu0 %v3158
    %3843 = vmatpush1.bf16.msra.mxu0 %v3157
    %3844 = vmatprep.subr.bf16.mxu0 %v3160
    %3845 = vmatpush1.bf16.msra.mxu0 %v3159
    %3846 = vmatprep.subr.bf16.mxu0 %v3162
    %3847 = vmatpush1.bf16.msra.mxu0 %v3161
    %3848 = vmatprep.subr.bf16.mxu0 %v3164
    %3849 = vmatpush1.bf16.msra.mxu0 %v3163
    %3850 = vmatprep.mubr.bf16.mxu0 %v1772
    %3851 = vmatmul.mubr.bf16.gmra.mrb[0].mxu0 %v1771
    %v3852 = vpop.f32.mrb[0].mxu0
    %v3853 = vadd.f32 %v3800, %v3852
    %v3854 = vpop.f32.mrb[0].mxu0
    %v3855 = vadd.f32 %v3802, %v3854
    %v3856 = vpop.f32.mrb[0].mxu0
    %v3857 = vadd.f32 %v3804, %v3856
    %v3858 = vpop.f32.mrb[0].mxu0
    %v3859 = vadd.f32 %v3806, %v3858
    %3860 = vmatprep.mubr.bf16.mxu0 %v1792
    %3861 = vmatmul.mubr.bf16.gmra.mrb[0].mxu0 %v1791
    %v3862 = vpop.f32.mrb[0].mxu0
    %v3863 = vadd.f32 %v3810, %v3862
    %v3864 = vpop.f32.mrb[0].mxu0
    %v3865 = vadd.f32 %v3812, %v3864
    %v3866 = vpop.f32.mrb[0].mxu0
    %v3867 = vadd.f32 %v3814, %v3866
    %v3868 = vpop.f32.mrb[0].mxu0
    %v3869 = vadd.f32 %v3816, %v3868
    %3870 = vdwg.mxu0
    %3871 = vmatprep.subr.bf16.mxu0 %v3166
    %3872 = vmatpush1.bf16.msra.mxu0 %v3165
    %3873 = vmatprep.subr.bf16.mxu0 %v3168
    %3874 = vmatpush1.bf16.msra.mxu0 %v3167
    %3875 = vmatprep.subr.bf16.mxu0 %v3170
    %3876 = vmatpush1.bf16.msra.mxu0 %v3169
    %3877 = vmatprep.subr.bf16.mxu0 %v3172
    %3878 = vmatpush1.bf16.msra.mxu0 %v3171
    %3879 = vmatprep.subr.bf16.mxu0 %v3174
    %3880 = vmatpush1.bf16.msra.mxu0 %v3173
    %3881 = vmatprep.subr.bf16.mxu0 %v3176
    %3882 = vmatpush1.bf16.msra.mxu0 %v3175
    %3883 = vmatprep.subr.bf16.mxu0 %v3178
    %3884 = vmatpush1.bf16.msra.mxu0 %v3177
    %3885 = vmatprep.subr.bf16.mxu0 %v3180
    %3886 = vmatpush1.bf16.msra.mxu0 %v3179
    %3887 = vmatprep.subr.bf16.mxu0 %v3182
    %3888 = vmatpush1.bf16.msra.mxu0 %v3181
    %3889 = vmatprep.subr.bf16.mxu0 %v3184
    %3890 = vmatpush1.bf16.msra.mxu0 %v3183
    %3891 = vmatprep.subr.bf16.mxu0 %v3186
    %3892 = vmatpush1.bf16.msra.mxu0 %v3185
    %3893 = vmatprep.subr.bf16.mxu0 %v3188
    %3894 = vmatpush1.bf16.msra.mxu0 %v3187
    %3895 = vmatprep.subr.bf16.mxu0 %v3190
    %3896 = vmatpush1.bf16.msra.mxu0 %v3189
    %3897 = vmatprep.subr.bf16.mxu0 %v3192
    %3898 = vmatpush1.bf16.msra.mxu0 %v3191
    %3899 = vmatprep.subr.bf16.mxu0 %v3194
    %3900 = vmatpush1.bf16.msra.mxu0 %v3193
    %3901 = vmatprep.subr.bf16.mxu0 %v3196
    %3902 = vmatpush1.bf16.msra.mxu0 %v3195
    %3903 = vmatprep.mubr.bf16.mxu0 %v1774
    %3904 = vmatmul.mubr.bf16.gmra.mrb[0].mxu0 %v1773
    %v3905 = vpop.f32.mrb[0].mxu0
    %v3906 = vadd.f32 %v3853, %v3905
    %v3907 = vpop.f32.mrb[0].mxu0
    %v3908 = vadd.f32 %v3855, %v3907
    %v3909 = vpop.f32.mrb[0].mxu0
    %v3910 = vadd.f32 %v3857, %v3909
    %v3911 = vpop.f32.mrb[0].mxu0
    %v3912 = vadd.f32 %v3859, %v3911
    %3913 = vmatprep.mubr.bf16.mxu0 %v1794
    %3914 = vmatmul.mubr.bf16.gmra.mrb[0].mxu0 %v1793
    %v3915 = vpop.f32.mrb[0].mxu0
    %v3916 = vadd.f32 %v3863, %v3915
    %v3917 = vpop.f32.mrb[0].mxu0
    %v3918 = vadd.f32 %v3865, %v3917
    %v3919 = vpop.f32.mrb[0].mxu0
    %v3920 = vadd.f32 %v3867, %v3919
    %v3921 = vpop.f32.mrb[0].mxu0
    %v3922 = vadd.f32 %v3869, %v3921
    %3923 = vdwg.mxu0
    %3924 = vmatprep.subr.bf16.mxu0 %v3198
    %3925 = vmatpush1.bf16.msra.mxu0 %v3197
    %3926 = vmatprep.subr.bf16.mxu0 %v3200
    %3927 = vmatpush1.bf16.msra.mxu0 %v3199
    %3928 = vmatprep.subr.bf16.mxu0 %v3202
    %3929 = vmatpush1.bf16.msra.mxu0 %v3201
    %3930 = vmatprep.subr.bf16.mxu0 %v3204
    %3931 = vmatpush1.bf16.msra.mxu0 %v3203
    %3932 = vmatprep.subr.bf16.mxu0 %v3206
    %3933 = vmatpush1.bf16.msra.mxu0 %v3205
    %3934 = vmatprep.subr.bf16.mxu0 %v3208
    %3935 = vmatpush1.bf16.msra.mxu0 %v3207
    %3936 = vmatprep.subr.bf16.mxu0 %v3210
    %3937 = vmatpush1.bf16.msra.mxu0 %v3209
    %3938 = vmatprep.subr.bf16.mxu0 %v3212
    %3939 = vmatpush1.bf16.msra.mxu0 %v3211
    %3940 = vmatprep.subr.bf16.mxu0 %v3214
    %3941 = vmatpush1.bf16.msra.mxu0 %v3213
    %3942 = vmatprep.subr.bf16.mxu0 %v3216
    %3943 = vmatpush1.bf16.msra.mxu0 %v3215
    %3944 = vmatprep.subr.bf16.mxu0 %v3218
    %3945 = vmatpush1.bf16.msra.mxu0 %v3217
    %3946 = vmatprep.subr.bf16.mxu0 %v3220
    %3947 = vmatpush1.bf16.msra.mxu0 %v3219
    %3948 = vmatprep.subr.bf16.mxu0 %v3222
    %3949 = vmatpush1.bf16.msra.mxu0 %v3221
    %3950 = vmatprep.subr.bf16.mxu0 %v3224
    %3951 = vmatpush1.bf16.msra.mxu0 %v3223
    %3952 = vmatprep.subr.bf16.mxu0 %v3226
    %3953 = vmatpush1.bf16.msra.mxu0 %v3225
    %3954 = vmatprep.subr.bf16.mxu0 %v3228
    %3955 = vmatpush1.bf16.msra.mxu0 %v3227
    %3956 = vmatprep.mubr.bf16.mxu0 %v1776
    %3957 = vmatmul.mubr.bf16.gmra.mrb[0].mxu0 %v1775
    %v3958 = vpop.f32.mrb[0].mxu0
    %v3959 = vadd.f32 %v3906, %v3958
    %v3960 = vpop.f32.mrb[0].mxu0
    %v3961 = vadd.f32 %v3908, %v3960
    %v3962 = vpop.f32.mrb[0].mxu0
    %v3963 = vadd.f32 %v3910, %v3962
    %v3964 = vpop.f32.mrb[0].mxu0
    %v3965 = vadd.f32 %v3912, %v3964
    %3966 = vmatprep.mubr.bf16.mxu0 %v1796
    %3967 = vmatmul.mubr.bf16.gmra.mrb[0].mxu0 %v1795
    %v3968 = vpop.f32.mrb[0].mxu0
    %v3969 = vadd.f32 %v3916, %v3968
    %v3970 = vpop.f32.mrb[0].mxu0
    %v3971 = vadd.f32 %v3918, %v3970
    %v3972 = vpop.f32.mrb[0].mxu0
    %v3973 = vadd.f32 %v3920, %v3972
    %v3974 = vpop.f32.mrb[0].mxu0
    %v3975 = vadd.f32 %v3922, %v3974
    %3976 = vdwg.mxu0
    %3977 = vmatprep.subr.bf16.mxu0 %v3230
    %3978 = vmatpush1.bf16.msra.mxu0 %v3229
    %3979 = vmatprep.subr.bf16.mxu0 %v3232
    %3980 = vmatpush1.bf16.msra.mxu0 %v3231
    %3981 = vmatprep.subr.bf16.mxu0 %v3234
    %3982 = vmatpush1.bf16.msra.mxu0 %v3233
    %3983 = vmatprep.subr.bf16.mxu0 %v3236
    %3984 = vmatpush1.bf16.msra.mxu0 %v3235
    %3985 = vmatprep.subr.bf16.mxu0 %v3238
    %3986 = vmatpush1.bf16.msra.mxu0 %v3237
    %3987 = vmatprep.subr.bf16.mxu0 %v3240
    %3988 = vmatpush1.bf16.msra.mxu0 %v3239
    %3989 = vmatprep.subr.bf16.mxu0 %v3242
    %3990 = vmatpush1.bf16.msra.mxu0 %v3241
    %3991 = vmatprep.subr.bf16.mxu0 %v3244
    %3992 = vmatpush1.bf16.msra.mxu0 %v3243
    %3993 = vmatprep.subr.bf16.mxu0 %v3246
    %3994 = vmatpush1.bf16.msra.mxu0 %v3245
    %3995 = vmatprep.subr.bf16.mxu0 %v3248
    %3996 = vmatpush1.bf16.msra.mxu0 %v3247
    %3997 = vmatprep.subr.bf16.mxu0 %v3250
    %3998 = vmatpush1.bf16.msra.mxu0 %v3249
    %3999 = vmatprep.subr.bf16.mxu0 %v3252
    %4000 = vmatpush1.bf16.msra.mxu0 %v3251
    %4001 = vmatprep.subr.bf16.mxu0 %v3254
    %4002 = vmatpush1.bf16.msra.mxu0 %v3253
    %4003 = vmatprep.subr.bf16.mxu0 %v3256
    %4004 = vmatpush1.bf16.msra.mxu0 %v3255
    %4005 = vmatprep.subr.bf16.mxu0 %v3258
    %4006 = vmatpush1.bf16.msra.mxu0 %v3257
    %4007 = vmatprep.subr.bf16.mxu0 %v3260
    %4008 = vmatpush1.bf16.msra.mxu0 %v3259
    %4009 = vmatprep.mubr.bf16.mxu0 %v1778
    %4010 = vmatmul.mubr.bf16.gmra.mrb[0].mxu0 %v1777
    %v4011 = vpop.f32.mrb[0].mxu0
    %v4012 = vadd.f32 %v3959, %v4011
    %v4013 = vpop.f32.mrb[0].mxu0
    %v4014 = vadd.f32 %v3961, %v4013
    %v4015 = vpop.f32.mrb[0].mxu0
    %v4016 = vadd.f32 %v3963, %v4015
    %v4017 = vpop.f32.mrb[0].mxu0
    %v4018 = vadd.f32 %v3965, %v4017
    %4019 = vmatprep.mubr.bf16.mxu0 %v1798
    %4020 = vmatmul.mubr.bf16.gmra.mrb[0].mxu0 %v1797
    %v4021 = vpop.f32.mrb[0].mxu0
    %v4022 = vadd.f32 %v3969, %v4021
    %v4023 = vpop.f32.mrb[0].mxu0
    %v4024 = vadd.f32 %v3971, %v4023
    %v4025 = vpop.f32.mrb[0].mxu0
    %v4026 = vadd.f32 %v3973, %v4025
    %v4027 = vpop.f32.mrb[0].mxu0
    %v4028 = vadd.f32 %v3975, %v4027
    %4029 = vdwg.mxu0
    %4030 = vmatprep.subr.bf16.mxu0 %v3262
    %4031 = vmatpush1.bf16.msra.mxu0 %v3261
    %4032 = vmatprep.subr.bf16.mxu0 %v3264
    %4033 = vmatpush1.bf16.msra.mxu0 %v3263
    %4034 = vmatprep.subr.bf16.mxu0 %v3266
    %4035 = vmatpush1.bf16.msra.mxu0 %v3265
    %4036 = vmatprep.subr.bf16.mxu0 %v3268
    %4037 = vmatpush1.bf16.msra.mxu0 %v3267
    %4038 = vmatprep.subr.bf16.mxu0 %v3270
    %4039 = vmatpush1.bf16.msra.mxu0 %v3269
    %4040 = vmatprep.subr.bf16.mxu0 %v3272
    %4041 = vmatpush1.bf16.msra.mxu0 %v3271
    %4042 = vmatprep.subr.bf16.mxu0 %v3274
    %4043 = vmatpush1.bf16.msra.mxu0 %v3273
    %4044 = vmatprep.subr.bf16.mxu0 %v3276
    %4045 = vmatpush1.bf16.msra.mxu0 %v3275
    %4046 = vmatprep.subr.bf16.mxu0 %v3278
    %4047 = vmatpush1.bf16.msra.mxu0 %v3277
    %4048 = vmatprep.subr.bf16.mxu0 %v3280
    %4049 = vmatpush1.bf16.msra.mxu0 %v3279
    %4050 = vmatprep.subr.bf16.mxu0 %v3282
    %4051 = vmatpush1.bf16.msra.mxu0 %v3281
    %4052 = vmatprep.subr.bf16.mxu0 %v3284
    %4053 = vmatpush1.bf16.msra.mxu0 %v3283
    %4054 = vmatprep.subr.bf16.mxu0 %v3286
    %4055 = vmatpush1.bf16.msra.mxu0 %v3285
    %4056 = vmatprep.subr.bf16.mxu0 %v3288
    %4057 = vmatpush1.bf16.msra.mxu0 %v3287
    %4058 = vmatprep.subr.bf16.mxu0 %v3290
    %4059 = vmatpush1.bf16.msra.mxu0 %v3289
    %4060 = vmatprep.subr.bf16.mxu0 %v3292
    %4061 = vmatpush1.bf16.msra.mxu0 %v3291
    %4062 = vmatprep.mubr.bf16.mxu0 %v1780
    %4063 = vmatmul.mubr.bf16.gmra.mrb[0].mxu0 %v1779
    %v4064 = vpop.f32.mrb[0].mxu0
    %v4065 = vadd.f32 %v4012, %v4064
    %v4066 = vpop.f32.mrb[0].mxu0
    %v4067 = vadd.f32 %v4014, %v4066
    %v4068 = vpop.f32.mrb[0].mxu0
    %v4069 = vadd.f32 %v4016, %v4068
    %v4070 = vpop.f32.mrb[0].mxu0
    %v4071 = vadd.f32 %v4018, %v4070
    %4072 = vmatprep.mubr.bf16.mxu0 %v1800
    %4073 = vmatmul.mubr.bf16.gmra.mrb[0].mxu0 %v1799
    %v4074 = vpop.f32.mrb[0].mxu0
    %v4075 = vadd.f32 %v4022, %v4074
    %v4076 = vpop.f32.mrb[0].mxu0
    %v4077 = vadd.f32 %v4024, %v4076
    %v4078 = vpop.f32.mrb[0].mxu0
    %v4079 = vadd.f32 %v4026, %v4078
    %v4080 = vpop.f32.mrb[0].mxu0
    %v4081 = vadd.f32 %v4028, %v4080
    %4082 = vdwg.mxu0
    %4083 = vmatprep.subr.bf16.mxu0 %v3294
    %4084 = vmatpush1.bf16.msra.mxu0 %v3293
    %4085 = vmatprep.subr.bf16.mxu0 %v3296
    %4086 = vmatpush1.bf16.msra.mxu0 %v3295
    %4087 = vmatprep.subr.bf16.mxu0 %v3298
    %4088 = vmatpush1.bf16.msra.mxu0 %v3297
    %4089 = vmatprep.subr.bf16.mxu0 %v3300
    %4090 = vmatpush1.bf16.msra.mxu0 %v3299
    %4091 = vmatprep.subr.bf16.mxu0 %v3302
    %4092 = vmatpush1.bf16.msra.mxu0 %v3301
    %4093 = vmatprep.subr.bf16.mxu0 %v3304
    %4094 = vmatpush1.bf16.msra.mxu0 %v3303
    %4095 = vmatprep.subr.bf16.mxu0 %v3306
    %4096 = vmatpush1.bf16.msra.mxu0 %v3305
    %4097 = vmatprep.subr.bf16.mxu0 %v3308
    %4098 = vmatpush1.bf16.msra.mxu0 %v3307
    %4099 = vmatprep.subr.bf16.mxu0 %v3310
    %4100 = vmatpush1.bf16.msra.mxu0 %v3309
    %4101 = vmatprep.subr.bf16.mxu0 %v3312
    %4102 = vmatpush1.bf16.msra.mxu0 %v3311
    %4103 = vmatprep.subr.bf16.mxu0 %v3314
    %4104 = vmatpush1.bf16.msra.mxu0 %v3313
    %4105 = vmatprep.subr.bf16.mxu0 %v3316
    %4106 = vmatpush1.bf16.msra.mxu0 %v3315
    %4107 = vmatprep.subr.bf16.mxu0 %v3318
    %4108 = vmatpush1.bf16.msra.mxu0 %v3317
    %4109 = vmatprep.subr.bf16.mxu0 %v3320
    %4110 = vmatpush1.bf16.msra.mxu0 %v3319
    %4111 = vmatprep.subr.bf16.mxu0 %v3322
    %4112 = vmatpush1.bf16.msra.mxu0 %v3321
    %4113 = vmatprep.subr.bf16.mxu0 %v3324
    %4114 = vmatpush1.bf16.msra.mxu0 %v3323
    %4115 = vmatprep.mubr.bf16.mxu0 %v1782
    %4116 = vmatmul.mubr.bf16.gmra.mrb[0].mxu0 %v1781
    %v4117 = vpop.f32.mrb[0].mxu0
    %v4118 = vadd.f32 %v4065, %v4117
    %v4119 = vpop.f32.mrb[0].mxu0
    %v4120 = vadd.f32 %v4067, %v4119
    %v4121 = vpop.f32.mrb[0].mxu0
    %v4122 = vadd.f32 %v4069, %v4121
    %v4123 = vpop.f32.mrb[0].mxu0
    %v4124 = vadd.f32 %v4071, %v4123
    %4125 = vmatprep.mubr.bf16.mxu0 %v1802
    %4126 = vmatmul.mubr.bf16.gmra.mrb[0].mxu0 %v1801
    %v4127 = vpop.f32.mrb[0].mxu0
    %v4128 = vadd.f32 %v4075, %v4127
    %v4129 = vpop.f32.mrb[0].mxu0
    %v4130 = vadd.f32 %v4077, %v4129
    %v4131 = vpop.f32.mrb[0].mxu0
    %v4132 = vadd.f32 %v4079, %v4131
    %v4133 = vpop.f32.mrb[0].mxu0
    %v4134 = vadd.f32 %v4081, %v4133
    %4135 = vdwg.mxu0
    %4136 = vmatprep.subr.bf16.mxu0 %v3326
    %4137 = vmatpush1.bf16.msra.mxu0 %v3325
    %4138 = vmatprep.subr.bf16.mxu0 %v3328
    %4139 = vmatpush1.bf16.msra.mxu0 %v3327
    %4140 = vmatprep.subr.bf16.mxu0 %v3330
    %4141 = vmatpush1.bf16.msra.mxu0 %v3329
    %4142 = vmatprep.subr.bf16.mxu0 %v3332
    %4143 = vmatpush1.bf16.msra.mxu0 %v3331
    %4144 = vmatprep.subr.bf16.mxu0 %v3334
    %4145 = vmatpush1.bf16.msra.mxu0 %v3333
    %4146 = vmatprep.subr.bf16.mxu0 %v3336
    %4147 = vmatpush1.bf16.msra.mxu0 %v3335
    %4148 = vmatprep.subr.bf16.mxu0 %v3338
    %4149 = vmatpush1.bf16.msra.mxu0 %v3337
    %4150 = vmatprep.subr.bf16.mxu0 %v3340
    %4151 = vmatpush1.bf16.msra.mxu0 %v3339
    %4152 = vmatprep.subr.bf16.mxu0 %v3342
    %4153 = vmatpush1.bf16.msra.mxu0 %v3341
    %4154 = vmatprep.subr.bf16.mxu0 %v3344
    %4155 = vmatpush1.bf16.msra.mxu0 %v3343
    %4156 = vmatprep.subr.bf16.mxu0 0
    %4157 = vmatpush1.bf16.msra.mxu0 0
    %4158 = vmatprep.subr.bf16.mxu0 0
    %4159 = vmatpush1.bf16.msra.mxu0 0
    %4160 = vmatprep.subr.bf16.mxu0 0
    %4161 = vmatpush1.bf16.msra.mxu0 0
    %4162 = vmatprep.subr.bf16.mxu0 0
    %4163 = vmatpush1.bf16.msra.mxu0 0
    %4164 = vmatprep.subr.bf16.mxu0 0
    %4165 = vmatpush1.bf16.msra.mxu0 0
    %4166 = vmatprep.subr.bf16.mxu0 0
    %4167 = vmatpush1.bf16.msra.mxu0 0
    %4168 = vmatprep.mubr.bf16.mxu0 %v3654
    %4169 = vmatmul.mubr.bf16.gmra.mrb[0].mxu0 %v1783
    %v4170 = vpop.f32.mrb[0].mxu0
    %v4171 = vadd.f32 %v4118, %v4170
    %v4172 = vpop.f32.mrb[0].mxu0
    %v4173 = vadd.f32 %v4120, %v4172
    %v4174 = vpop.f32.mrb[0].mxu0
    %v4175 = vadd.f32 %v4122, %v4174
    %v4176 = vpop.f32.mrb[0].mxu0
    %v4177 = vadd.f32 %v4124, %v4176
    %4178 = vmatprep.mubr.bf16.mxu0 %v3657
    %4179 = vmatmul.mubr.bf16.gmra.mrb[0].mxu0 %v1803
    %v4180 = vpop.f32.mrb[0].mxu0
    %v4181 = vadd.f32 %v4128, %v4180
    %v4182 = vpop.f32.mrb[0].mxu0
    %v4183 = vadd.f32 %v4130, %v4182
    %v4184 = vpop.f32.mrb[0].mxu0
    %v4185 = vadd.f32 %v4132, %v4184
    %v4186 = vpop.f32.mrb[0].mxu0
    %v4187 = vadd.f32 %v4134, %v4186
    %4188 = vdwg.mxu0
    %v4189 = vadd.f32 %v4171, %v4175
    %v4190 = vadd.f32 %v4189, %v4181
    %v4191 = vadd.f32 %v4190, %v4185
    %v4192 = vrot.slane %v4191, 4
    %v4193 = vadd.f32 %v4191, %v4192
    %v4194 = vrot.slane %v4193, 2
    %v4195 = vadd.f32 %v4193, %v4194
    %v4196 = vrot.slane %v4195, 1
    %v4197 = vadd.f32 %v4195, %v4196
    %v4198 = vadd.f32 %v4173, %v4177
    %v4199 = vadd.f32 %v4198, %v4183
    %v4200 = vadd.f32 %v4199, %v4187
    %v4201 = vrot.slane %v4200, 4
    %v4202 = vadd.f32 %v4200, %v4201
    %v4203 = vrot.slane %v4202, 2
    %v4204 = vadd.f32 %v4202, %v4203
    %v4205 = vrot.slane %v4204, 1
    %v4206 = vadd.f32 %v4204, %v4205
    %v4207 = vmul.f32 %v4171, %v4171
    %v4208 = vmul.f32 %v4173, %v4173
    %v4209 = vmul.f32 %v4175, %v4175
    %v4210 = vmul.f32 %v4177, %v4177
    %v4211 = vmul.f32 %v4181, %v4181
    %v4212 = vmul.f32 %v4183, %v4183
    %v4213 = vmul.f32 %v4185, %v4185
    %v4214 = vmul.f32 %v4187, %v4187
    %v4215 = vadd.f32 %v4207, %v4209
    %v4216 = vadd.f32 %v4215, %v4211
    %v4217 = vadd.f32 %v4216, %v4213
    %v4218 = vrot.slane %v4217, 4
    %v4219 = vadd.f32 %v4217, %v4218
    %v4220 = vrot.slane %v4219, 2
    %v4221 = vadd.f32 %v4219, %v4220
    %v4222 = vrot.slane %v4221, 1
    %v4223 = vadd.f32 %v4221, %v4222
    %v4224 = vadd.f32 %v4208, %v4210
    %v4225 = vadd.f32 %v4224, %v4212
    %v4226 = vadd.f32 %v4225, %v4214
    %v4227 = vrot.slane %v4226, 4
    %v4228 = vadd.f32 %v4226, %v4227
    %v4229 = vrot.slane %v4228, 2
    %v4230 = vadd.f32 %v4228, %v4229
    %v4231 = vrot.slane %v4230, 1
    %v4232 = vadd.f32 %v4230, %v4231
    %v4233 = vld [vmem:[%s0] sm:$0xff]
    %v4234 = vld [vmem:[%s0 + $0x8] sm:$0xff]
    %v4235 = vld [vmem:[%s0 + $0x10] sm:$0xff]
    %v4236 = vld [vmem:[%s0 + $0x18] sm:$0xff]
    %v4237 = vld [vmem:[%s0 + $0x20] sm:$0xff]
    %v4238 = vld [vmem:[%s0 + $0x28] sm:$0xff]
    %v4239 = vld [vmem:[%s0 + $0x30] sm:$0xff]
    %v4240 = vld [vmem:[%s0 + $0x38] sm:$0xff]
    %v4241 = vld [vmem:[%s0 + $0x40] sm:$0xff]
    %v4242 = vld [vmem:[%s0 + $0x48] sm:$0xff]
    %v4243 = vld [vmem:[%s0 + $0x50] sm:$0xff]
    %v4244 = vld [vmem:[%s0 + $0x58] sm:$0xff]
    %v4245 = vld [vmem:[%s0 + $0x60] sm:$0xff]
    %v4246 = vld [vmem:[%s0 + $0x68] sm:$0xff]
    %v4247 = vld [vmem:[%s0 + $0x70] sm:$0xff]
    %v4248 = vld [vmem:[%s0 + $0x78] sm:$0xff]
    %v4249 = vld [vmem:[%s0 + $0x80] sm:$0xff]
    %v4250 = vld [vmem:[%s0 + $0x88] sm:$0xff]
    %v4251 = vld [vmem:[%s0 + $0x90] sm:$0xff]
    %v4252 = vld [vmem:[%s0 + $0x98] sm:$0xff]
    %v4253 = vld [vmem:[%s0 + $0xa0] sm:$0xff]
    %v4254 = vld [vmem:[%s0 + $0xa8] sm:$0xff]
    %v4255 = vld [vmem:[%s0 + $0xb0] sm:$0xff]
    %v4256 = vld [vmem:[%s0 + $0xb8] sm:$0xff]
    %v4257 = vld [vmem:[%s0 + $0xc0] sm:$0xff]
    %v4258 = vld [vmem:[%s0 + $0xc8] sm:$0xff]
    %v4259 = vld [vmem:[%s0 + $0xd0] sm:$0xff]
    %v4260 = vld [vmem:[%s0 + $0xd8] sm:$0xff]
    %v4261 = vld [vmem:[%s0 + $0xe0] sm:$0xff]
    %v4262 = vld [vmem:[%s0 + $0xe8] sm:$0xff]
    %v4263 = vld [vmem:[%s0 + $0xf0] sm:$0xff]
    %v4264 = vld [vmem:[%s0 + $0xf8] sm:$0xff]
    %4265 = vmatprep.subr.mxu0 0.0
    %4266 = vmatpush1.msra.mxu0 %v4233
    %4267 = vmatprep.subr.mxu0 0.0
    %4268 = vmatpush1.msra.mxu0 %v4234
    %4269 = vmatprep.subr.mxu0 0.0
    %4270 = vmatpush1.msra.mxu0 %v4235
    %4271 = vmatprep.subr.mxu0 0.0
    %4272 = vmatpush1.msra.mxu0 %v4236
    %4273 = vmatprep.subr.mxu0 0.0
    %4274 = vmatpush1.msra.mxu0 %v4237
    %4275 = vmatprep.subr.mxu0 0.0
    %4276 = vmatpush1.msra.mxu0 %v4238
    %4277 = vmatprep.subr.mxu0 0.0
    %4278 = vmatpush1.msra.mxu0 %v4239
    %4279 = vmatprep.subr.mxu0 0.0
    %4280 = vmatpush1.msra.mxu0 %v4240
    %4281 = vmatprep.subr.mxu0 0.0
    %4282 = vmatpush1.msra.mxu0 %v4241
    %4283 = vmatprep.subr.mxu0 0.0
    %4284 = vmatpush1.msra.mxu0 %v4242
    %4285 = vmatprep.subr.mxu0 0.0
    %4286 = vmatpush1.msra.mxu0 %v4243
    %4287 = vmatprep.subr.mxu0 0.0
    %4288 = vmatpush1.msra.mxu0 %v4244
    %4289 = vmatprep.subr.mxu0 0.0
    %4290 = vmatpush1.msra.mxu0 %v4245
    %4291 = vmatprep.subr.mxu0 0.0
    %4292 = vmatpush1.msra.mxu0 %v4246
    %4293 = vmatprep.subr.mxu0 0.0
    %4294 = vmatpush1.msra.mxu0 %v4247
    %4295 = vmatprep.subr.mxu0 0.0
    %4296 = vmatpush1.msra.mxu0 %v4248
    %4297 = vmatprep.subr.mxu0 0.0
    %4298 = vmatpush1.msra.mxu0 %v4249
    %4299 = vmatprep.subr.mxu0 0.0
    %4300 = vmatpush1.msra.mxu0 %v4250
    %4301 = vmatprep.subr.mxu0 0.0
    %4302 = vmatpush1.msra.mxu0 %v4251
    %4303 = vmatprep.subr.mxu0 0.0
    %4304 = vmatpush1.msra.mxu0 %v4252
    %4305 = vmatprep.subr.mxu0 0.0
    %4306 = vmatpush1.msra.mxu0 %v4253
    %4307 = vmatprep.subr.mxu0 0.0
    %4308 = vmatpush1.msra.mxu0 %v4254
    %4309 = vmatprep.subr.mxu0 0.0
    %4310 = vmatpush1.msra.mxu0 %v4255
    %4311 = vmatprep.subr.mxu0 0.0
    %4312 = vmatpush1.msra.mxu0 %v4256
    %4313 = vmatprep.subr.mxu0 0.0
    %4314 = vmatpush1.msra.mxu0 %v4257
    %4315 = vmatprep.subr.mxu0 0.0
    %4316 = vmatpush1.msra.mxu0 %v4258
    %4317 = vmatprep.subr.mxu0 0.0
    %4318 = vmatpush1.msra.mxu0 %v4259
    %4319 = vmatprep.subr.mxu0 0.0
    %4320 = vmatpush1.msra.mxu0 %v4260
    %4321 = vmatprep.subr.mxu0 0.0
    %4322 = vmatpush1.msra.mxu0 %v4261
    %4323 = vmatprep.subr.mxu0 0.0
    %4324 = vmatpush1.msra.mxu0 %v4262
    %4325 = vmatprep.subr.mxu0 0.0
    %4326 = vmatpush1.msra.mxu0 %v4263
    %4327 = vmatprep.subr.mxu0 0.0
    %4328 = vmatpush1.msra.mxu0 %v4264
    %4329 = vmatprep.mubr.f32.mxu0 %v4206
    %4330 = vmatmul.mubr.f32.gmra.mrb[0].mxu0 %v4197
    %v4331 = vpop.f32.mrb[0].mxu0
    %v4332 = vadd.f32 0.0, %v4331
    %v4333 = vpop.f32.mrb[0].mxu0
    %4334 = vdwg.mxu0
    %v4335 = vmul.f32 %v4332, %v818
    %4336 = vmatprep.subr.mxu0 0.0
    %4337 = vmatpush1.msra.mxu0 %v4233
    %4338 = vmatprep.subr.mxu0 0.0
    %4339 = vmatpush1.msra.mxu0 %v4234
    %4340 = vmatprep.subr.mxu0 0.0
    %4341 = vmatpush1.msra.mxu0 %v4235
    %4342 = vmatprep.subr.mxu0 0.0
    %4343 = vmatpush1.msra.mxu0 %v4236
    %4344 = vmatprep.subr.mxu0 0.0
    %4345 = vmatpush1.msra.mxu0 %v4237
    %4346 = vmatprep.subr.mxu0 0.0
    %4347 = vmatpush1.msra.mxu0 %v4238
    %4348 = vmatprep.subr.mxu0 0.0
    %4349 = vmatpush1.msra.mxu0 %v4239
    %4350 = vmatprep.subr.mxu0 0.0
    %4351 = vmatpush1.msra.mxu0 %v4240
    %4352 = vmatprep.subr.mxu0 0.0
    %4353 = vmatpush1.msra.mxu0 %v4241
    %4354 = vmatprep.subr.mxu0 0.0
    %4355 = vmatpush1.msra.mxu0 %v4242
    %4356 = vmatprep.subr.mxu0 0.0
    %4357 = vmatpush1.msra.mxu0 %v4243
    %4358 = vmatprep.subr.mxu0 0.0
    %4359 = vmatpush1.msra.mxu0 %v4244
    %4360 = vmatprep.subr.mxu0 0.0
    %4361 = vmatpush1.msra.mxu0 %v4245
    %4362 = vmatprep.subr.mxu0 0.0
    %4363 = vmatpush1.msra.mxu0 %v4246
    %4364 = vmatprep.subr.mxu0 0.0
    %4365 = vmatpush1.msra.mxu0 %v4247
    %4366 = vmatprep.subr.mxu0 0.0
    %4367 = vmatpush1.msra.mxu0 %v4248
    %4368 = vmatprep.subr.mxu0 0.0
    %4369 = vmatpush1.msra.mxu0 %v4249
    %4370 = vmatprep.subr.mxu0 0.0
    %4371 = vmatpush1.msra.mxu0 %v4250
    %4372 = vmatprep.subr.mxu0 0.0
    %4373 = vmatpush1.msra.mxu0 %v4251
    %4374 = vmatprep.subr.mxu0 0.0
    %4375 = vmatpush1.msra.mxu0 %v4252
    %4376 = vmatprep.subr.mxu0 0.0
    %4377 = vmatpush1.msra.mxu0 %v4253
    %4378 = vmatprep.subr.mxu0 0.0
    %4379 = vmatpush1.msra.mxu0 %v4254
    %4380 = vmatprep.subr.mxu0 0.0
    %4381 = vmatpush1.msra.mxu0 %v4255
    %4382 = vmatprep.subr.mxu0 0.0
    %4383 = vmatpush1.msra.mxu0 %v4256
    %4384 = vmatprep.subr.mxu0 0.0
    %4385 = vmatpush1.msra.mxu0 %v4257
    %4386 = vmatprep.subr.mxu0 0.0
    %4387 = vmatpush1.msra.mxu0 %v4258
    %4388 = vmatprep.subr.mxu0 0.0
    %4389 = vmatpush1.msra.mxu0 %v4259
    %4390 = vmatprep.subr.mxu0 0.0
    %4391 = vmatpush1.msra.mxu0 %v4260
    %4392 = vmatprep.subr.mxu0 0.0
    %4393 = vmatpush1.msra.mxu0 %v4261
    %4394 = vmatprep.subr.mxu0 0.0
    %4395 = vmatpush1.msra.mxu0 %v4262
    %4396 = vmatprep.subr.mxu0 0.0
    %4397 = vmatpush1.msra.mxu0 %v4263
    %4398 = vmatprep.subr.mxu0 0.0
    %4399 = vmatpush1.msra.mxu0 %v4264
    %4400 = vmatprep.mubr.f32.mxu0 %v4232
    %4401 = vmatmul.mubr.f32.gmra.mrb[0].mxu0 %v4223
    %v4402 = vpop.f32.mrb[0].mxu0
    %v4403 = vadd.f32 0.0, %v4402
    %v4404 = vpop.f32.mrb[0].mxu0
    %4405 = vdwg.mxu0
    %v4406 = vmul.f32 %v4403, %v818
    %v4407 = vmul.f32 %v4335, %v4335
    %v4408 = vsub.f32 %v4406, %v4407
    %v4409 = vmax.f32 %v4408, 0.0
    %v4410 = vadd.f32 %v4409, 1e-05
    %v4411 = vrsqrt.pop %v4410
    %4413 = vrot.lane.b32.xlu0 %v4411, 16
    %v4414 = vpop.permute.xlu0 %4413
    %4416 = vrot.lane.b32.xlu0 %v4411, 32
    %v4417 = vpop.permute.xlu0 %4416
    %4419 = vrot.lane.b32.xlu0 %v4411, 48
    %v4420 = vpop.permute.xlu0 %4419
    %4422 = vrot.lane.b32.xlu0 %v4411, 64
    %v4423 = vpop.permute.xlu0 %4422
    %4425 = vrot.lane.b32.xlu0 %v4411, 80
    %v4426 = vpop.permute.xlu0 %4425
    %4428 = vrot.lane.b32.xlu0 %v4411, 96
    %v4429 = vpop.permute.xlu0 %4428
    %4431 = vrot.lane.b32.xlu0 %v4411, 112
    %v4432 = vpop.permute.xlu0 %4431
    %v4434 = vsel %vm918, %v4411, %v4414
    %v4435 = vsel %vm920, %v4434, %v4417
    %v4436 = vsel %vm297, %v4435, %v4420
    %v4437 = vsel %vm923, %v4436, %v4423
    %v4438 = vsel %vm925, %v4437, %v4426
    %v4439 = vsel %vm927, %v4438, %v4429
    %v4440 = vsel %vm929, %v4439, %v4432
    %v4441 = vld [vmem:[#allocation13] sm:$0x3]
    %v4443 = vlaneseq
    %v4444 = vshrl.u32 %v4443, 7
    %v4445 = vsub.s32 0, %v4444
    %v4446 = vrot.slane %v4441, %v4445
    %v4447 = vlaneseq
    %v4448 = vshrl.u32 %v4447, 7
    %v4449 = vsub.s32 1, %v4448
    %v4450 = vrot.slane %v4441, %v4449
    %v4453 = vmul.f32 %v4440, %v4446
    %v4454 = vmul.f32 %v4440, %v4450
    %4456 = vrot.lane.b32.xlu0 %v4335, 16
    %v4457 = vpop.permute.xlu0 %4456
    %4459 = vrot.lane.b32.xlu0 %v4335, 32
    %v4460 = vpop.permute.xlu0 %4459
    %4462 = vrot.lane.b32.xlu0 %v4335, 48
    %v4463 = vpop.permute.xlu0 %4462
    %4465 = vrot.lane.b32.xlu0 %v4335, 64
    %v4466 = vpop.permute.xlu0 %4465
    %4468 = vrot.lane.b32.xlu0 %v4335, 80
    %v4469 = vpop.permute.xlu0 %4468
    %4471 = vrot.lane.b32.xlu0 %v4335, 96
    %v4472 = vpop.permute.xlu0 %4471
    %4474 = vrot.lane.b32.xlu0 %v4335, 112
    %v4475 = vpop.permute.xlu0 %4474
    %v4477 = vsel %vm918, %v4335, %v4457
    %v4478 = vsel %vm920, %v4477, %v4460
    %v4479 = vsel %vm297, %v4478, %v4463
    %v4480 = vsel %vm923, %v4479, %v4466
    %v4481 = vsel %vm925, %v4480, %v4469
    %v4482 = vsel %vm927, %v4481, %v4472
    %v4483 = vsel %vm929, %v4482, %v4475
    %v4484 = vlaneseq
    %v4485 = vshrl.u32 %v4484, 7
    %v4486 = vsub.s32 0, %v4485
    %v4487 = vrot.slane %v4483, %v4486
    %v4488 = vsub.f32 %v4171, %v4487
    %v4489 = vsub.f32 %v4173, %v4487
    %v4490 = vsub.f32 %v4175, %v4487
    %v4491 = vsub.f32 %v4177, %v4487
    %v4492 = vsub.f32 %v4181, %v4487
    %v4493 = vsub.f32 %v4183, %v4487
    %v4494 = vsub.f32 %v4185, %v4487
    %v4495 = vsub.f32 %v4187, %v4487
    %v4496 = vlaneseq
    %v4497 = vshrl.u32 %v4496, 7
    %v4498 = vsub.s32 0, %v4497
    %v4499 = vrot.slane %v4453, %v4498
    %v4500 = vlaneseq
    %v4501 = vshrl.u32 %v4500, 7
    %v4502 = vsub.s32 0, %v4501
    %v4503 = vrot.slane %v4454, %v4502
    %v4504 = vmul.f32 %v4488, %v4499
    %v4505 = vmul.f32 %v4489, %v4503
    %v4506 = vmul.f32 %v4490, %v4499
    %v4507 = vmul.f32 %v4491, %v4503
    %v4508 = vmul.f32 %v4492, %v4499
    %v4509 = vmul.f32 %v4493, %v4503
    %v4510 = vmul.f32 %v4494, %v4499
    %v4511 = vmul.f32 %v4495, %v4503
    %v4512 = vld [vmem:[#allocation15] sm:$0x3]
    %v4514 = vlaneseq
    %v4515 = vshrl.u32 %v4514, 7
    %v4516 = vsub.s32 0, %v4515
    %v4517 = vrot.slane %v4512, %v4516
    %v4518 = vlaneseq
    %v4519 = vshrl.u32 %v4518, 7
    %v4520 = vsub.s32 1, %v4519
    %v4521 = vrot.slane %v4512, %v4520
    %v4524 = vadd.f32 %v4504, %v4517
    %v4525 = vadd.f32 %v4505, %v4521
    %v4526 = vadd.f32 %v4506, %v4517
    %v4527 = vadd.f32 %v4507, %v4521
    %v4528 = vadd.f32 %v4508, %v4517
    %v4529 = vadd.f32 %v4509, %v4521
    %v4530 = vadd.f32 %v4510, %v4517
    %v4531 = vadd.f32 %v4511, %v4521
    %v4532 = vmax.f32 %v4524, 0.0
    %v4533 = vmax.f32 %v4525, 0.0
    %v4534 = vmax.f32 %v4526, 0.0
    %v4535 = vmax.f32 %v4527, 0.0
    %v4536 = vmax.f32 %v4528, 0.0
    %v4537 = vmax.f32 %v4529, 0.0
    %v4538 = vmax.f32 %v4530, 0.0
    %v4539 = vmax.f32 %v4531, 0.0
    %4540 = vst [vmem:[#allocation16] sm:$0xff] %v4532
    %4541 = vst [vmem:[#allocation16 + $0x8] sm:$0xff] %v4533
    %4542 = vst [vmem:[#allocation16 + $0x10] sm:$0xff] %v4534
    %4543 = vst [vmem:[#allocation16 + $0x18] sm:$0xff] %v4535
    %4544 = vst [vmem:[#allocation16 + $0x20] sm:$0xff] %v4536
    %4545 = vst [vmem:[#allocation16 + $0x28] sm:$0xff] %v4537
    %4546 = vst [vmem:[#allocation16 + $0x30] sm:$0xff] %v4538
    %4547 = vst [vmem:[#allocation16 + $0x38] sm:$0xff] %v4539
    // Predicated region
    $region62: #{tpu_custom_call.1} parent=1 // pred_check
      _
    $region63: #{tpu_custom_call.1} parent=1 // pred_check_branch
      %4549 = sbr.rel (0) target = $region65
    $region64: #{tpu_custom_call.1} parent=1 // pred_region
      %s4551 = ssub.s32 1024, 1024
      %4552 = vsyncadd [#allocation6], %s4551
      %s4553 = sshll.u32 [#allocation16], 4
      %s4554 = int_to_ptr.vmem [resolvable:$true] %s4553
      %4559 = dma.vmem_to_hbm [thread:$0]  %s4554, 1024, %s8, [#allocation6], 256, 256, 16
    $region65: #{tpu_custom_call.1} parent=1 // pred_fallthru
      _
    // Predicated region
    $region66: #{tpu_custom_call.1} parent=1 // pred_check
      _
    $region67: #{tpu_custom_call.1} parent=1 // pred_check_branch
      %4561 = sbr.rel (0) target = $region69
    $region68: #{tpu_custom_call.1} parent=1 // pred_region
      %4562 = dma.done [#allocation6], 1024
    $region69: #{tpu_custom_call.1} parent=1 // pred_fallthru
      _
    %4563 = vsyncpa [#allocation5], 1
    %4564 = vsyncpa [#allocation8], 1
    %4565 = vsyncpa [#allocation11], 1
    %4566 = vsyncpa [#allocation14], 1
    %4567 = vsyncpa [#allocation6], 1

</llo_original>
